<compile_context>
chip_gen: v5e
topology: v5e:2x2
jax: 0.10.0
libtpu: 0.0.40
codegen_flags: <defaults>
</compile_context>

<pallas_src>
import functools

import jax
import jax.numpy as jnp
from jax.experimental import pallas as pl
from jax.experimental.pallas import tpu as pltpu


# --------------------------------------------------------------------------
# Kernel A: conv_init + ReLU + fused 1x1 preprocess convs + BN partial stats
# --------------------------------------------------------------------------

def _init_cell_stats_kernel(m_total, tm, cols_ref, wi_ref, bi_ref, w01_ref,
                            h01_ref, stats_ref):
    # conv_init (3x3 conv as im2col matmul, bf16 on the MXU) + bias (f32).
    h = jnp.dot(cols_ref[...], wi_ref[...],
                preferred_element_type=jnp.float32) + bi_ref[...]
    xr = jnp.maximum(h, 0.0)                          # ReLU of ReLUConvBN
    # the two 1x1 preprocess convs fused as one (F -> 2*Cq) bf16 matmul.
    h01 = jnp.dot(xr.astype(jnp.bfloat16), w01_ref[...],
                  preferred_element_type=jnp.float32)
    h01_ref[...] = h01

    # masked per-tile BatchNorm statistics (rows >= m_total are padding rows).
    row = pl.program_id(0) * tm + jax.lax.broadcasted_iota(
        jnp.int32, (tm, 1), 0)
    valid = (row < m_total).astype(jnp.float32)
    hv = h01 * valid
    ssum = jnp.sum(hv, axis=0, keepdims=True)         # (1, 2*Cq)
    ssq = jnp.sum(hv * h01, axis=0, keepdims=True)    # (1, 2*Cq)
    stats_ref[...] = jnp.concatenate([ssum, ssq], axis=0)[None]


# --------------------------------------------------------------------------
# Kernel C: BN-apply + Cell + ReLU + conv_zero(3x3) + coupling + logdet
# --------------------------------------------------------------------------

def _cell_convzero_coupling_kernel(h01_ref, scale_ref, shift_ref, inb_ref,
                                   wz_ref, beff_ref, outb_ref, logdet_ref,
                                   pad_buf):
    _, H, W, Cq2 = h01_ref.shape
    Cq = Cq2 // 2
    F = wz_ref.shape[1]                               # == 4 * Cq (multiplier=4)
    C = wz_ref.shape[2]
    c = C // 2

    # ZeroConv2d pads its input with value 1.0.  Re-fill the scratch every
    # step (cheap vs. the 9 tap reads below) so it stays correct when the
    # "parallel" N axis is sharded across TensorCores (megacore-safe).
    pad_buf[...] = jnp.ones(pad_buf.shape, pad_buf.dtype)

    # BN-apply + Cell(skip_connect ops) + ReLU, written straight into the
    # interior of the padded conv buffer (no concatenate; s3 = 2*s2).
    h01 = h01_ref[0]                                  # (H, W, 2*Cq) f32
    s01 = h01 * scale_ref[...] + shift_ref[...]
    s0 = s01[..., :Cq]
    s1 = s01[..., Cq:]
    s2 = s0 + s1
    s3 = 2.0 * s2
    dt = pad_buf.dtype
    pad_buf[1:H + 1, 1:W + 1, 0 * Cq:1 * Cq] = jnp.maximum(s0, 0.0).astype(dt)
    pad_buf[1:H + 1, 1:W + 1, 1 * Cq:2 * Cq] = jnp.maximum(s1, 0.0).astype(dt)
    pad_buf[1:H + 1, 1:W + 1, 2 * Cq:3 * Cq] = jnp.maximum(s2, 0.0).astype(dt)
    pad_buf[1:H + 1, 1:W + 1, 3 * Cq:4 * Cq] = jnp.maximum(s3, 0.0).astype(dt)

    # conv_zero: 3x3 conv as 9 accumulated MXU matmuls over shifted windows
    # (bias and exp(3*zscale) are folded into wz/beff in the wrapper).
    acc = jnp.zeros((H * W, C), jnp.float32)
    for kh in range(3):
        for kw in range(3):
            patch = pad_buf[kh:kh + H, kw:kw + W, :].reshape(H * W, F)
            acc = acc + jnp.dot(patch, wz_ref[kh * 3 + kw],
                                preferred_element_type=jnp.float32)
    z = (acc + beff_ref[...]).reshape(H, W, C)

    # affine coupling + per-sample logdet, stable log-sigmoid form:
    #   log s = log sigmoid(log_s + 2) = -softplus(-(log_s + 2))
    a = z[..., :c] + 2.0
    t = z[..., c:]
    log_s = -(jnp.maximum(-a, 0.0) + jnp.log(1.0 + jnp.exp(-jnp.abs(a))))
    s = jnp.exp(log_s)
    outb_ref[0] = (inb_ref[0] + t) * s
    ld = jnp.sum(log_s, axis=2, keepdims=True)
    ld = jnp.sum(ld, axis=1, keepdims=True)
    ld = jnp.sum(ld, axis=0, keepdims=True)
    logdet_ref[...] = ld


# --------------------------------------------------------------------------
# Plain-JAX glue (small im2col for conv_init only, parameters, layout)
# --------------------------------------------------------------------------

def im2col3x3(x, pad_value):
    """x: (N, H, W, C) -> (N*H*W, 9*C) patches, 3x3 window, pad=1.
    Only used for conv_init, whose 9*(in_channel//2) columns are tiny;
    conv_zero's 9*filter_size patch extraction is done inside the kernel."""
    N, H, W, C = x.shape
    xp = jnp.pad(x, ((0, 0), (1, 1), (1, 1), (0, 0)), constant_values=pad_value)
    patches = [xp[:, i:i + H, j:j + W, :] for i in range(3) for j in range(3)]
    cols = jnp.concatenate(patches, axis=-1)          # order: (kh, kw, C)
    return cols.reshape(N * H * W, 9 * C)


def init_params(key, in_channel, filter_size, multiplier):
    c_half = in_channel // 2
    cq = filter_size // multiplier
    k = jax.random.split(key, 6)
    # conv_init: weight ~ N(0, 0.05), bias = 0 (as in the PyTorch __init__).
    w_init = 0.05 * jax.random.normal(k[0], (filter_size, c_half, 3, 3), jnp.float32)
    b_init = jnp.zeros((filter_size,), jnp.float32)
    # ReLUConvBN 1x1 convs (bias=False).
    w_pre0 = 0.1 * jax.random.normal(k[1], (cq, filter_size), jnp.float32)
    w_pre1 = 0.1 * jax.random.normal(k[2], (cq, filter_size), jnp.float32)
    # ZeroConv2d params (PyTorch zero-inits; small deterministic values here).
    w_zero = 0.05 * jax.random.normal(k[3], (in_channel, filter_size, 3, 3), jnp.float32)
    b_zero = 0.05 * jax.random.normal(k[4], (in_channel,), jnp.float32)
    zscale = 0.1 * jax.random.normal(k[5], (in_channel,), jnp.float32)
    return dict(
        # (O, I, kh, kw) -> (kh*kw*I, O), matching im2col patch order; bf16.
        w_init_mat=jnp.transpose(w_init, (2, 3, 1, 0))
        .reshape(9 * c_half, filter_size).astype(jnp.bfloat16),
        b_init=b_init.reshape(1, filter_size),
        # both 1x1 preprocess convs fused: (F, 2*Cq), bf16.
        w01_mat=jnp.concatenate([w_pre0.T, w_pre1.T], axis=1).astype(jnp.bfloat16),
        # conv_zero as 9 per-tap (F, C) matrices (kh-major), kept f32 so the
        # exp(3*zscale) fold happens in f32 before the bf16 cast.
        w_zero_taps=jnp.transpose(w_zero, (2, 3, 1, 0)).reshape(9, filter_size, in_channel),
        b_zero=b_zero,
        zscale=zscale,
    )


@jax.jit
def affine_coupling_forward(x_nchw, params):
    x = jnp.transpose(x_nchw, (0, 2, 3, 1)).astype(jnp.float32)   # NCHW -> NHWC
    N, H, W, C = x.shape
    c = C // 2
    in_a = x[..., :c]
    in_b = x[..., c:]

    F = params["w_init_mat"].shape[1]       # filter_size
    Cq2 = params["w01_mat"].shape[1]        # 2 * Cq
    M = N * H * W

    # ---- pass 1: conv_init + ReLU + 1x1 preprocess convs + BN stats --------
    cols = im2col3x3(in_a, 0.0).astype(jnp.bfloat16)              # (M, 9*c)
    Kc = cols.shape[1]

    tm = min(512, ((M + 7) // 8) * 8)       # 256-512 class M tiles
    n_tiles = pl.cdiv(M, tm)
    m_pad = n_tiles * tm
    if m_pad != M:                          # padded + masked last tile
        cols = jnp.pad(cols, ((0, m_pad - M), (0, 0)))

    h01, pstats = pl.pallas_call(
        functools.partial(_init_cell_stats_kernel, M, tm),
        out_shape=(jax.ShapeDtypeStruct((m_pad, Cq2), jnp.float32),
                   jax.ShapeDtypeStruct((n_tiles, 2, Cq2), jnp.float32)),
        grid=(n_tiles,),
        in_specs=[
            pl.BlockSpec((tm, Kc), lambda i: (i, 0)),
            pl.BlockSpec((Kc, F), lambda i: (0, 0)),
            pl.BlockSpec((1, F), lambda i: (0, 0)),
            pl.BlockSpec((F, Cq2), lambda i: (0, 0)),
        ],
        out_specs=(
            pl.BlockSpec((tm, Cq2), lambda i: (i, 0)),
            pl.BlockSpec((1, 2, Cq2), lambda i: (i, 0, 0)),
        ),
        compiler_params=pltpu.CompilerParams(
            dimension_semantics=("parallel",),
            vmem_limit_bytes=48 * 1024 * 1024),   # fits v7x's 64 MiB VMEM
    )(cols, params["w_init_mat"], params["b_init"], params["w01_mat"])

    # global BatchNorm statistics (tiny XLA reduction over per-tile partials).
    stats = jnp.sum(pstats, axis=0)                      # (2, 2*Cq)
    mean = stats[0] / M
    var = stats[1] / M - mean * mean                     # biased var (train mode)
    inv = jax.lax.rsqrt(var + 1e-5)
    bn_scale = inv.reshape(1, Cq2)
    bn_shift = (-mean * inv).reshape(1, Cq2)

    h01_img = h01[:M].reshape(N, H, W, Cq2)              # f32, keeps BN numerics

    # fold ZeroConv2d's exp(scale*3) into its conv weights / bias.
    e = jnp.exp(params["zscale"] * 3.0)                  # (C,)
    wz = (params["w_zero_taps"] * e[None, None, :]).astype(jnp.bfloat16)  # (9,F,C)
    beff = (params["b_zero"] * e).reshape(1, C)

    # ---- pass 2: BN-apply + cell + ReLU + conv_zero + coupling + logdet ----
    out_b, logdet = pl.pallas_call(
        _cell_convzero_coupling_kernel,
        out_shape=(jax.ShapeDtypeStruct((N, H, W, c), jnp.float32),
                   jax.ShapeDtypeStruct((N, 1, 1), jnp.float32)),
        grid=(N,),
        in_specs=[
            pl.BlockSpec((1, H, W, Cq2), lambda n: (n, 0, 0, 0)),
            pl.BlockSpec((1, Cq2), lambda n: (0, 0)),
            pl.BlockSpec((1, Cq2), lambda n: (0, 0)),
            pl.BlockSpec((1, H, W, c), lambda n: (n, 0, 0, 0)),
            pl.BlockSpec((9, F, C), lambda n: (0, 0, 0)),
            pl.BlockSpec((1, C), lambda n: (0, 0)),
        ],
        out_specs=(
            pl.BlockSpec((1, H, W, c), lambda n: (n, 0, 0, 0)),
            pl.BlockSpec((1, 1, 1), lambda n: (n, 0, 0)),
        ),
        scratch_shapes=[pltpu.VMEM((H + 2, W + 2, F), jnp.bfloat16)],
        compiler_params=pltpu.CompilerParams(
            dimension_semantics=("parallel",),
            vmem_limit_bytes=48 * 1024 * 1024),
    )(h01_img, bn_scale, bn_shift, in_b, wz, beff)

    out = jnp.concatenate([in_a, out_b], axis=-1)        # cat([in_a, out_b], ch)
    return jnp.transpose(out, (0, 3, 1, 2)), logdet.reshape(N)


if __name__ == "__main__":
    key = jax.random.PRNGKey(0)
    kx, kp = jax.random.split(key)

    batch, in_channel, hw = 2, 8, 8
    filter_size, multiplier = 32, 4                      # small stand-in for 512

    x = jax.random.normal(kx, (batch, in_channel, hw, hw), jnp.float32)  # NCHW
    params = init_params(kp, in_channel, filter_size, multiplier)

    out, logdet = affine_coupling_forward(x, params)
    jax.block_until_ready((out, logdet))

    assert out.shape == (batch, in_channel, hw, hw)
    assert logdet.shape == (batch,)
    assert bool(jnp.all(jnp.isfinite(out))) and bool(jnp.all(jnp.isfinite(logdet)))
    print("KERNEL_OK")
</pallas_src>

<mosaic_0001>
module attributes {stable_mosaic.version = 11 : i64} {
  func.func @_init_cell_stats_kernel(%arg0: i32, %arg1: memref<128x36xbf16, #tpu.memory_space<vmem>>, %arg2: memref<36x32xbf16, #tpu.memory_space<vmem>>, %arg3: memref<1x32xf32, #tpu.memory_space<vmem>>, %arg4: memref<32x16xbf16, #tpu.memory_space<vmem>>, %arg5: memref<128x16xf32, #tpu.memory_space<vmem>>, %arg6: memref<1x2x16xf32, #tpu.memory_space<vmem>>) attributes {dimension_semantics = [#tpu.dimension_semantics<parallel>], iteration_bounds = array<i64: 1>, scalar_prefetch = 0 : i64, scratch_operands = 0 : i64, tpu.core_type = #tpu.core_type<tc>, window_params = [{transform_indices = @transform_0, window_bounds = array<i64: 128, 36>}, {pipeline_mode = #tpu.pipeline_mode<synchronous>, transform_indices = @transform_1, window_bounds = array<i64: 36, 32>}, {pipeline_mode = #tpu.pipeline_mode<synchronous>, transform_indices = @transform_2, window_bounds = array<i64: 1, 32>}, {pipeline_mode = #tpu.pipeline_mode<synchronous>, transform_indices = @transform_3, window_bounds = array<i64: 32, 16>}, {transform_indices = @transform_4, window_bounds = array<i64: 128, 16>}, {transform_indices = @transform_5, window_bounds = array<i64: 1, 2, 16>}]} {
    %c0 = arith.constant 0 : index
    %c0_0 = arith.constant 0 : index
    %0 = vector.load %arg1[%c0, %c0_0] : memref<128x36xbf16, #tpu.memory_space<vmem>>, vector<128x36xbf16>
    %c0_1 = arith.constant 0 : index
    %c0_2 = arith.constant 0 : index
    %1 = vector.load %arg2[%c0_1, %c0_2] : memref<36x32xbf16, #tpu.memory_space<vmem>>, vector<36x32xbf16>
    %cst = arith.constant dense<0.000000e+00> : vector<128x32xf32>
    %2 = tpu.matmul %0, %1, %cst {dimension_numbers = #tpu.dot_dimension_numbers<[1], [0], [0], [1], [0, 0, 1, 1], [], []>} : vector<128x36xbf16>, vector<36x32xbf16>, vector<128x32xf32> -> vector<128x32xf32>
    %c0_3 = arith.constant 0 : index
    %c0_4 = arith.constant 0 : index
    %3 = vector.load %arg3[%c0_3, %c0_4] : memref<1x32xf32, #tpu.memory_space<vmem>>, vector<1x32xf32>
    %4 = vector.broadcast %3 : vector<1x32xf32> to vector<128x32xf32>
    %5 = arith.addf %2, %4 : vector<128x32xf32>
    %cst_5 = arith.constant 0.000000e+00 : f32
    %6 = vector.broadcast %cst_5 : f32 to vector<128x32xf32>
    %7 = arith.maximumf %5, %6 : vector<128x32xf32>
    %8 = arith.truncf %7 : vector<128x32xf32> to vector<128x32xbf16>
    %c0_6 = arith.constant 0 : index
    %c0_7 = arith.constant 0 : index
    %9 = vector.load %arg4[%c0_6, %c0_7] : memref<32x16xbf16, #tpu.memory_space<vmem>>, vector<32x16xbf16>
    %cst_8 = arith.constant dense<0.000000e+00> : vector<128x16xf32>
    %10 = tpu.matmul %8, %9, %cst_8 {dimension_numbers = #tpu.dot_dimension_numbers<[1], [0], [0], [1], [0, 0, 1, 1], [], []>} : vector<128x32xbf16>, vector<32x16xbf16>, vector<128x16xf32> -> vector<128x16xf32>
    %c0_9 = arith.constant 0 : index
    %c0_10 = arith.constant 0 : index
    %11 = vector.load %arg5[%c0_9, %c0_10] : memref<128x16xf32, #tpu.memory_space<vmem>>, vector<128x16xf32>
    tpu.vector_store %arg5[%c0_9, %c0_10], %10 {strides = array<i32>} : memref<128x16xf32, #tpu.memory_space<vmem>>, vector<128x16xf32>,
    %c128_i32 = arith.constant 128 : i32
    %12 = arith.muli %arg0, %c128_i32 : i32
    %13 = tpu.iota {dimensions = array<i32: 0>} : vector<128x1xi32>
    %14 = vector.broadcast %12 : i32 to vector<128x1xi32>
    %15 = arith.addi %14, %13 : vector<128x1xi32>
    %c128_i32_11 = arith.constant 128 : i32
    %16 = vector.broadcast %c128_i32_11 : i32 to vector<128x1xi32>
    %17 = arith.cmpi slt, %15, %16 : vector<128x1xi32>
    %18 = arith.extui %17 : vector<128x1xi1> to vector<128x1xi32>
    %19 = arith.sitofp %18 : vector<128x1xi32> to vector<128x1xf32>
    %20 = vector.broadcast %19 : vector<128x1xf32> to vector<128x16xf32>
    %21 = arith.mulf %10, %20 : vector<128x16xf32>
    %cst_12 = arith.constant dense<0.000000e+00> : vector<16xf32>
    %22 = vector.multi_reduction <add>, %21, %cst_12 [0] : vector<128x16xf32> to vector<16xf32>
    %23 = vector.shape_cast %22 : vector<16xf32> to vector<1x16xf32>
    %24 = arith.mulf %21, %10 : vector<128x16xf32>
    %cst_13 = arith.constant dense<0.000000e+00> : vector<16xf32>
    %25 = vector.multi_reduction <add>, %24, %cst_13 [0] : vector<128x16xf32> to vector<16xf32>
    %26 = vector.shape_cast %25 : vector<16xf32> to vector<1x16xf32>
    %27 = tpu.concatenate %23, %26 in 0 : vector<1x16xf32>, vector<1x16xf32> -> vector<2x16xf32>
    %28 = vector.shape_cast %27 : vector<2x16xf32> to vector<1x2x16xf32>
    %c0_14 = arith.constant 0 : index
    %c0_15 = arith.constant 0 : index
    %c0_16 = arith.constant 0 : index
    %29 = vector.load %arg6[%c0_14, %c0_15, %c0_16] : memref<1x2x16xf32, #tpu.memory_space<vmem>>, vector<1x2x16xf32>
    tpu.vector_store %arg6[%c0_14, %c0_15, %c0_16], %28 {strides = array<i32>} : memref<1x2x16xf32, #tpu.memory_space<vmem>>, vector<1x2x16xf32>,
    return
  }
  func.func @transform_0(%arg0: i32) -> (i32, i32) {
    %c0_i32 = arith.constant 0 : i32
    %c0_i32_0 = arith.constant 0 : i32
    return %arg0, %c0_i32 : i32, i32
  }
  func.func @transform_1(%arg0: i32) -> (i32, i32) {
    %c0_i32 = arith.constant 0 : i32
    %c0_i32_0 = arith.constant 0 : i32
    %c0_i32_1 = arith.constant 0 : i32
    return %c0_i32, %c0_i32_0 : i32, i32
  }
  func.func @transform_2(%arg0: i32) -> (i32, i32) {
    %c0_i32 = arith.constant 0 : i32
    %c0_i32_0 = arith.constant 0 : i32
    %c0_i32_1 = arith.constant 0 : i32
    return %c0_i32, %c0_i32_0 : i32, i32
  }
  func.func @transform_3(%arg0: i32) -> (i32, i32) {
    %c0_i32 = arith.constant 0 : i32
    %c0_i32_0 = arith.constant 0 : i32
    %c0_i32_1 = arith.constant 0 : i32
    return %c0_i32, %c0_i32_0 : i32, i32
  }
  func.func @transform_4(%arg0: i32) -> (i32, i32) {
    %c0_i32 = arith.constant 0 : i32
    %c0_i32_0 = arith.constant 0 : i32
    return %arg0, %c0_i32 : i32, i32
  }
  func.func @transform_5(%arg0: i32) -> (i32, i32, i32) {
    %c0_i32 = arith.constant 0 : i32
    %c0_i32_0 = arith.constant 0 : i32
    %c0_i32_1 = arith.constant 0 : i32
    return %arg0, %c0_i32, %c0_i32_0 : i32, i32, i32
  }
}

module attributes {stable_mosaic.version = 11 : i64} {
  func.func @_cell_convzero_coupling_kernel(%arg0: i32, %arg1: memref<1x8x8x16xf32, #tpu.memory_space<vmem>>, %arg2: memref<1x16xf32, #tpu.memory_space<vmem>>, %arg3: memref<1x16xf32, #tpu.memory_space<vmem>>, %arg4: memref<1x8x8x4xf32, #tpu.memory_space<vmem>>, %arg5: memref<9x32x8xbf16, #tpu.memory_space<vmem>>, %arg6: memref<1x8xf32, #tpu.memory_space<vmem>>, %arg7: memref<1x8x8x4xf32, #tpu.memory_space<vmem>>, %arg8: memref<1x1x1xf32, #tpu.memory_space<vmem>>, %arg9: memref<10x10x32xbf16, #tpu.memory_space<vmem>>) attributes {dimension_semantics = [#tpu.dimension_semantics<parallel>], iteration_bounds = array<i64: 2>, scalar_prefetch = 0 : i64, scratch_operands = 1 : i64, tpu.core_type = #tpu.core_type<tc>, window_params = [{transform_indices = @transform_0, window_bounds = array<i64: 1, 8, 8, 16>}, {pipeline_mode = #tpu.pipeline_mode<synchronous>, transform_indices = @transform_1, window_bounds = array<i64: 1, 16>}, {pipeline_mode = #tpu.pipeline_mode<synchronous>, transform_indices = @transform_2, window_bounds = array<i64: 1, 16>}, {transform_indices = @transform_3, window_bounds = array<i64: 1, 8, 8, 4>}, {pipeline_mode = #tpu.pipeline_mode<synchronous>, transform_indices = @transform_4, window_bounds = array<i64: 9, 32, 8>}, {pipeline_mode = #tpu.pipeline_mode<synchronous>, transform_indices = @transform_5, window_bounds = array<i64: 1, 8>}, {transform_indices = @transform_6, window_bounds = array<i64: 1, 8, 8, 4>}, {transform_indices = @transform_7, window_bounds = array<i64: 1, 1, 1>}]} {
    %cst = arith.constant 1.000000e+00 : bf16
    %0 = vector.broadcast %cst : bf16 to vector<10x10x32xbf16>
    %c0 = arith.constant 0 : index
    %c0_0 = arith.constant 0 : index
    %c0_1 = arith.constant 0 : index
    %1 = vector.load %arg9[%c0, %c0_0, %c0_1] : memref<10x10x32xbf16, #tpu.memory_space<vmem>>, vector<10x10x32xbf16>
    tpu.vector_store %arg9[%c0, %c0_0, %c0_1], %0 {strides = array<i32>} : memref<10x10x32xbf16, #tpu.memory_space<vmem>>, vector<10x10x32xbf16>,
    %c0_2 = arith.constant 0 : index
    %c0_3 = arith.constant 0 : index
    %c0_4 = arith.constant 0 : index
    %c0_5 = arith.constant 0 : index
    %2 = vector.load %arg1[%c0_2, %c0_3, %c0_4, %c0_5] : memref<1x8x8x16xf32, #tpu.memory_space<vmem>>, vector<1x8x8x16xf32>
    %3 = vector.shape_cast %2 : vector<1x8x8x16xf32> to vector<8x8x16xf32>
    %c0_6 = arith.constant 0 : index
    %c0_7 = arith.constant 0 : index
    %4 = vector.load %arg2[%c0_6, %c0_7] : memref<1x16xf32, #tpu.memory_space<vmem>>, vector<1x16xf32>
    %5 = vector.shape_cast %4 : vector<1x16xf32> to vector<1x1x16xf32>
    %6 = vector.broadcast %5 : vector<1x1x16xf32> to vector<8x8x16xf32>
    %7 = arith.mulf %3, %6 : vector<8x8x16xf32>
    %c0_8 = arith.constant 0 : index
    %c0_9 = arith.constant 0 : index
    %8 = vector.load %arg3[%c0_8, %c0_9] : memref<1x16xf32, #tpu.memory_space<vmem>>, vector<1x16xf32>
    %9 = vector.shape_cast %8 : vector<1x16xf32> to vector<1x1x16xf32>
    %10 = vector.broadcast %9 : vector<1x1x16xf32> to vector<8x8x16xf32>
    %11 = arith.addf %7, %10 : vector<8x8x16xf32>
    %12 = vector.extract_strided_slice %11 {offsets = [0, 0, 0], sizes = [8, 8, 8], strides = [1, 1, 1]} : vector<8x8x16xf32> to vector<8x8x8xf32>
    %13 = vector.extract_strided_slice %11 {offsets = [0, 0, 8], sizes = [8, 8, 8], strides = [1, 1, 1]} : vector<8x8x16xf32> to vector<8x8x8xf32>
    %14 = arith.addf %12, %13 : vector<8x8x8xf32>
    %cst_10 = arith.constant 2.000000e+00 : f32
    %15 = vector.broadcast %cst_10 : f32 to vector<8x8x8xf32>
    %16 = arith.mulf %15, %14 : vector<8x8x8xf32>
    %cst_11 = arith.constant 0.000000e+00 : f32
    %17 = vector.broadcast %cst_11 : f32 to vector<8x8x8xf32>
    %18 = arith.maximumf %12, %17 : vector<8x8x8xf32>
    %19 = arith.truncf %18 : vector<8x8x8xf32> to vector<8x8x8xbf16>
    %c1 = arith.constant 1 : index
    %c1_12 = arith.constant 1 : index
    %c0_13 = arith.constant 0 : index
    %20 = vector.load %arg9[%c1, %c1_12, %c0_13] : memref<10x10x32xbf16, #tpu.memory_space<vmem>>, vector<8x8x8xbf16>
    tpu.vector_store %arg9[%c1, %c1_12, %c0_13], %19 {strides = array<i32>} : memref<10x10x32xbf16, #tpu.memory_space<vmem>>, vector<8x8x8xbf16>,
    %cst_14 = arith.constant 0.000000e+00 : f32
    %21 = vector.broadcast %cst_14 : f32 to vector<8x8x8xf32>
    %22 = arith.maximumf %13, %21 : vector<8x8x8xf32>
    %23 = arith.truncf %22 : vector<8x8x8xf32> to vector<8x8x8xbf16>
    %c1_15 = arith.constant 1 : index
    %c1_16 = arith.constant 1 : index
    %c8 = arith.constant 8 : index
    %24 = vector.load %arg9[%c1_15, %c1_16, %c8] : memref<10x10x32xbf16, #tpu.memory_space<vmem>>, vector<8x8x8xbf16>
    tpu.vector_store %arg9[%c1_15, %c1_16, %c8], %23 {strides = array<i32>} : memref<10x10x32xbf16, #tpu.memory_space<vmem>>, vector<8x8x8xbf16>,
    %cst_17 = arith.constant 0.000000e+00 : f32
    %25 = vector.broadcast %cst_17 : f32 to vector<8x8x8xf32>
    %26 = arith.maximumf %14, %25 : vector<8x8x8xf32>
    %27 = arith.truncf %26 : vector<8x8x8xf32> to vector<8x8x8xbf16>
    %c1_18 = arith.constant 1 : index
    %c1_19 = arith.constant 1 : index
    %c16 = arith.constant 16 : index
    %28 = vector.load %arg9[%c1_18, %c1_19, %c16] : memref<10x10x32xbf16, #tpu.memory_space<vmem>>, vector<8x8x8xbf16>
    tpu.vector_store %arg9[%c1_18, %c1_19, %c16], %27 {strides = array<i32>} : memref<10x10x32xbf16, #tpu.memory_space<vmem>>, vector<8x8x8xbf16>,
    %cst_20 = arith.constant 0.000000e+00 : f32
    %29 = vector.broadcast %cst_20 : f32 to vector<8x8x8xf32>
    %30 = arith.maximumf %16, %29 : vector<8x8x8xf32>
    %31 = arith.truncf %30 : vector<8x8x8xf32> to vector<8x8x8xbf16>
    %c1_21 = arith.constant 1 : index
    %c1_22 = arith.constant 1 : index
    %c24 = arith.constant 24 : index
    %32 = vector.load %arg9[%c1_21, %c1_22, %c24] : memref<10x10x32xbf16, #tpu.memory_space<vmem>>, vector<8x8x8xbf16>
    tpu.vector_store %arg9[%c1_21, %c1_22, %c24], %31 {strides = array<i32>} : memref<10x10x32xbf16, #tpu.memory_space<vmem>>, vector<8x8x8xbf16>,
    %cst_23 = arith.constant 0.000000e+00 : f32
    %33 = vector.broadcast %cst_23 : f32 to vector<64x8xf32>
    %c0_24 = arith.constant 0 : index
    %c0_25 = arith.constant 0 : index
    %c0_26 = arith.constant 0 : index
    %34 = vector.load %arg9[%c0_24, %c0_25, %c0_26] : memref<10x10x32xbf16, #tpu.memory_space<vmem>>, vector<8x8x32xbf16>
    %35 = vector.shape_cast %34 : vector<8x8x32xbf16> to vector<64x32xbf16>
    %c0_27 = arith.constant 0 : index
    %c0_28 = arith.constant 0 : index
    %c0_29 = arith.constant 0 : index
    %36 = vector.load %arg5[%c0_27, %c0_28, %c0_29] : memref<9x32x8xbf16, #tpu.memory_space<vmem>>, vector<1x32x8xbf16>
    %37 = vector.shape_cast %36 : vector<1x32x8xbf16> to vector<32x8xbf16>
    %cst_30 = arith.constant dense<0.000000e+00> : vector<64x8xf32>
    %38 = tpu.matmul %35, %37, %cst_30 {dimension_numbers = #tpu.dot_dimension_numbers<[1], [0], [0], [1], [0, 0, 1, 1], [], []>} : vector<64x32xbf16>, vector<32x8xbf16>, vector<64x8xf32> -> vector<64x8xf32>
    %39 = arith.addf %33, %38 : vector<64x8xf32>
    %c0_31 = arith.constant 0 : index
    %c1_32 = arith.constant 1 : index
    %c0_33 = arith.constant 0 : index
    %40 = vector.load %arg9[%c0_31, %c1_32, %c0_33] : memref<10x10x32xbf16, #tpu.memory_space<vmem>>, vector<8x8x32xbf16>
    %41 = vector.shape_cast %40 : vector<8x8x32xbf16> to vector<64x32xbf16>
    %c1_34 = arith.constant 1 : index
    %c0_35 = arith.constant 0 : index
    %c0_36 = arith.constant 0 : index
    %42 = vector.load %arg5[%c1_34, %c0_35, %c0_36] : memref<9x32x8xbf16, #tpu.memory_space<vmem>>, vector<1x32x8xbf16>
    %43 = vector.shape_cast %42 : vector<1x32x8xbf16> to vector<32x8xbf16>
    %cst_37 = arith.constant dense<0.000000e+00> : vector<64x8xf32>
    %44 = tpu.matmul %41, %43, %cst_37 {dimension_numbers = #tpu.dot_dimension_numbers<[1], [0], [0], [1], [0, 0, 1, 1], [], []>} : vector<64x32xbf16>, vector<32x8xbf16>, vector<64x8xf32> -> vector<64x8xf32>
    %45 = arith.addf %39, %44 : vector<64x8xf32>
    %c0_38 = arith.constant 0 : index
    %c2 = arith.constant 2 : index
    %c0_39 = arith.constant 0 : index
    %46 = vector.load %arg9[%c0_38, %c2, %c0_39] : memref<10x10x32xbf16, #tpu.memory_space<vmem>>, vector<8x8x32xbf16>
    %47 = vector.shape_cast %46 : vector<8x8x32xbf16> to vector<64x32xbf16>
    %c2_40 = arith.constant 2 : index
    %c0_41 = arith.constant 0 : index
    %c0_42 = arith.constant 0 : index
    %48 = vector.load %arg5[%c2_40, %c0_41, %c0_42] : memref<9x32x8xbf16, #tpu.memory_space<vmem>>, vector<1x32x8xbf16>
    %49 = vector.shape_cast %48 : vector<1x32x8xbf16> to vector<32x8xbf16>
    %cst_43 = arith.constant dense<0.000000e+00> : vector<64x8xf32>
    %50 = tpu.matmul %47, %49, %cst_43 {dimension_numbers = #tpu.dot_dimension_numbers<[1], [0], [0], [1], [0, 0, 1, 1], [], []>} : vector<64x32xbf16>, vector<32x8xbf16>, vector<64x8xf32> -> vector<64x8xf32>
    %51 = arith.addf %45, %50 : vector<64x8xf32>
    %c1_44 = arith.constant 1 : index
    %c0_45 = arith.constant 0 : index
    %c0_46 = arith.constant 0 : index
    %52 = vector.load %arg9[%c1_44, %c0_45, %c0_46] : memref<10x10x32xbf16, #tpu.memory_space<vmem>>, vector<8x8x32xbf16>
    %53 = vector.shape_cast %52 : vector<8x8x32xbf16> to vector<64x32xbf16>
    %c3 = arith.constant 3 : index
    %c0_47 = arith.constant 0 : index
    %c0_48 = arith.constant 0 : index
    %54 = vector.load %arg5[%c3, %c0_47, %c0_48] : memref<9x32x8xbf16, #tpu.memory_space<vmem>>, vector<1x32x8xbf16>
    %55 = vector.shape_cast %54 : vector<1x32x8xbf16> to vector<32x8xbf16>
    %cst_49 = arith.constant dense<0.000000e+00> : vector<64x8xf32>
    %56 = tpu.matmul %53, %55, %cst_49 {dimension_numbers = #tpu.dot_dimension_numbers<[1], [0], [0], [1], [0, 0, 1, 1], [], []>} : vector<64x32xbf16>, vector<32x8xbf16>, vector<64x8xf32> -> vector<64x8xf32>
    %57 = arith.addf %51, %56 : vector<64x8xf32>
    %c1_50 = arith.constant 1 : index
    %c1_51 = arith.constant 1 : index
    %c0_52 = arith.constant 0 : index
    %58 = vector.load %arg9[%c1_50, %c1_51, %c0_52] : memref<10x10x32xbf16, #tpu.memory_space<vmem>>, vector<8x8x32xbf16>
    %59 = vector.shape_cast %58 : vector<8x8x32xbf16> to vector<64x32xbf16>
    %c4 = arith.constant 4 : index
    %c0_53 = arith.constant 0 : index
    %c0_54 = arith.constant 0 : index
    %60 = vector.load %arg5[%c4, %c0_53, %c0_54] : memref<9x32x8xbf16, #tpu.memory_space<vmem>>, vector<1x32x8xbf16>
    %61 = vector.shape_cast %60 : vector<1x32x8xbf16> to vector<32x8xbf16>
    %cst_55 = arith.constant dense<0.000000e+00> : vector<64x8xf32>
    %62 = tpu.matmul %59, %61, %cst_55 {dimension_numbers = #tpu.dot_dimension_numbers<[1], [0], [0], [1], [0, 0, 1, 1], [], []>} : vector<64x32xbf16>, vector<32x8xbf16>, vector<64x8xf32> -> vector<64x8xf32>
    %63 = arith.addf %57, %62 : vector<64x8xf32>
    %c1_56 = arith.constant 1 : index
    %c2_57 = arith.constant 2 : index
    %c0_58 = arith.constant 0 : index
    %64 = vector.load %arg9[%c1_56, %c2_57, %c0_58] : memref<10x10x32xbf16, #tpu.memory_space<vmem>>, vector<8x8x32xbf16>
    %65 = vector.shape_cast %64 : vector<8x8x32xbf16> to vector<64x32xbf16>
    %c5 = arith.constant 5 : index
    %c0_59 = arith.constant 0 : index
    %c0_60 = arith.constant 0 : index
    %66 = vector.load %arg5[%c5, %c0_59, %c0_60] : memref<9x32x8xbf16, #tpu.memory_space<vmem>>, vector<1x32x8xbf16>
    %67 = vector.shape_cast %66 : vector<1x32x8xbf16> to vector<32x8xbf16>
    %cst_61 = arith.constant dense<0.000000e+00> : vector<64x8xf32>
    %68 = tpu.matmul %65, %67, %cst_61 {dimension_numbers = #tpu.dot_dimension_numbers<[1], [0], [0], [1], [0, 0, 1, 1], [], []>} : vector<64x32xbf16>, vector<32x8xbf16>, vector<64x8xf32> -> vector<64x8xf32>
    %69 = arith.addf %63, %68 : vector<64x8xf32>
    %c2_62 = arith.constant 2 : index
    %c0_63 = arith.constant 0 : index
    %c0_64 = arith.constant 0 : index
    %70 = vector.load %arg9[%c2_62, %c0_63, %c0_64] : memref<10x10x32xbf16, #tpu.memory_space<vmem>>, vector<8x8x32xbf16>
    %71 = vector.shape_cast %70 : vector<8x8x32xbf16> to vector<64x32xbf16>
    %c6 = arith.constant 6 : index
    %c0_65 = arith.constant 0 : index
    %c0_66 = arith.constant 0 : index
    %72 = vector.load %arg5[%c6, %c0_65, %c0_66] : memref<9x32x8xbf16, #tpu.memory_space<vmem>>, vector<1x32x8xbf16>
    %73 = vector.shape_cast %72 : vector<1x32x8xbf16> to vector<32x8xbf16>
    %cst_67 = arith.constant dense<0.000000e+00> : vector<64x8xf32>
    %74 = tpu.matmul %71, %73, %cst_67 {dimension_numbers = #tpu.dot_dimension_numbers<[1], [0], [0], [1], [0, 0, 1, 1], [], []>} : vector<64x32xbf16>, vector<32x8xbf16>, vector<64x8xf32> -> vector<64x8xf32>
    %75 = arith.addf %69, %74 : vector<64x8xf32>
    %c2_68 = arith.constant 2 : index
    %c1_69 = arith.constant 1 : index
    %c0_70 = arith.constant 0 : index
    %76 = vector.load %arg9[%c2_68, %c1_69, %c0_70] : memref<10x10x32xbf16, #tpu.memory_space<vmem>>, vector<8x8x32xbf16>
    %77 = vector.shape_cast %76 : vector<8x8x32xbf16> to vector<64x32xbf16>
    %c7 = arith.constant 7 : index
    %c0_71 = arith.constant 0 : index
    %c0_72 = arith.constant 0 : index
    %78 = vector.load %arg5[%c7, %c0_71, %c0_72] : memref<9x32x8xbf16, #tpu.memory_space<vmem>>, vector<1x32x8xbf16>
    %79 = vector.shape_cast %78 : vector<1x32x8xbf16> to vector<32x8xbf16>
    %cst_73 = arith.constant dense<0.000000e+00> : vector<64x8xf32>
    %80 = tpu.matmul %77, %79, %cst_73 {dimension_numbers = #tpu.dot_dimension_numbers<[1], [0], [0], [1], [0, 0, 1, 1], [], []>} : vector<64x32xbf16>, vector<32x8xbf16>, vector<64x8xf32> -> vector<64x8xf32>
    %81 = arith.addf %75, %80 : vector<64x8xf32>
    %c2_74 = arith.constant 2 : index
    %c2_75 = arith.constant 2 : index
    %c0_76 = arith.constant 0 : index
    %82 = vector.load %arg9[%c2_74, %c2_75, %c0_76] : memref<10x10x32xbf16, #tpu.memory_space<vmem>>, vector<8x8x32xbf16>
    %83 = vector.shape_cast %82 : vector<8x8x32xbf16> to vector<64x32xbf16>
    %c8_77 = arith.constant 8 : index
    %c0_78 = arith.constant 0 : index
    %c0_79 = arith.constant 0 : index
    %84 = vector.load %arg5[%c8_77, %c0_78, %c0_79] : memref<9x32x8xbf16, #tpu.memory_space<vmem>>, vector<1x32x8xbf16>
    %85 = vector.shape_cast %84 : vector<1x32x8xbf16> to vector<32x8xbf16>
    %cst_80 = arith.constant dense<0.000000e+00> : vector<64x8xf32>
    %86 = tpu.matmul %83, %85, %cst_80 {dimension_numbers = #tpu.dot_dimension_numbers<[1], [0], [0], [1], [0, 0, 1, 1], [], []>} : vector<64x32xbf16>, vector<32x8xbf16>, vector<64x8xf32> -> vector<64x8xf32>
    %87 = arith.addf %81, %86 : vector<64x8xf32>
    %c0_81 = arith.constant 0 : index
    %c0_82 = arith.constant 0 : index
    %88 = vector.load %arg6[%c0_81, %c0_82] : memref<1x8xf32, #tpu.memory_space<vmem>>, vector<1x8xf32>
    %89 = vector.broadcast %88 : vector<1x8xf32> to vector<64x8xf32>
    %90 = arith.addf %87, %89 : vector<64x8xf32>
    %91 = vector.shape_cast %90 : vector<64x8xf32> to vector<8x8x8xf32>
    %92 = vector.extract_strided_slice %91 {offsets = [0, 0, 0], sizes = [8, 8, 4], strides = [1, 1, 1]} : vector<8x8x8xf32> to vector<8x8x4xf32>
    %cst_83 = arith.constant 2.000000e+00 : f32
    %93 = vector.broadcast %cst_83 : f32 to vector<8x8x4xf32>
    %94 = arith.addf %92, %93 : vector<8x8x4xf32>
    %95 = vector.extract_strided_slice %91 {offsets = [0, 0, 4], sizes = [8, 8, 4], strides = [1, 1, 1]} : vector<8x8x8xf32> to vector<8x8x4xf32>
    %cst_84 = arith.constant 0.000000e+00 : f32
    %96 = vector.broadcast %cst_84 : f32 to vector<8x8x4xf32>
    %97 = arith.subf %96, %94 : vector<8x8x4xf32>
    %cst_85 = arith.constant 0.000000e+00 : f32
    %98 = vector.broadcast %cst_85 : f32 to vector<8x8x4xf32>
    %99 = arith.maximumf %97, %98 : vector<8x8x4xf32>
    %100 = math.absf %94 : vector<8x8x4xf32>
    %cst_86 = arith.constant 0.000000e+00 : f32
    %101 = vector.broadcast %cst_86 : f32 to vector<8x8x4xf32>
    %102 = arith.subf %101, %100 : vector<8x8x4xf32>
    %103 = math.exp %102 : vector<8x8x4xf32>
    %cst_87 = arith.constant 1.000000e+00 : f32
    %104 = vector.broadcast %cst_87 : f32 to vector<8x8x4xf32>
    %105 = arith.addf %104, %103 : vector<8x8x4xf32>
    %106 = math.log %105 : vector<8x8x4xf32>
    %107 = arith.addf %99, %106 : vector<8x8x4xf32>
    %cst_88 = arith.constant 0.000000e+00 : f32
    %108 = vector.broadcast %cst_88 : f32 to vector<8x8x4xf32>
    %109 = arith.subf %108, %107 : vector<8x8x4xf32>
    %110 = math.exp %109 : vector<8x8x4xf32>
    %c0_89 = arith.constant 0 : index
    %c0_90 = arith.constant 0 : index
    %c0_91 = arith.constant 0 : index
    %c0_92 = arith.constant 0 : index
    %111 = vector.load %arg4[%c0_89, %c0_90, %c0_91, %c0_92] : memref<1x8x8x4xf32, #tpu.memory_space<vmem>>, vector<1x8x8x4xf32>
    %112 = vector.shape_cast %111 : vector<1x8x8x4xf32> to vector<8x8x4xf32>
    %113 = arith.addf %112, %95 : vector<8x8x4xf32>
    %114 = arith.mulf %113, %110 : vector<8x8x4xf32>
    %c0_93 = arith.constant 0 : index
    %c0_94 = arith.constant 0 : index
    %c0_95 = arith.constant 0 : index
    %c0_96 = arith.constant 0 : index
    %115 = vector.load %arg7[%c0_93, %c0_94, %c0_95, %c0_96] : memref<1x8x8x4xf32, #tpu.memory_space<vmem>>, vector<1x8x8x4xf32>
    %116 = vector.shape_cast %115 : vector<1x8x8x4xf32> to vector<8x8x4xf32>
    %117 = vector.shape_cast %114 : vector<8x8x4xf32> to vector<1x8x8x4xf32>
    tpu.vector_store %arg7[%c0_93, %c0_94, %c0_95, %c0_96], %117 {strides = array<i32>} : memref<1x8x8x4xf32, #tpu.memory_space<vmem>>, vector<1x8x8x4xf32>,
    %cst_97 = arith.constant dense<0.000000e+00> : vector<8x8xf32>
    %118 = vector.multi_reduction <add>, %109, %cst_97 [2] : vector<8x8x4xf32> to vector<8x8xf32>
    %119 = vector.shape_cast %118 : vector<8x8xf32> to vector<8x8x1xf32>
    %cst_98 = arith.constant dense<0.000000e+00> : vector<8x1xf32>
    %120 = vector.multi_reduction <add>, %119, %cst_98 [1] : vector<8x8x1xf32> to vector<8x1xf32>
    %121 = vector.shape_cast %120 : vector<8x1xf32> to vector<8x1x1xf32>
    %cst_99 = arith.constant dense<0.000000e+00> : vector<1x1xf32>
    %122 = vector.multi_reduction <add>, %121, %cst_99 [0] : vector<8x1x1xf32> to vector<1x1xf32>
    %123 = vector.shape_cast %122 : vector<1x1xf32> to vector<1x1x1xf32>
    %c0_100 = arith.constant 0 : index
    %c0_101 = arith.constant 0 : index
    %c0_102 = arith.constant 0 : index
    %124 = vector.load %arg8[%c0_100, %c0_101, %c0_102] : memref<1x1x1xf32, #tpu.memory_space<vmem>>, vector<1x1x1xf32>
    tpu.vector_store %arg8[%c0_100, %c0_101, %c0_102], %123 {strides = array<i32>} : memref<1x1x1xf32, #tpu.memory_space<vmem>>, vector<1x1x1xf32>,
    return
  }
  func.func @transform_0(%arg0: i32) -> (i32, i32, i32, i32) {
    %c0_i32 = arith.constant 0 : i32
    %c0_i32_0 = arith.constant 0 : i32
    %c0_i32_1 = arith.constant 0 : i32
    %c0_i32_2 = arith.constant 0 : i32
    return %arg0, %c0_i32, %c0_i32_0, %c0_i32_1 : i32, i32, i32, i32
  }
  func.func @transform_1(%arg0: i32) -> (i32, i32) {
    %c0_i32 = arith.constant 0 : i32
    %c0_i32_0 = arith.constant 0 : i32
    %c0_i32_1 = arith.constant 0 : i32
    return %c0_i32, %c0_i32_0 : i32, i32
  }
  func.func @transform_2(%arg0: i32) -> (i32, i32) {
    %c0_i32 = arith.constant 0 : i32
    %c0_i32_0 = arith.constant 0 : i32
    %c0_i32_1 = arith.constant 0 : i32
    return %c0_i32, %c0_i32_0 : i32, i32
  }
  func.func @transform_3(%arg0: i32) -> (i32, i32, i32, i32) {
    %c0_i32 = arith.constant 0 : i32
    %c0_i32_0 = arith.constant 0 : i32
    %c0_i32_1 = arith.constant 0 : i32
    %c0_i32_2 = arith.constant 0 : i32
    return %arg0, %c0_i32, %c0_i32_0, %c0_i32_1 : i32, i32, i32, i32
  }
  func.func @transform_4(%arg0: i32) -> (i32, i32, i32) {
    %c0_i32 = arith.constant 0 : i32
    %c0_i32_0 = arith.constant 0 : i32
    %c0_i32_1 = arith.constant 0 : i32
    %c0_i32_2 = arith.constant 0 : i32
    return %c0_i32, %c0_i32_0, %c0_i32_1 : i32, i32, i32
  }
  func.func @transform_5(%arg0: i32) -> (i32, i32) {
    %c0_i32 = arith.constant 0 : i32
    %c0_i32_0 = arith.constant 0 : i32
    %c0_i32_1 = arith.constant 0 : i32
    return %c0_i32, %c0_i32_0 : i32, i32
  }
  func.func @transform_6(%arg0: i32) -> (i32, i32, i32, i32) {
    %c0_i32 = arith.constant 0 : i32
    %c0_i32_0 = arith.constant 0 : i32
    %c0_i32_1 = arith.constant 0 : i32
    %c0_i32_2 = arith.constant 0 : i32
    return %arg0, %c0_i32, %c0_i32_0, %c0_i32_1 : i32, i32, i32, i32
  }
  func.func @transform_7(%arg0: i32) -> (i32, i32, i32) {
    %c0_i32 = arith.constant 0 : i32
    %c0_i32_0 = arith.constant 0 : i32
    %c0_i32_1 = arith.constant 0 : i32
    return %arg0, %c0_i32, %c0_i32_0 : i32, i32, i32
  }
}

</mosaic_0001>

<llo_original>
// kernel: affine_coupling_forward.2
$region0: #{affine_coupling_forward.2}
  #allocation0 [shape = 'u32[]', space=smem, size = 0x4, offset = 0x4, fixed_abs, tag = 'smem constant byte address 0x4 - core index']
  #allocation1 [shape = 'u32[72,128]{1,0:T(1,128)}', space=vmem, size = 0x9000, scoped, tag = 'internal scratch']
  %s0 = inlined_call_operand.vmem [shape: bf16[128,36], index: 0, kind: input, shape index: {}]
  %s1 = inlined_call_operand.vmem [shape: bf16[36,32], index: 1, kind: input, shape index: {}]
  %s2 = inlined_call_operand.vmem [shape: f32[1,32], index: 2, kind: input, shape index: {}]
  %s3 = inlined_call_operand.vmem [shape: bf16[32,16], index: 3, kind: input, shape index: {}]
  %s4 = inlined_call_operand.vmem [shape: f32[128,16], index: 4, kind: output, shape index: {0}]
  %s5 = inlined_call_operand.vmem [shape: f32[1,2,16], index: 5, kind: output, shape index: {1}]
  %6 = xla_tuple %s4, %s5
  %s7 = sld [smem:[#allocation0]]
  $region34: #{affine_coupling_forward.2} parent=0
    _
  %s9 = ssub.s32 1, %s7
  %s10 = scalar_select 0, %s9, %s7
  // Predicated region
  $region2: #{affine_coupling_forward.2} parent=0 // pred_check
    _
  $region3: #{affine_coupling_forward.2} parent=0 // pred_check_branch
    %12 = sbr.rel (0) target = $region5
  $region4: #{affine_coupling_forward.2} parent=0 // pred_region
    _
  $region5: #{affine_coupling_forward.2} parent=0 // pred_fallthru
    _
  // Predicated region
  $region6: #{affine_coupling_forward.2} parent=0 // pred_check
    _
  $region7: #{affine_coupling_forward.2} parent=0 // pred_check_branch
    %14 = sbr.rel (0) target = $region9
  $region8: #{affine_coupling_forward.2} parent=0 // pred_region
    _
  $region9: #{affine_coupling_forward.2} parent=0 // pred_fallthru
    _
  // Predicated region
  $region10: #{affine_coupling_forward.2} parent=0 // pred_check
    _
  $region11: #{affine_coupling_forward.2} parent=0 // pred_check_branch
    %16 = sbr.rel (0) target = $region13
  $region12: #{affine_coupling_forward.2} parent=0 // pred_region
    _
  $region13: #{affine_coupling_forward.2} parent=0 // pred_fallthru
    _
  // Predicated region
  $region14: #{affine_coupling_forward.2} parent=0 // pred_check
    _
  $region15: #{affine_coupling_forward.2} parent=0 // pred_check_branch
    %18 = sbr.rel (0) target = $region17
  $region16: #{affine_coupling_forward.2} parent=0 // pred_region
    _
  $region17: #{affine_coupling_forward.2} parent=0 // pred_fallthru
    _
  %v20 = vld [vmem:[%s0] sm:$0xf]
  %v21 = vld [vmem:[%s0 + $0x4] sm:$0xf]
  %v22 = vld [vmem:[%s0 + $0x8] sm:$0xf]
  %v23 = vld [vmem:[%s0 + $0xc] sm:$0xf]
  %v24 = vld [vmem:[%s0 + $0x10] sm:$0xf]
  %v25 = vld [vmem:[%s0 + $0x14] sm:$0xf]
  %v26 = vld [vmem:[%s0 + $0x18] sm:$0xf]
  %v27 = vld [vmem:[%s0 + $0x1c] sm:$0xf]
  %v28 = vld [vmem:[%s0 + $0x20] sm:$0xf]
  %v29 = vld [vmem:[%s0 + $0x24] sm:$0xf]
  %v30 = vld [vmem:[%s0 + $0x28] sm:$0xf]
  %v31 = vld [vmem:[%s0 + $0x2c] sm:$0xf]
  %v32 = vld [vmem:[%s0 + $0x30] sm:$0xf]
  %v33 = vld [vmem:[%s0 + $0x34] sm:$0xf]
  %v34 = vld [vmem:[%s0 + $0x38] sm:$0xf]
  %v35 = vld [vmem:[%s0 + $0x3c] sm:$0xf]
  %v36 = vld [vmem:[%s1] sm:$0xf]
  %v37 = vld [vmem:[%s1 + $0x4] sm:$0xf]
  %v38 = vld [vmem:[%s1 + $0x8] sm:$0xf]
  %v39 = vld [vmem:[%s1 + $0xc] sm:$0xf]
  %v40 = vld [vmem:[%s1 + $0x10] sm:$0x3]
  %v41 = vld [vmem:[%s2] sm:$0x1]
  %v43 = vperm.slane %v41, 0
  %v61 = vunpack.c.l.b16 %v20
  %v62 = vunpack.c.l.b16 %v21
  %v63 = vunpack.c.l.b16 %v22
  %v64 = vunpack.c.l.b16 %v23
  %v65 = vunpack.c.l.b16 %v24
  %v66 = vunpack.c.l.b16 %v25
  %v67 = vunpack.c.l.b16 %v26
  %v68 = vunpack.c.l.b16 %v27
  %v69 = vunpack.c.l.b16 %v28
  %v70 = vunpack.c.l.b16 %v29
  %v71 = vunpack.c.l.b16 %v30
  %v72 = vunpack.c.l.b16 %v31
  %v73 = vunpack.c.l.b16 %v32
  %v74 = vunpack.c.l.b16 %v33
  %v75 = vunpack.c.l.b16 %v34
  %v76 = vunpack.c.l.b16 %v35
  %v77 = vpack.c.b16 %v62, %v61
  %v78 = vpack.c.b16 %v64, %v63
  %v79 = vpack.c.b16 %v66, %v65
  %v80 = vpack.c.b16 %v68, %v67
  %v81 = vpack.c.b16 %v70, %v69
  %v82 = vpack.c.b16 %v72, %v71
  %v83 = vpack.c.b16 %v74, %v73
  %v84 = vpack.c.b16 %v76, %v75
  %v90 = vunpack.c.l.b16 %v36
  %v91 = vunpack.c.l.b16 %v37
  %v92 = vunpack.c.l.b16 %v38
  %v93 = vunpack.c.l.b16 %v39
  %v94 = vunpack.c.l.b16 %v40
  %v95 = vpack.c.b16 %v91, %v90
  %v96 = vpack.c.b16 %v93, %v92
  %v97 = vpack.c.b16 %v94, %v94
  %vm100 = vcmask 293888
  %v102 = vsel %vm100, %v77, 0
  %v105 = vsel %vm100, %v78, 0
  %v108 = vsel %vm100, %v79, 0
  %v111 = vsel %vm100, %v80, 0
  %v114 = vsel %vm100, %v81, 0
  %v117 = vsel %vm100, %v82, 0
  %v120 = vsel %vm100, %v83, 0
  %v123 = vsel %vm100, %v84, 0
  %vm125 = vcmask 1041408
  %v127 = vsel %vm125, %v97, 0
  %129 = vmatpush.bf16.msra.mxu0 0
  %130 = vmatpush.bf16.msra.mxu0 0
  %131 = vmatpush.bf16.msra.mxu0 0
  %132 = vmatpush.bf16.msra.mxu0 0
  %133 = vmatpush.bf16.msra.mxu0 0
  %134 = vmatpush.bf16.msra.mxu0 %v127
  %135 = vmatpush.bf16.msra.mxu0 %v96
  %136 = vmatpush.bf16.msra.mxu0 %v95
  %137 = vmatmul.bf16.gmra.mxu0 %v102
  %v138 = vpop.f32.mrf.mxu0
  %v139 = vadd.f32 %v43, %v138
  %v140 = vpop.f32.mrf.mxu0
  %v141 = vadd.f32 %v43, %v140
  %142 = vmatmul.bf16.gmra.mxu0 %v105
  %v143 = vpop.f32.mrf.mxu0
  %v144 = vadd.f32 %v43, %v143
  %v145 = vpop.f32.mrf.mxu0
  %v146 = vadd.f32 %v43, %v145
  %147 = vmatmul.bf16.gmra.mxu0 %v108
  %v148 = vpop.f32.mrf.mxu0
  %v149 = vadd.f32 %v43, %v148
  %v150 = vpop.f32.mrf.mxu0
  %v151 = vadd.f32 %v43, %v150
  %152 = vmatmul.bf16.gmra.mxu0 %v111
  %v153 = vpop.f32.mrf.mxu0
  %v154 = vadd.f32 %v43, %v153
  %v155 = vpop.f32.mrf.mxu0
  %v156 = vadd.f32 %v43, %v155
  %157 = vmatmul.bf16.gmra.mxu0 %v114
  %v158 = vpop.f32.mrf.mxu0
  %v159 = vadd.f32 %v43, %v158
  %v160 = vpop.f32.mrf.mxu0
  %v161 = vadd.f32 %v43, %v160
  %162 = vmatmul.bf16.gmra.mxu0 %v117
  %v163 = vpop.f32.mrf.mxu0
  %v164 = vadd.f32 %v43, %v163
  %v165 = vpop.f32.mrf.mxu0
  %v166 = vadd.f32 %v43, %v165
  %167 = vmatmul.bf16.gmra.mxu0 %v120
  %v168 = vpop.f32.mrf.mxu0
  %v169 = vadd.f32 %v43, %v168
  %v170 = vpop.f32.mrf.mxu0
  %v171 = vadd.f32 %v43, %v170
  %172 = vmatmul.bf16.gmra.mxu0 %v123
  %v173 = vpop.f32.mrf.mxu0
  %v174 = vadd.f32 %v43, %v173
  %v175 = vpop.f32.mrf.mxu0
  %v176 = vadd.f32 %v43, %v175
  %177 = vdwg.mxu0
  %v178 = vmax.f32 %v139, 0.0
  %v179 = vmax.f32 %v141, 0.0
  %v180 = vmax.f32 %v144, 0.0
  %v181 = vmax.f32 %v146, 0.0
  %v182 = vmax.f32 %v149, 0.0
  %v183 = vmax.f32 %v151, 0.0
  %v184 = vmax.f32 %v154, 0.0
  %v185 = vmax.f32 %v156, 0.0
  %v186 = vmax.f32 %v159, 0.0
  %v187 = vmax.f32 %v161, 0.0
  %v188 = vmax.f32 %v164, 0.0
  %v189 = vmax.f32 %v166, 0.0
  %v190 = vmax.f32 %v169, 0.0
  %v191 = vmax.f32 %v171, 0.0
  %v192 = vmax.f32 %v174, 0.0
  %v193 = vmax.f32 %v176, 0.0
  %v194 = vpack.c.bf16 %v179, %v178
  %v195 = vpack.c.bf16 %v181, %v180
  %v196 = vpack.c.bf16 %v183, %v182
  %v197 = vpack.c.bf16 %v185, %v184
  %v198 = vpack.c.bf16 %v187, %v186
  %v199 = vpack.c.bf16 %v189, %v188
  %v200 = vpack.c.bf16 %v191, %v190
  %v201 = vpack.c.bf16 %v193, %v192
  %v202 = vld [vmem:[%s3] sm:$0xf]
  %v203 = vld [vmem:[%s3 + $0x4] sm:$0xf]
  %v204 = vld [vmem:[%s3 + $0x8] sm:$0xf]
  %v205 = vld [vmem:[%s3 + $0xc] sm:$0xf]
  %v210 = vunpack.c.l.b16 %v202
  %v211 = vunpack.c.l.b16 %v203
  %v212 = vunpack.c.l.b16 %v204
  %v213 = vunpack.c.l.b16 %v205
  %v214 = vpack.c.b16 %v211, %v210
  %v215 = vpack.c.b16 %v213, %v212
  %vm218 = vcmask 261120
  %v220 = vsel %vm218, %v194, 0
  %v223 = vsel %vm218, %v195, 0
  %v226 = vsel %vm218, %v196, 0
  %v229 = vsel %vm218, %v197, 0
  %v232 = vsel %vm218, %v198, 0
  %v235 = vsel %vm218, %v199, 0
  %v238 = vsel %vm218, %v200, 0
  %v241 = vsel %vm218, %v201, 0
  %243 = vmatpush.bf16.msra.mxu0 0
  %244 = vmatpush.bf16.msra.mxu0 0
  %245 = vmatpush.bf16.msra.mxu0 0
  %246 = vmatpush.bf16.msra.mxu0 0
  %247 = vmatpush.bf16.msra.mxu0 0
  %248 = vmatpush.bf16.msra.mxu0 0
  %249 = vmatpush.bf16.msra.mxu0 %v215
  %250 = vmatpush.bf16.msra.mxu0 %v214
  %251 = vmatmul.bf16.gmra.mxu0 %v220
  %v252 = vpop.f32.mrf.mxu0
  %v253 = vadd.f32 0.0, %v252
  %v254 = vpop.f32.mrf.mxu0
  %v255 = vadd.f32 0.0, %v254
  %256 = vmatmul.bf16.gmra.mxu0 %v223
  %v257 = vpop.f32.mrf.mxu0
  %v258 = vadd.f32 0.0, %v257
  %v259 = vpop.f32.mrf.mxu0
  %v260 = vadd.f32 0.0, %v259
  %261 = vmatmul.bf16.gmra.mxu0 %v226
  %v262 = vpop.f32.mrf.mxu0
  %v263 = vadd.f32 0.0, %v262
  %v264 = vpop.f32.mrf.mxu0
  %v265 = vadd.f32 0.0, %v264
  %266 = vmatmul.bf16.gmra.mxu0 %v229
  %v267 = vpop.f32.mrf.mxu0
  %v268 = vadd.f32 0.0, %v267
  %v269 = vpop.f32.mrf.mxu0
  %v270 = vadd.f32 0.0, %v269
  %271 = vmatmul.bf16.gmra.mxu0 %v232
  %v272 = vpop.f32.mrf.mxu0
  %v273 = vadd.f32 0.0, %v272
  %v274 = vpop.f32.mrf.mxu0
  %v275 = vadd.f32 0.0, %v274
  %276 = vmatmul.bf16.gmra.mxu0 %v235
  %v277 = vpop.f32.mrf.mxu0
  %v278 = vadd.f32 0.0, %v277
  %v279 = vpop.f32.mrf.mxu0
  %v280 = vadd.f32 0.0, %v279
  %281 = vmatmul.bf16.gmra.mxu0 %v238
  %v282 = vpop.f32.mrf.mxu0
  %v283 = vadd.f32 0.0, %v282
  %v284 = vpop.f32.mrf.mxu0
  %v285 = vadd.f32 0.0, %v284
  %286 = vmatmul.bf16.gmra.mxu0 %v241
  %v287 = vpop.f32.mrf.mxu0
  %v288 = vadd.f32 0.0, %v287
  %v289 = vpop.f32.mrf.mxu0
  %v290 = vadd.f32 0.0, %v289
  %291 = vdwg.mxu0
  %vm292 = vcmask 130048
  %293 = vst.msk [vmem:[%s4] sm:$0xff] %vm292, %v253
  %294 = vst.msk [vmem:[%s4 + $0x8] sm:$0xff] %vm292, %v255
  %295 = vst.msk [vmem:[%s4 + $0x10] sm:$0xff] %vm292, %v258
  %296 = vst.msk [vmem:[%s4 + $0x18] sm:$0xff] %vm292, %v260
  %297 = vst.msk [vmem:[%s4 + $0x20] sm:$0xff] %vm292, %v263
  %298 = vst.msk [vmem:[%s4 + $0x28] sm:$0xff] %vm292, %v265
  %299 = vst.msk [vmem:[%s4 + $0x30] sm:$0xff] %vm292, %v268
  %300 = vst.msk [vmem:[%s4 + $0x38] sm:$0xff] %vm292, %v270
  %301 = vst.msk [vmem:[%s4 + $0x40] sm:$0xff] %vm292, %v273
  %302 = vst.msk [vmem:[%s4 + $0x48] sm:$0xff] %vm292, %v275
  %303 = vst.msk [vmem:[%s4 + $0x50] sm:$0xff] %vm292, %v278
  %304 = vst.msk [vmem:[%s4 + $0x58] sm:$0xff] %vm292, %v280
  %305 = vst.msk [vmem:[%s4 + $0x60] sm:$0xff] %vm292, %v283
  %306 = vst.msk [vmem:[%s4 + $0x68] sm:$0xff] %vm292, %v285
  %307 = vst.msk [vmem:[%s4 + $0x70] sm:$0xff] %vm292, %v288
  %308 = vst.msk [vmem:[%s4 + $0x78] sm:$0xff] %vm292, %v290
  %s309 = smul.u32 0, 128
  %v310 = vlaneseq
  %v311 = vshrl.u32 %v310, 7
  %v312 = vadd.s32 %v311, 8
  %v313 = vadd.s32 %v311, 16
  %v314 = vadd.s32 %v311, 24
  %v315 = vadd.s32 %v311, 32
  %v316 = vadd.s32 %v311, 40
  %v317 = vadd.s32 %v311, 48
  %v318 = vadd.s32 %v311, 56
  %v319 = vadd.s32 %v311, 64
  %v320 = vadd.s32 %v311, 72
  %v321 = vadd.s32 %v311, 80
  %v322 = vadd.s32 %v311, 88
  %v323 = vadd.s32 %v311, 96
  %v324 = vadd.s32 %v311, 104
  %v325 = vadd.s32 %v311, 112
  %v326 = vadd.s32 %v311, 120
  %v327 = vstv %s309
  %v328 = vadd.s32 %v327, %v311
  %v329 = vadd.s32 %v327, %v312
  %v330 = vadd.s32 %v327, %v313
  %v331 = vadd.s32 %v327, %v314
  %v332 = vadd.s32 %v327, %v315
  %v333 = vadd.s32 %v327, %v316
  %v334 = vadd.s32 %v327, %v317
  %v335 = vadd.s32 %v327, %v318
  %v336 = vadd.s32 %v327, %v319
  %v337 = vadd.s32 %v327, %v320
  %v338 = vadd.s32 %v327, %v321
  %v339 = vadd.s32 %v327, %v322
  %v340 = vadd.s32 %v327, %v323
  %v341 = vadd.s32 %v327, %v324
  %v342 = vadd.s32 %v327, %v325
  %v343 = vadd.s32 %v327, %v326
  %vm344 = vcmp.lt.s32.totalorder %v328, 128
  %vm345 = vcmp.lt.s32.totalorder %v329, 128
  %vm346 = vcmp.lt.s32.totalorder %v330, 128
  %vm347 = vcmp.lt.s32.totalorder %v331, 128
  %vm348 = vcmp.lt.s32.totalorder %v332, 128
  %vm349 = vcmp.lt.s32.totalorder %v333, 128
  %vm350 = vcmp.lt.s32.totalorder %v334, 128
  %vm351 = vcmp.lt.s32.totalorder %v335, 128
  %vm352 = vcmp.lt.s32.totalorder %v336, 128
  %vm353 = vcmp.lt.s32.totalorder %v337, 128
  %vm354 = vcmp.lt.s32.totalorder %v338, 128
  %vm355 = vcmp.lt.s32.totalorder %v339, 128
  %vm356 = vcmp.lt.s32.totalorder %v340, 128
  %vm357 = vcmp.lt.s32.totalorder %v341, 128
  %vm358 = vcmp.lt.s32.totalorder %v342, 128
  %vm359 = vcmp.lt.s32.totalorder %v343, 128
  %v360 = vsel %vm344, 1, 0
  %v361 = vsel %vm345, 1, 0
  %v362 = vsel %vm346, 1, 0
  %v363 = vsel %vm347, 1, 0
  %v364 = vsel %vm348, 1, 0
  %v365 = vsel %vm349, 1, 0
  %v366 = vsel %vm350, 1, 0
  %v367 = vsel %vm351, 1, 0
  %v368 = vsel %vm352, 1, 0
  %v369 = vsel %vm353, 1, 0
  %v370 = vsel %vm354, 1, 0
  %v371 = vsel %vm355, 1, 0
  %v372 = vsel %vm356, 1, 0
  %v373 = vsel %vm357, 1, 0
  %v374 = vsel %vm358, 1, 0
  %v375 = vsel %vm359, 1, 0
  %v376 = vcvt.s32.f32 %v360
  %v377 = vcvt.s32.f32 %v361
  %v378 = vcvt.s32.f32 %v362
  %v379 = vcvt.s32.f32 %v363
  %v380 = vcvt.s32.f32 %v364
  %v381 = vcvt.s32.f32 %v365
  %v382 = vcvt.s32.f32 %v366
  %v383 = vcvt.s32.f32 %v367
  %v384 = vcvt.s32.f32 %v368
  %v385 = vcvt.s32.f32 %v369
  %v386 = vcvt.s32.f32 %v370
  %v387 = vcvt.s32.f32 %v371
  %v388 = vcvt.s32.f32 %v372
  %v389 = vcvt.s32.f32 %v373
  %v390 = vcvt.s32.f32 %v374
  %v391 = vcvt.s32.f32 %v375
  %v392 = vmul.f32 %v253, %v376
  %v393 = vmul.f32 %v255, %v377
  %v394 = vmul.f32 %v258, %v378
  %v395 = vmul.f32 %v260, %v379
  %v396 = vmul.f32 %v263, %v380
  %v397 = vmul.f32 %v265, %v381
  %v398 = vmul.f32 %v268, %v382
  %v399 = vmul.f32 %v270, %v383
  %v400 = vmul.f32 %v273, %v384
  %v401 = vmul.f32 %v275, %v385
  %v402 = vmul.f32 %v278, %v386
  %v403 = vmul.f32 %v280, %v387
  %v404 = vmul.f32 %v283, %v388
  %v405 = vmul.f32 %v285, %v389
  %v406 = vmul.f32 %v288, %v390
  %v407 = vmul.f32 %v290, %v391
  %v408 = vsel %vm292, %v392, 0.0
  %v409 = vsel %vm292, %v393, 0.0
  %v410 = vadd.f32 %v408, %v409
  %v411 = vsel %vm292, %v394, 0.0
  %v412 = vadd.f32 %v410, %v411
  %v413 = vsel %vm292, %v395, 0.0
  %v414 = vadd.f32 %v412, %v413
  %v415 = vsel %vm292, %v396, 0.0
  %v416 = vadd.f32 %v414, %v415
  %v417 = vsel %vm292, %v397, 0.0
  %v418 = vadd.f32 %v416, %v417
  %v419 = vsel %vm292, %v398, 0.0
  %v420 = vadd.f32 %v418, %v419
  %v421 = vsel %vm292, %v399, 0.0
  %v422 = vadd.f32 %v420, %v421
  %v423 = vsel %vm292, %v400, 0.0
  %v424 = vadd.f32 %v422, %v423
  %v425 = vsel %vm292, %v401, 0.0
  %v426 = vadd.f32 %v424, %v425
  %v427 = vsel %vm292, %v402, 0.0
  %v428 = vadd.f32 %v426, %v427
  %v429 = vsel %vm292, %v403, 0.0
  %v430 = vadd.f32 %v428, %v429
  %v431 = vsel %vm292, %v404, 0.0
  %v432 = vadd.f32 %v430, %v431
  %v433 = vsel %vm292, %v405, 0.0
  %v434 = vadd.f32 %v432, %v433
  %v435 = vsel %vm292, %v406, 0.0
  %v436 = vadd.f32 %v434, %v435
  %v437 = vsel %vm292, %v407, 0.0
  %v438 = vadd.f32 %v436, %v437
  %v439 = vrot.slane %v438, 4
  %v440 = vadd.f32 %v438, %v439
  %v441 = vrot.slane %v440, 2
  %v442 = vadd.f32 %v440, %v441
  %v443 = vrot.slane %v442, 1
  %v444 = vadd.f32 %v442, %v443
  %v445 = vmul.f32 %v392, %v253
  %v446 = vmul.f32 %v393, %v255
  %v447 = vmul.f32 %v394, %v258
  %v448 = vmul.f32 %v395, %v260
  %v449 = vmul.f32 %v396, %v263
  %v450 = vmul.f32 %v397, %v265
  %v451 = vmul.f32 %v398, %v268
  %v452 = vmul.f32 %v399, %v270
  %v453 = vmul.f32 %v400, %v273
  %v454 = vmul.f32 %v401, %v275
  %v455 = vmul.f32 %v402, %v278
  %v456 = vmul.f32 %v403, %v280
  %v457 = vmul.f32 %v404, %v283
  %v458 = vmul.f32 %v405, %v285
  %v459 = vmul.f32 %v406, %v288
  %v460 = vmul.f32 %v407, %v290
  %v461 = vsel %vm292, %v445, 0.0
  %v462 = vsel %vm292, %v446, 0.0
  %v463 = vadd.f32 %v461, %v462
  %v464 = vsel %vm292, %v447, 0.0
  %v465 = vadd.f32 %v463, %v464
  %v466 = vsel %vm292, %v448, 0.0
  %v467 = vadd.f32 %v465, %v466
  %v468 = vsel %vm292, %v449, 0.0
  %v469 = vadd.f32 %v467, %v468
  %v470 = vsel %vm292, %v450, 0.0
  %v471 = vadd.f32 %v469, %v470
  %v472 = vsel %vm292, %v451, 0.0
  %v473 = vadd.f32 %v471, %v472
  %v474 = vsel %vm292, %v452, 0.0
  %v475 = vadd.f32 %v473, %v474
  %v476 = vsel %vm292, %v453, 0.0
  %v477 = vadd.f32 %v475, %v476
  %v478 = vsel %vm292, %v454, 0.0
  %v479 = vadd.f32 %v477, %v478
  %v480 = vsel %vm292, %v455, 0.0
  %v481 = vadd.f32 %v479, %v480
  %v482 = vsel %vm292, %v456, 0.0
  %v483 = vadd.f32 %v481, %v482
  %v484 = vsel %vm292, %v457, 0.0
  %v485 = vadd.f32 %v483, %v484
  %v486 = vsel %vm292, %v458, 0.0
  %v487 = vadd.f32 %v485, %v486
  %v488 = vsel %vm292, %v459, 0.0
  %v489 = vadd.f32 %v487, %v488
  %v490 = vsel %vm292, %v460, 0.0
  %v491 = vadd.f32 %v489, %v490
  %v492 = vrot.slane %v491, 4
  %v493 = vadd.f32 %v491, %v492
  %v494 = vrot.slane %v493, 2
  %v495 = vadd.f32 %v493, %v494
  %v496 = vrot.slane %v495, 1
  %v497 = vadd.f32 %v495, %v496
  %vm498 = vcmask 1040384
  %v499 = vsel %vm498, %v444, %v497
  %vm500 = vcmask 123904
  %501 = vst.msk [vmem:[%s5] sm:$0x3] %vm500, %v499
  // Predicated region
  $region18: #{affine_coupling_forward.2} parent=0 // pred_check
    _
  $region19: #{affine_coupling_forward.2} parent=0 // pred_check_branch
    %503 = sbr.rel (0) target = $region21
  $region20: #{affine_coupling_forward.2} parent=0 // pred_region
    _
  $region21: #{affine_coupling_forward.2} parent=0 // pred_fallthru
    _
  // Predicated region
  $region22: #{affine_coupling_forward.2} parent=0 // pred_check
    _
  $region23: #{affine_coupling_forward.2} parent=0 // pred_check_branch
    %505 = sbr.rel (0) target = $region25
  $region24: #{affine_coupling_forward.2} parent=0 // pred_region
    _
  $region25: #{affine_coupling_forward.2} parent=0 // pred_fallthru
    _
  // Predicated region
  $region26: #{affine_coupling_forward.2} parent=0 // pred_check
    _
  $region27: #{affine_coupling_forward.2} parent=0 // pred_check_branch
    %507 = sbr.rel (0) target = $region29
  $region28: #{affine_coupling_forward.2} parent=0 // pred_region
    _
  $region29: #{affine_coupling_forward.2} parent=0 // pred_fallthru
    _
  // Predicated region
  $region30: #{affine_coupling_forward.2} parent=0 // pred_check
    _
  $region31: #{affine_coupling_forward.2} parent=0 // pred_check_branch
    %509 = sbr.rel (0) target = $region33
  $region32: #{affine_coupling_forward.2} parent=0 // pred_region
    _
  $region33: #{affine_coupling_forward.2} parent=0 // pred_fallthru
    _

// kernel: affine_coupling_forward.3
$region0: #{affine_coupling_forward.3}
  #allocation0 [shape = 'u32[]', space=smem, size = 0x4, offset = 0x4, fixed_abs, tag = 'smem constant byte address 0x4 - core index']
  #allocation1 [shape = 'u32[72,128]{1,0:T(1,128)}', space=vmem, size = 0x9000, scoped, tag = 'internal scratch']
  #allocation2 [shape = 'bf16[10,10,32]{2,1,0:T(8,128)(2,1)}', space=vmem, size = 0xa000, scoped, tag = 'scratch operand']
  %s0 = inlined_call_operand.vmem [shape: f32[2,8,8,16], index: 0, kind: input, shape index: {}]
  %s1 = inlined_call_operand.vmem [shape: f32[1,16], index: 1, kind: input, shape index: {}]
  %s2 = inlined_call_operand.vmem [shape: f32[1,16], index: 2, kind: input, shape index: {}]
  %s3 = inlined_call_operand.vmem [shape: f32[2,8,8,4], index: 3, kind: input, shape index: {}]
  %s4 = inlined_call_operand.vmem [shape: bf16[9,32,8], index: 4, kind: input, shape index: {}]
  %s5 = inlined_call_operand.vmem [shape: f32[1,8], index: 5, kind: input, shape index: {}]
  %s6 = inlined_call_operand.vmem [shape: f32[2,8,8,4], index: 6, kind: output, shape index: {0}]
  %s7 = inlined_call_operand.vmem [shape: f32[2,1,1], index: 7, kind: output, shape index: {1}]
  %8 = xla_tuple %s6, %s7
  %s9 = sld [smem:[#allocation0]]
  $region65: #{affine_coupling_forward.3} parent=0
    _
  %s11 = ssub.s32 1, %s9
  %s12 = scalar_select 0, %s11, %s9
  loop: start=0, step=1, limit=4
  $region2: #{affine_coupling_forward.3} parent=0 // loop_pre_header
    _
  $region3: #{affine_coupling_forward.3} parent=0 // loop_header
    %s14 = sphi 0, %s18
    %p15 = scmp.ge.s32.totalorder %s14, 4
    %s24 = sphi 0, %s26
    %s27 = sphi 0, %s24
    %s28 = sphi 0, %s27
    %s44 = sphi 0, %s28
    %s48 = sphi 0, %s48
    %s50 = sphi 0, %s48
    %s51 = sphi 0, %s50
    %s65 = sphi 0, %s51
    %s69 = sphi 0, %s69
    %s71 = sphi 0, %s69
    %s72 = sphi 0, %s71
    %s86 = sphi 0, %s72
    %s92 = sphi 0, %s94
    %s95 = sphi 0, %s92
    %s96 = sphi 0, %s95
    %s112 = sphi 0, %s96
    %s116 = sphi 0, %s116
    %s118 = sphi 0, %s116
    %s119 = sphi 0, %s118
    %s133 = sphi 0, %s119
    %s137 = sphi 0, %s137
    %s139 = sphi 0, %s137
    %s140 = sphi 0, %s139
    %s154 = sphi 0, %s140
    %s160 = sphi 0, %s162
    %s163 = sphi 0, %s160
    %s164 = sphi 0, %s163
    %s180 = sphi 0, %s164
    %s186 = sphi 0, %s188
    %s189 = sphi 0, %s186
    %s190 = sphi 0, %s189
    %s206 = sphi 0, %s190
  $region4: #{affine_coupling_forward.3} parent=0 // loop_header_branch
    %17 = sbr.rel (%p15) target = $region8
  $region5: #{affine_coupling_forward.3} parent=0 // loop_body
    %s19 = ssub.s32 %s14, 1
    %s20 = ssub.s32 %s14, 2
    %s21 = sadd.s32 %s14, 1
    %s22 = ssub.s32 %s14, %s21
    %p23 = scmp.eq.s32.totalorder %s22, 0
    %s25 = sadd.s32 %s24, 1
    %s26 = scalar_select %p23, %s24, %s25
    %p29 = pneg %p23
    %p30 = scmp.eq.s32.totalorder %s14, 1
    %p31 = por %p29, %p30
    %p32 = scmp.ne.s32.totalorder %s24, %s27
    %p33 = scmp.eq.s32.totalorder %s14, 0
    %p34 = por %p32, %p33
    %p35 = scmp.ne.s32.totalorder %s24, %s27
    %p36 = scmp.eq.s32.totalorder %s19, 1
    %p37 = por %p35, %p36
    %p38 = scmp.ne.s32.totalorder %s27, %s28
    %p39 = scmp.eq.s32.totalorder %s19, 0
    %p40 = por %p38, %p39
    %p41 = scmp.ne.s32.totalorder %s27, %s28
    %p42 = scmp.eq.s32.totalorder %s20, 1
    %p43 = por %p41, %p42
    %p45 = scmp.ne.s32.totalorder %s28, %s44
    %p46 = scmp.eq.s32.totalorder %s20, 0
    %p47 = por %p45, %p46
    %s49 = sadd.s32 %s48, 1
    %p52 = scmp.eq.s32.totalorder %s14, 1
    %p53 = scmp.ne.s32.totalorder %s48, %s50
    %p54 = scmp.eq.s32.totalorder %s14, 0
    %p55 = por %p53, %p54
    %p56 = scmp.ne.s32.totalorder %s48, %s50
    %p57 = scmp.eq.s32.totalorder %s19, 1
    %p58 = por %p56, %p57
    %p59 = scmp.ne.s32.totalorder %s50, %s51
    %p60 = scmp.eq.s32.totalorder %s19, 0
    %p61 = por %p59, %p60
    %p62 = scmp.ne.s32.totalorder %s50, %s51
    %p63 = scmp.eq.s32.totalorder %s20, 1
    %p64 = por %p62, %p63
    %p66 = scmp.ne.s32.totalorder %s51, %s65
    %p67 = scmp.eq.s32.totalorder %s20, 0
    %p68 = por %p66, %p67
    %s70 = sadd.s32 %s69, 1
    %p73 = scmp.eq.s32.totalorder %s14, 1
    %p74 = scmp.ne.s32.totalorder %s69, %s71
    %p75 = scmp.eq.s32.totalorder %s14, 0
    %p76 = por %p74, %p75
    %p77 = scmp.ne.s32.totalorder %s69, %s71
    %p78 = scmp.eq.s32.totalorder %s19, 1
    %p79 = por %p77, %p78
    %p80 = scmp.ne.s32.totalorder %s71, %s72
    %p81 = scmp.eq.s32.totalorder %s19, 0
    %p82 = por %p80, %p81
    %p83 = scmp.ne.s32.totalorder %s71, %s72
    %p84 = scmp.eq.s32.totalorder %s20, 1
    %p85 = por %p83, %p84
    %p87 = scmp.ne.s32.totalorder %s72, %s86
    %p88 = scmp.eq.s32.totalorder %s20, 0
    %p89 = por %p87, %p88
    %s90 = ssub.s32 %s14, %s21
    %p91 = scmp.eq.s32.totalorder %s90, 0
    %s93 = sadd.s32 %s92, 1
    %s94 = scalar_select %p91, %s92, %s93
    %p97 = pneg %p91
    %p98 = scmp.eq.s32.totalorder %s14, 1
    %p99 = por %p97, %p98
    %p100 = scmp.ne.s32.totalorder %s92, %s95
    %p101 = scmp.eq.s32.totalorder %s14, 0
    %p102 = por %p100, %p101
    %p103 = scmp.ne.s32.totalorder %s92, %s95
    %p104 = scmp.eq.s32.totalorder %s19, 1
    %p105 = por %p103, %p104
    %p106 = scmp.ne.s32.totalorder %s95, %s96
    %p107 = scmp.eq.s32.totalorder %s19, 0
    %p108 = por %p106, %p107
    %p109 = scmp.ne.s32.totalorder %s95, %s96
    %p110 = scmp.eq.s32.totalorder %s20, 1
    %p111 = por %p109, %p110
    %p113 = scmp.ne.s32.totalorder %s96, %s112
    %p114 = scmp.eq.s32.totalorder %s20, 0
    %p115 = por %p113, %p114
    %s117 = sadd.s32 %s116, 1
    %p120 = scmp.eq.s32.totalorder %s14, 1
    %p121 = scmp.ne.s32.totalorder %s116, %s118
    %p122 = scmp.eq.s32.totalorder %s14, 0
    %p123 = por %p121, %p122
    %p124 = scmp.ne.s32.totalorder %s116, %s118
    %p125 = scmp.eq.s32.totalorder %s19, 1
    %p126 = por %p124, %p125
    %p127 = scmp.ne.s32.totalorder %s118, %s119
    %p128 = scmp.eq.s32.totalorder %s19, 0
    %p129 = por %p127, %p128
    %p130 = scmp.ne.s32.totalorder %s118, %s119
    %p131 = scmp.eq.s32.totalorder %s20, 1
    %p132 = por %p130, %p131
    %p134 = scmp.ne.s32.totalorder %s119, %s133
    %p135 = scmp.eq.s32.totalorder %s20, 0
    %p136 = por %p134, %p135
    %s138 = sadd.s32 %s137, 1
    %p141 = scmp.eq.s32.totalorder %s14, 1
    %p142 = scmp.ne.s32.totalorder %s137, %s139
    %p143 = scmp.eq.s32.totalorder %s14, 0
    %p144 = por %p142, %p143
    %p145 = scmp.ne.s32.totalorder %s137, %s139
    %p146 = scmp.eq.s32.totalorder %s19, 1
    %p147 = por %p145, %p146
    %p148 = scmp.ne.s32.totalorder %s139, %s140
    %p149 = scmp.eq.s32.totalorder %s19, 0
    %p150 = por %p148, %p149
    %p151 = scmp.ne.s32.totalorder %s139, %s140
    %p152 = scmp.eq.s32.totalorder %s20, 1
    %p153 = por %p151, %p152
    %p155 = scmp.ne.s32.totalorder %s140, %s154
    %p156 = scmp.eq.s32.totalorder %s20, 0
    %p157 = por %p155, %p156
    %s158 = ssub.s32 %s14, %s21
    %p159 = scmp.eq.s32.totalorder %s158, 0
    %s161 = sadd.s32 %s160, 1
    %s162 = scalar_select %p159, %s160, %s161
    %p165 = pneg %p159
    %p166 = scmp.eq.s32.totalorder %s14, 1
    %p167 = por %p165, %p166
    %p168 = scmp.ne.s32.totalorder %s160, %s163
    %p169 = scmp.eq.s32.totalorder %s14, 0
    %p170 = por %p168, %p169
    %p171 = scmp.ne.s32.totalorder %s160, %s163
    %p172 = scmp.eq.s32.totalorder %s19, 1
    %p173 = por %p171, %p172
    %p174 = scmp.ne.s32.totalorder %s163, %s164
    %p175 = scmp.eq.s32.totalorder %s19, 0
    %p176 = por %p174, %p175
    %p177 = scmp.ne.s32.totalorder %s163, %s164
    %p178 = scmp.eq.s32.totalorder %s20, 1
    %p179 = por %p177, %p178
    %p181 = scmp.ne.s32.totalorder %s164, %s180
    %p182 = scmp.eq.s32.totalorder %s20, 0
    %p183 = por %p181, %p182
    %s184 = ssub.s32 %s14, %s21
    %p185 = scmp.eq.s32.totalorder %s184, 0
    %s187 = sadd.s32 %s186, 1
    %s188 = scalar_select %p185, %s186, %s187
    %p191 = pneg %p185
    %p192 = scmp.eq.s32.totalorder %s14, 1
    %p193 = por %p191, %p192
    %p194 = scmp.ne.s32.totalorder %s186, %s189
    %p195 = scmp.eq.s32.totalorder %s14, 0
    %p196 = por %p194, %p195
    %p197 = scmp.ne.s32.totalorder %s186, %s189
    %p198 = scmp.eq.s32.totalorder %s19, 1
    %p199 = por %p197, %p198
    %p200 = scmp.ne.s32.totalorder %s189, %s190
    %p201 = scmp.eq.s32.totalorder %s19, 0
    %p202 = por %p200, %p201
    %p203 = scmp.ne.s32.totalorder %s189, %s190
    %p204 = scmp.eq.s32.totalorder %s20, 1
    %p205 = por %p203, %p204
    %p207 = scmp.ne.s32.totalorder %s190, %s206
    %p208 = scmp.eq.s32.totalorder %s20, 0
    %p209 = por %p207, %p208
    %p210 = scmp.le.s32.totalorder 1, %s14
    %p211 = scmp.lt.s32.totalorder %s14, 3
    %p212 = pnand %p210, %p211
    %p213 = pneg %p212
    // Predicated region
    $region9: #{affine_coupling_forward.3} parent=5 // pred_check
      _
    $region10: #{affine_coupling_forward.3} parent=5 // pred_check_branch
      %215 = sbr.rel (%p212) target = $region12
    $region11: #{affine_coupling_forward.3} parent=5 // pred_region
      %s216 = ssub.s32 %s14, 1
      // Predicated region
      $region13: #{affine_coupling_forward.3} parent=11 // pred_check
        %p217 = pneg %p61
      $region14: #{affine_coupling_forward.3} parent=11 // pred_check_branch
        %219 = sbr.rel (%p217) target = $region16
      $region15: #{affine_coupling_forward.3} parent=11 // pred_region
        _
      $region16: #{affine_coupling_forward.3} parent=11 // pred_fallthru
        _
      // Predicated region
      $region17: #{affine_coupling_forward.3} parent=11 // pred_check
        %p220 = pneg %p82
      $region18: #{affine_coupling_forward.3} parent=11 // pred_check_branch
        %222 = sbr.rel (%p220) target = $region20
      $region19: #{affine_coupling_forward.3} parent=11 // pred_region
        _
      $region20: #{affine_coupling_forward.3} parent=11 // pred_fallthru
        _
      // Predicated region
      $region21: #{affine_coupling_forward.3} parent=11 // pred_check
        %p223 = pneg %p129
      $region22: #{affine_coupling_forward.3} parent=11 // pred_check_branch
        %225 = sbr.rel (%p223) target = $region24
      $region23: #{affine_coupling_forward.3} parent=11 // pred_region
        _
      $region24: #{affine_coupling_forward.3} parent=11 // pred_fallthru
        _
      // Predicated region
      $region25: #{affine_coupling_forward.3} parent=11 // pred_check
        %p226 = pneg %p150
      $region26: #{affine_coupling_forward.3} parent=11 // pred_check_branch
        %228 = sbr.rel (%p226) target = $region28
      $region27: #{affine_coupling_forward.3} parent=11 // pred_region
        _
      $region28: #{affine_coupling_forward.3} parent=11 // pred_fallthru
        _
    $region12: #{affine_coupling_forward.3} parent=5 // pred_fallthru
      _
    %p229 = scmp.lt.s32.totalorder %s14, 2
    // Predicated region
    $region29: #{affine_coupling_forward.3} parent=5 // pred_check
      %p230 = pneg %p229
    $region30: #{affine_coupling_forward.3} parent=5 // pred_check_branch
      %232 = sbr.rel (%p230) target = $region32
    $region31: #{affine_coupling_forward.3} parent=5 // pred_region
      // Predicated region
      $region33: #{affine_coupling_forward.3} parent=31 // pred_check
        %p233 = pneg %p34
      $region34: #{affine_coupling_forward.3} parent=31 // pred_check_branch
        %235 = sbr.rel (%p233) target = $region36
      $region35: #{affine_coupling_forward.3} parent=31 // pred_region
        %p236 = scmp.lt.s32.totalorder %s14, 1
        %s237 = scalar_select %p236, %s14, 1
        %s238 = smul.addr %s237, 8
        %s239 = smul.addr %s238, 8
        %s240 = scalar_lea.vmem %s0, %s239
      $region36: #{affine_coupling_forward.3} parent=31 // pred_fallthru
        _
      // Predicated region
      $region37: #{affine_coupling_forward.3} parent=31 // pred_check
        %p241 = pneg %p102
      $region38: #{affine_coupling_forward.3} parent=31 // pred_check_branch
        %243 = sbr.rel (%p241) target = $region40
      $region39: #{affine_coupling_forward.3} parent=31 // pred_region
        %p244 = scmp.lt.s32.totalorder %s14, 1
        %s245 = scalar_select %p244, %s14, 1
        %s246 = smul.addr %s245, 8
        %s247 = smul.addr %s246, 8
        %s248 = scalar_lea.vmem %s3, %s247
      $region40: #{affine_coupling_forward.3} parent=31 // pred_fallthru
        _
    $region32: #{affine_coupling_forward.3} parent=5 // pred_fallthru
      _
    %p249 = scmp.le.s32.totalorder 1, %s14
    %p250 = scmp.lt.s32.totalorder %s14, 3
    %p251 = pnand %p249, %p250
    %p252 = pneg %p251
    // Predicated region
    $region41: #{affine_coupling_forward.3} parent=5 // pred_check
      _
    $region42: #{affine_coupling_forward.3} parent=5 // pred_check_branch
      %254 = sbr.rel (%p251) target = $region44
    $region43: #{affine_coupling_forward.3} parent=5 // pred_region
      %s255 = ssub.s32 %s14, 1
      %p256 = scmp.lt.s32.totalorder %s19, 1
      %s257 = scalar_select %p256, %s19, 1
      %s258 = smul.addr %s257, 8
      %s259 = smul.addr %s258, 8
      %s260 = scalar_lea.vmem %s0, %s259
      %p261 = pneg %p40
      %p262 = pneg %p37
      %p263 = pneg %p61
      %p264 = pneg %p58
      %p265 = pneg %p82
      %p266 = pneg %p79
      %p267 = scmp.lt.s32.totalorder %s19, 1
      %s268 = scalar_select %p267, %s19, 1
      %s269 = smul.addr %s268, 8
      %s270 = smul.addr %s269, 8
      %s271 = scalar_lea.vmem %s3, %s270
      %p272 = pneg %p108
      %p273 = pneg %p105
      %p274 = pneg %p129
      %p275 = pneg %p126
      %p276 = pneg %p150
      %p277 = pneg %p147
      %p278 = pneg %p176
      %p279 = pneg %p173
      %p280 = scmp.lt.s32.totalorder %s19, 1
      %s281 = scalar_select %p280, %s19, 1
      %s282 = smul.addr %s281, 8
      %s283 = smul.addr %s282, 8
      %s284 = scalar_lea.vmem %s6, %s283
      %p285 = pneg %p202
      %p286 = pneg %p199
      %p287 = scmp.lt.s32.totalorder %s19, 1
      %s288 = scalar_select %p287, %s19, 1
      %s289 = scalar_lea.vmem %s7, %s288
      %p290 = scmp.lt.s32.totalorder %s19, 1
      %s291 = scalar_select %p290, %s19, 1
      %s292 = smul.addr %s291, 8
      %s293 = smul.addr %s292, 8
      %s294 = scalar_lea.vmem %s0, %s293
      %p295 = scmp.lt.s32.totalorder %s19, 1
      %s296 = scalar_select %p295, %s19, 1
      %s297 = smul.addr %s296, 8
      %s298 = smul.addr %s297, 8
      %s299 = scalar_lea.vmem %s3, %s298
      %p300 = scmp.lt.s32.totalorder %s19, 1
      %s301 = scalar_select %p300, %s19, 1
      %s302 = smul.addr %s301, 8
      %s303 = smul.addr %s302, 8
      %s304 = scalar_lea.vmem %s6, %s303
      %p305 = scmp.lt.s32.totalorder %s19, 1
      %s306 = scalar_select %p305, %s19, 1
      %s307 = scalar_lea.vmem %s7, %s306
      %vm310 = vcmask 257024
      %311 = vst.msk [vmem:[#allocation2] sm:$0xf] %vm310, 1065369472
      %vm312 = vcmask 253952
      %313 = vst.msk [vmem:[#allocation2 + $0x4] sm:$0x1] %vm312, 1065369472
      %314 = vst.msk [vmem:[#allocation2 + $0x8] sm:$0xf] %vm310, 1065369472
      %315 = vst.msk [vmem:[#allocation2 + $0xc] sm:$0x1] %vm312, 1065369472
      %316 = vst.msk [vmem:[#allocation2 + $0x10] sm:$0xf] %vm310, 1065369472
      %317 = vst.msk [vmem:[#allocation2 + $0x14] sm:$0x1] %vm312, 1065369472
      %318 = vst.msk [vmem:[#allocation2 + $0x18] sm:$0xf] %vm310, 1065369472
      %319 = vst.msk [vmem:[#allocation2 + $0x1c] sm:$0x1] %vm312, 1065369472
      %320 = vst.msk [vmem:[#allocation2 + $0x20] sm:$0xf] %vm310, 1065369472
      %321 = vst.msk [vmem:[#allocation2 + $0x24] sm:$0x1] %vm312, 1065369472
      %322 = vst.msk [vmem:[#allocation2 + $0x28] sm:$0xf] %vm310, 1065369472
      %323 = vst.msk [vmem:[#allocation2 + $0x2c] sm:$0x1] %vm312, 1065369472
      %324 = vst.msk [vmem:[#allocation2 + $0x30] sm:$0xf] %vm310, 1065369472
      %325 = vst.msk [vmem:[#allocation2 + $0x34] sm:$0x1] %vm312, 1065369472
      %326 = vst.msk [vmem:[#allocation2 + $0x38] sm:$0xf] %vm310, 1065369472
      %327 = vst.msk [vmem:[#allocation2 + $0x3c] sm:$0x1] %vm312, 1065369472
      %328 = vst.msk [vmem:[#allocation2 + $0x40] sm:$0xf] %vm310, 1065369472
      %329 = vst.msk [vmem:[#allocation2 + $0x44] sm:$0x1] %vm312, 1065369472
      %330 = vst.msk [vmem:[#allocation2 + $0x48] sm:$0xf] %vm310, 1065369472
      %331 = vst.msk [vmem:[#allocation2 + $0x4c] sm:$0x1] %vm312, 1065369472
      %v332 = vld [vmem:[%s294] sm:$0xff]
      %v333 = vld [vmem:[%s294 + $0x8] sm:$0xff]
      %v334 = vld [vmem:[%s294 + $0x10] sm:$0xff]
      %v335 = vld [vmem:[%s294 + $0x18] sm:$0xff]
      %v336 = vld [vmem:[%s294 + $0x20] sm:$0xff]
      %v337 = vld [vmem:[%s294 + $0x28] sm:$0xff]
      %v338 = vld [vmem:[%s294 + $0x30] sm:$0xff]
      %v339 = vld [vmem:[%s294 + $0x38] sm:$0xff]
      %v340 = vld [vmem:[%s1] sm:$0x1]
      %v342 = vperm.slane %v340, 0
      %v344 = vmul.f32 %v332, %v342
      %v345 = vmul.f32 %v333, %v342
      %v346 = vmul.f32 %v334, %v342
      %v347 = vmul.f32 %v335, %v342
      %v348 = vmul.f32 %v336, %v342
      %v349 = vmul.f32 %v337, %v342
      %v350 = vmul.f32 %v338, %v342
      %v351 = vmul.f32 %v339, %v342
      %v352 = vld [vmem:[%s2] sm:$0x1]
      %v354 = vperm.slane %v352, 0
      %v356 = vadd.f32 %v344, %v354
      %v357 = vadd.f32 %v345, %v354
      %v358 = vadd.f32 %v346, %v354
      %v359 = vadd.f32 %v347, %v354
      %v360 = vadd.f32 %v348, %v354
      %v361 = vadd.f32 %v349, %v354
      %v362 = vadd.f32 %v350, %v354
      %v363 = vadd.f32 %v351, %v354
      %372 = vrot.lane.b32.xlu0 %v356, 120
      %v373 = vpop.permute.xlu0 %372
      %374 = vrot.lane.b32.xlu0 %v357, 120
      %v375 = vpop.permute.xlu0 %374
      %376 = vrot.lane.b32.xlu0 %v358, 120
      %v377 = vpop.permute.xlu0 %376
      %378 = vrot.lane.b32.xlu0 %v359, 120
      %v379 = vpop.permute.xlu0 %378
      %380 = vrot.lane.b32.xlu0 %v360, 120
      %v381 = vpop.permute.xlu0 %380
      %382 = vrot.lane.b32.xlu0 %v361, 120
      %v383 = vpop.permute.xlu0 %382
      %384 = vrot.lane.b32.xlu0 %v362, 120
      %v385 = vpop.permute.xlu0 %384
      %386 = vrot.lane.b32.xlu0 %v363, 120
      %v387 = vpop.permute.xlu0 %386
      %v396 = vadd.f32 %v356, %v373
      %v397 = vadd.f32 %v357, %v375
      %v398 = vadd.f32 %v358, %v377
      %v399 = vadd.f32 %v359, %v379
      %v400 = vadd.f32 %v360, %v381
      %v401 = vadd.f32 %v361, %v383
      %v402 = vadd.f32 %v362, %v385
      %v403 = vadd.f32 %v363, %v387
      %v404 = vmul.f32 %v396, 2.0
      %v405 = vmul.f32 %v397, 2.0
      %v406 = vmul.f32 %v398, 2.0
      %v407 = vmul.f32 %v399, 2.0
      %v408 = vmul.f32 %v400, 2.0
      %v409 = vmul.f32 %v401, 2.0
      %v410 = vmul.f32 %v402, 2.0
      %v411 = vmul.f32 %v403, 2.0
      %v412 = vmax.f32 %v356, 0.0
      %v413 = vmax.f32 %v357, 0.0
      %v414 = vmax.f32 %v358, 0.0
      %v415 = vmax.f32 %v359, 0.0
      %v416 = vmax.f32 %v360, 0.0
      %v417 = vmax.f32 %v361, 0.0
      %v418 = vmax.f32 %v362, 0.0
      %v419 = vmax.f32 %v363, 0.0
      %v420 = vpack.c.bf16 %v412, %v412
      %v421 = vpack.c.bf16 %v413, %v413
      %v422 = vpack.c.bf16 %v414, %v414
      %v423 = vpack.c.bf16 %v415, %v415
      %v424 = vpack.c.bf16 %v416, %v416
      %v425 = vpack.c.bf16 %v417, %v417
      %v426 = vpack.c.bf16 %v418, %v418
      %v427 = vpack.c.bf16 %v419, %v419
      %v429 = vshrl.u32 %v420, 16
      %v431 = vrot.slane %v429, 7
      %v432 = vshll.u32 %v420, 16
      %v434 = vor.u32 %v431, %v432
      %v435 = vrot.slane %v431, 4
      %v437 = vshrl.u32 %v421, 16
      %v439 = vrot.slane %v437, 7
      %v440 = vshll.u32 %v421, 16
      %v442 = vor.u32 %v439, %v440
      %v443 = vrot.slane %v439, 4
      %v445 = vshrl.u32 %v422, 16
      %v447 = vrot.slane %v445, 7
      %v448 = vshll.u32 %v422, 16
      %v450 = vor.u32 %v447, %v448
      %v451 = vrot.slane %v447, 4
      %v453 = vshrl.u32 %v423, 16
      %v455 = vrot.slane %v453, 7
      %v456 = vshll.u32 %v423, 16
      %v458 = vor.u32 %v455, %v456
      %v459 = vrot.slane %v455, 4
      %v461 = vshrl.u32 %v424, 16
      %v463 = vrot.slane %v461, 7
      %v464 = vshll.u32 %v424, 16
      %v466 = vor.u32 %v463, %v464
      %v467 = vrot.slane %v463, 4
      %v469 = vshrl.u32 %v425, 16
      %v471 = vrot.slane %v469, 7
      %v472 = vshll.u32 %v425, 16
      %v474 = vor.u32 %v471, %v472
      %v475 = vrot.slane %v471, 4
      %v477 = vshrl.u32 %v426, 16
      %v479 = vrot.slane %v477, 7
      %v480 = vshll.u32 %v426, 16
      %v482 = vor.u32 %v479, %v480
      %v483 = vrot.slane %v479, 4
      %v485 = vshrl.u32 %v427, 16
      %v487 = vrot.slane %v485, 7
      %v488 = vshll.u32 %v427, 16
      %v490 = vor.u32 %v487, %v488
      %v491 = vrot.slane %v487, 4
      %s508 = scalar_lea.vmem [#allocation2], 8
      %vm509 = vcmask 60416
      %vm510 = vsmask.f32 7938
      %vm511 = vmand %vm509, %vm510
      %v512 = vld [vmem:[%s508] sm:$0xf]
      %v513 = vsel %vm511, %v434, %v512
      %514 = vst [vmem:[%s508] sm:$0xf] %v513
      %vm515 = vcmask 57344
      %vm516 = vsmask.f32 256
      %vm517 = vmand %vm515, %vm516
      %v518 = vld [vmem:[%s508 + $0x4] sm:$0x1]
      %v519 = vsel %vm517, %v435, %v518
      %520 = vst [vmem:[%s508 + $0x4] sm:$0x1] %v519
      %v521 = vld [vmem:[%s508 + $0x8] sm:$0xf]
      %v522 = vsel %vm511, %v442, %v521
      %523 = vst [vmem:[%s508 + $0x8] sm:$0xf] %v522
      %v524 = vld [vmem:[%s508 + $0xc] sm:$0x1]
      %v525 = vsel %vm517, %v443, %v524
      %526 = vst [vmem:[%s508 + $0xc] sm:$0x1] %v525
      %v527 = vld [vmem:[%s508 + $0x10] sm:$0xf]
      %v528 = vsel %vm511, %v450, %v527
      %529 = vst [vmem:[%s508 + $0x10] sm:$0xf] %v528
      %v530 = vld [vmem:[%s508 + $0x14] sm:$0x1]
      %v531 = vsel %vm517, %v451, %v530
      %532 = vst [vmem:[%s508 + $0x14] sm:$0x1] %v531
      %v533 = vld [vmem:[%s508 + $0x18] sm:$0xf]
      %v534 = vsel %vm511, %v458, %v533
      %535 = vst [vmem:[%s508 + $0x18] sm:$0xf] %v534
      %v536 = vld [vmem:[%s508 + $0x1c] sm:$0x1]
      %v537 = vsel %vm517, %v459, %v536
      %538 = vst [vmem:[%s508 + $0x1c] sm:$0x1] %v537
      %v539 = vld [vmem:[%s508 + $0x20] sm:$0xf]
      %v540 = vsel %vm511, %v466, %v539
      %541 = vst [vmem:[%s508 + $0x20] sm:$0xf] %v540
      %v542 = vld [vmem:[%s508 + $0x24] sm:$0x1]
      %v543 = vsel %vm517, %v467, %v542
      %544 = vst [vmem:[%s508 + $0x24] sm:$0x1] %v543
      %v545 = vld [vmem:[%s508 + $0x28] sm:$0xf]
      %v546 = vsel %vm511, %v474, %v545
      %547 = vst [vmem:[%s508 + $0x28] sm:$0xf] %v546
      %v548 = vld [vmem:[%s508 + $0x2c] sm:$0x1]
      %v549 = vsel %vm517, %v475, %v548
      %550 = vst [vmem:[%s508 + $0x2c] sm:$0x1] %v549
      %v551 = vld [vmem:[%s508 + $0x30] sm:$0xf]
      %v552 = vsel %vm511, %v482, %v551
      %553 = vst [vmem:[%s508 + $0x30] sm:$0xf] %v552
      %v554 = vld [vmem:[%s508 + $0x34] sm:$0x1]
      %v555 = vsel %vm517, %v483, %v554
      %556 = vst [vmem:[%s508 + $0x34] sm:$0x1] %v555
      %v557 = vld [vmem:[%s508 + $0x38] sm:$0xf]
      %v558 = vsel %vm511, %v490, %v557
      %559 = vst [vmem:[%s508 + $0x38] sm:$0xf] %v558
      %v560 = vld [vmem:[%s508 + $0x3c] sm:$0x1]
      %v561 = vsel %vm517, %v491, %v560
      %562 = vst [vmem:[%s508 + $0x3c] sm:$0x1] %v561
      %vm563 = vcmask 126016
      %vm564 = vmand %vm563, %vm510
      %v565 = vld [vmem:[%s508] sm:$0xf]
      %v566 = vsel %vm564, %v434, %v565
      %567 = vst [vmem:[%s508] sm:$0xf] %v566
      %vm568 = vcmask 122944
      %vm569 = vmand %vm568, %vm516
      %v570 = vld [vmem:[%s508 + $0x4] sm:$0x1]
      %v571 = vsel %vm569, %v435, %v570
      %572 = vst [vmem:[%s508 + $0x4] sm:$0x1] %v571
      %v573 = vld [vmem:[%s508 + $0x8] sm:$0xf]
      %v574 = vsel %vm564, %v442, %v573
      %575 = vst [vmem:[%s508 + $0x8] sm:$0xf] %v574
      %v576 = vld [vmem:[%s508 + $0xc] sm:$0x1]
      %v577 = vsel %vm569, %v443, %v576
      %578 = vst [vmem:[%s508 + $0xc] sm:$0x1] %v577
      %v579 = vld [vmem:[%s508 + $0x10] sm:$0xf]
      %v580 = vsel %vm564, %v450, %v579
      %581 = vst [vmem:[%s508 + $0x10] sm:$0xf] %v580
      %v582 = vld [vmem:[%s508 + $0x14] sm:$0x1]
      %v583 = vsel %vm569, %v451, %v582
      %584 = vst [vmem:[%s508 + $0x14] sm:$0x1] %v583
      %v585 = vld [vmem:[%s508 + $0x18] sm:$0xf]
      %v586 = vsel %vm564, %v458, %v585
      %587 = vst [vmem:[%s508 + $0x18] sm:$0xf] %v586
      %v588 = vld [vmem:[%s508 + $0x1c] sm:$0x1]
      %v589 = vsel %vm569, %v459, %v588
      %590 = vst [vmem:[%s508 + $0x1c] sm:$0x1] %v589
      %v591 = vld [vmem:[%s508 + $0x20] sm:$0xf]
      %v592 = vsel %vm564, %v466, %v591
      %593 = vst [vmem:[%s508 + $0x20] sm:$0xf] %v592
      %v594 = vld [vmem:[%s508 + $0x24] sm:$0x1]
      %v595 = vsel %vm569, %v467, %v594
      %596 = vst [vmem:[%s508 + $0x24] sm:$0x1] %v595
      %v597 = vld [vmem:[%s508 + $0x28] sm:$0xf]
      %v598 = vsel %vm564, %v474, %v597
      %599 = vst [vmem:[%s508 + $0x28] sm:$0xf] %v598
      %v600 = vld [vmem:[%s508 + $0x2c] sm:$0x1]
      %v601 = vsel %vm569, %v475, %v600
      %602 = vst [vmem:[%s508 + $0x2c] sm:$0x1] %v601
      %v603 = vld [vmem:[%s508 + $0x30] sm:$0xf]
      %v604 = vsel %vm564, %v482, %v603
      %605 = vst [vmem:[%s508 + $0x30] sm:$0xf] %v604
      %v606 = vld [vmem:[%s508 + $0x34] sm:$0x1]
      %v607 = vsel %vm569, %v483, %v606
      %608 = vst [vmem:[%s508 + $0x34] sm:$0x1] %v607
      %v609 = vld [vmem:[%s508 + $0x38] sm:$0xf]
      %v610 = vsel %vm564, %v490, %v609
      %611 = vst [vmem:[%s508 + $0x38] sm:$0xf] %v610
      %v612 = vld [vmem:[%s508 + $0x3c] sm:$0x1]
      %v613 = vsel %vm569, %v491, %v612
      %614 = vst [vmem:[%s508 + $0x3c] sm:$0x1] %v613
      %v615 = vmax.f32 %v396, 0.0
      %v616 = vmax.f32 %v397, 0.0
      %v617 = vmax.f32 %v398, 0.0
      %v618 = vmax.f32 %v399, 0.0
      %v619 = vmax.f32 %v400, 0.0
      %v620 = vmax.f32 %v401, 0.0
      %v621 = vmax.f32 %v402, 0.0
      %v622 = vmax.f32 %v403, 0.0
      %v623 = vpack.c.bf16 %v615, %v615
      %v624 = vpack.c.bf16 %v616, %v616
      %v625 = vpack.c.bf16 %v617, %v617
      %v626 = vpack.c.bf16 %v618, %v618
      %v627 = vpack.c.bf16 %v619, %v619
      %v628 = vpack.c.bf16 %v620, %v620
      %v629 = vpack.c.bf16 %v621, %v621
      %v630 = vpack.c.bf16 %v622, %v622
      %v632 = vshrl.u32 %v623, 16
      %v634 = vrot.slane %v632, 7
      %v635 = vshll.u32 %v623, 16
      %v637 = vor.u32 %v634, %v635
      %v638 = vrot.slane %v634, 4
      %v640 = vshrl.u32 %v624, 16
      %v642 = vrot.slane %v640, 7
      %v643 = vshll.u32 %v624, 16
      %v645 = vor.u32 %v642, %v643
      %v646 = vrot.slane %v642, 4
      %v648 = vshrl.u32 %v625, 16
      %v650 = vrot.slane %v648, 7
      %v651 = vshll.u32 %v625, 16
      %v653 = vor.u32 %v650, %v651
      %v654 = vrot.slane %v650, 4
      %v656 = vshrl.u32 %v626, 16
      %v658 = vrot.slane %v656, 7
      %v659 = vshll.u32 %v626, 16
      %v661 = vor.u32 %v658, %v659
      %v662 = vrot.slane %v658, 4
      %v664 = vshrl.u32 %v627, 16
      %v666 = vrot.slane %v664, 7
      %v667 = vshll.u32 %v627, 16
      %v669 = vor.u32 %v666, %v667
      %v670 = vrot.slane %v666, 4
      %v672 = vshrl.u32 %v628, 16
      %v674 = vrot.slane %v672, 7
      %v675 = vshll.u32 %v628, 16
      %v677 = vor.u32 %v674, %v675
      %v678 = vrot.slane %v674, 4
      %v680 = vshrl.u32 %v629, 16
      %v682 = vrot.slane %v680, 7
      %v683 = vshll.u32 %v629, 16
      %v685 = vor.u32 %v682, %v683
      %v686 = vrot.slane %v682, 4
      %v688 = vshrl.u32 %v630, 16
      %v690 = vrot.slane %v688, 7
      %v691 = vshll.u32 %v630, 16
      %v693 = vor.u32 %v690, %v691
      %v694 = vrot.slane %v690, 4
      %695 = vrot.lane.b32.xlu0 %v637, 16
      %v696 = vpop.permute.xlu0 %695
      %697 = vrot.lane.b32.xlu0 %v638, 16
      %v698 = vpop.permute.xlu0 %697
      %699 = vrot.lane.b32.xlu0 %v645, 16
      %v700 = vpop.permute.xlu0 %699
      %701 = vrot.lane.b32.xlu0 %v646, 16
      %v702 = vpop.permute.xlu0 %701
      %703 = vrot.lane.b32.xlu0 %v653, 16
      %v704 = vpop.permute.xlu0 %703
      %705 = vrot.lane.b32.xlu0 %v654, 16
      %v706 = vpop.permute.xlu0 %705
      %707 = vrot.lane.b32.xlu0 %v661, 16
      %v708 = vpop.permute.xlu0 %707
      %709 = vrot.lane.b32.xlu0 %v662, 16
      %v710 = vpop.permute.xlu0 %709
      %711 = vrot.lane.b32.xlu0 %v669, 16
      %v712 = vpop.permute.xlu0 %711
      %713 = vrot.lane.b32.xlu0 %v670, 16
      %v714 = vpop.permute.xlu0 %713
      %715 = vrot.lane.b32.xlu0 %v677, 16
      %v716 = vpop.permute.xlu0 %715
      %717 = vrot.lane.b32.xlu0 %v678, 16
      %v718 = vpop.permute.xlu0 %717
      %719 = vrot.lane.b32.xlu0 %v685, 16
      %v720 = vpop.permute.xlu0 %719
      %721 = vrot.lane.b32.xlu0 %v686, 16
      %v722 = vpop.permute.xlu0 %721
      %723 = vrot.lane.b32.xlu0 %v693, 16
      %v724 = vpop.permute.xlu0 %723
      %725 = vrot.lane.b32.xlu0 %v694, 16
      %v726 = vpop.permute.xlu0 %725
      %vm743 = vcmask 191616
      %vm744 = vmand %vm743, %vm510
      %v745 = vld [vmem:[%s508] sm:$0xf]
      %v746 = vsel %vm744, %v696, %v745
      %747 = vst [vmem:[%s508] sm:$0xf] %v746
      %vm748 = vcmask 188544
      %vm749 = vmand %vm748, %vm516
      %v750 = vld [vmem:[%s508 + $0x4] sm:$0x1]
      %v751 = vsel %vm749, %v698, %v750
      %752 = vst [vmem:[%s508 + $0x4] sm:$0x1] %v751
      %v753 = vld [vmem:[%s508 + $0x8] sm:$0xf]
      %v754 = vsel %vm744, %v700, %v753
      %755 = vst [vmem:[%s508 + $0x8] sm:$0xf] %v754
      %v756 = vld [vmem:[%s508 + $0xc] sm:$0x1]
      %v757 = vsel %vm749, %v702, %v756
      %758 = vst [vmem:[%s508 + $0xc] sm:$0x1] %v757
      %v759 = vld [vmem:[%s508 + $0x10] sm:$0xf]
      %v760 = vsel %vm744, %v704, %v759
      %761 = vst [vmem:[%s508 + $0x10] sm:$0xf] %v760
      %v762 = vld [vmem:[%s508 + $0x14] sm:$0x1]
      %v763 = vsel %vm749, %v706, %v762
      %764 = vst [vmem:[%s508 + $0x14] sm:$0x1] %v763
      %v765 = vld [vmem:[%s508 + $0x18] sm:$0xf]
      %v766 = vsel %vm744, %v708, %v765
      %767 = vst [vmem:[%s508 + $0x18] sm:$0xf] %v766
      %v768 = vld [vmem:[%s508 + $0x1c] sm:$0x1]
      %v769 = vsel %vm749, %v710, %v768
      %770 = vst [vmem:[%s508 + $0x1c] sm:$0x1] %v769
      %v771 = vld [vmem:[%s508 + $0x20] sm:$0xf]
      %v772 = vsel %vm744, %v712, %v771
      %773 = vst [vmem:[%s508 + $0x20] sm:$0xf] %v772
      %v774 = vld [vmem:[%s508 + $0x24] sm:$0x1]
      %v775 = vsel %vm749, %v714, %v774
      %776 = vst [vmem:[%s508 + $0x24] sm:$0x1] %v775
      %v777 = vld [vmem:[%s508 + $0x28] sm:$0xf]
      %v778 = vsel %vm744, %v716, %v777
      %779 = vst [vmem:[%s508 + $0x28] sm:$0xf] %v778
      %v780 = vld [vmem:[%s508 + $0x2c] sm:$0x1]
      %v781 = vsel %vm749, %v718, %v780
      %782 = vst [vmem:[%s508 + $0x2c] sm:$0x1] %v781
      %v783 = vld [vmem:[%s508 + $0x30] sm:$0xf]
      %v784 = vsel %vm744, %v720, %v783
      %785 = vst [vmem:[%s508 + $0x30] sm:$0xf] %v784
      %v786 = vld [vmem:[%s508 + $0x34] sm:$0x1]
      %v787 = vsel %vm749, %v722, %v786
      %788 = vst [vmem:[%s508 + $0x34] sm:$0x1] %v787
      %v789 = vld [vmem:[%s508 + $0x38] sm:$0xf]
      %v790 = vsel %vm744, %v724, %v789
      %791 = vst [vmem:[%s508 + $0x38] sm:$0xf] %v790
      %v792 = vld [vmem:[%s508 + $0x3c] sm:$0x1]
      %v793 = vsel %vm749, %v726, %v792
      %794 = vst [vmem:[%s508 + $0x3c] sm:$0x1] %v793
      %v795 = vmax.f32 %v404, 0.0
      %v796 = vmax.f32 %v405, 0.0
      %v797 = vmax.f32 %v406, 0.0
      %v798 = vmax.f32 %v407, 0.0
      %v799 = vmax.f32 %v408, 0.0
      %v800 = vmax.f32 %v409, 0.0
      %v801 = vmax.f32 %v410, 0.0
      %v802 = vmax.f32 %v411, 0.0
      %v803 = vpack.c.bf16 %v795, %v795
      %v804 = vpack.c.bf16 %v796, %v796
      %v805 = vpack.c.bf16 %v797, %v797
      %v806 = vpack.c.bf16 %v798, %v798
      %v807 = vpack.c.bf16 %v799, %v799
      %v808 = vpack.c.bf16 %v800, %v800
      %v809 = vpack.c.bf16 %v801, %v801
      %v810 = vpack.c.bf16 %v802, %v802
      %v812 = vshrl.u32 %v803, 16
      %v814 = vrot.slane %v812, 7
      %v815 = vshll.u32 %v803, 16
      %v817 = vor.u32 %v814, %v815
      %v818 = vrot.slane %v814, 4
      %v820 = vshrl.u32 %v804, 16
      %v822 = vrot.slane %v820, 7
      %v823 = vshll.u32 %v804, 16
      %v825 = vor.u32 %v822, %v823
      %v826 = vrot.slane %v822, 4
      %v828 = vshrl.u32 %v805, 16
      %v830 = vrot.slane %v828, 7
      %v831 = vshll.u32 %v805, 16
      %v833 = vor.u32 %v830, %v831
      %v834 = vrot.slane %v830, 4
      %v836 = vshrl.u32 %v806, 16
      %v838 = vrot.slane %v836, 7
      %v839 = vshll.u32 %v806, 16
      %v841 = vor.u32 %v838, %v839
      %v842 = vrot.slane %v838, 4
      %v844 = vshrl.u32 %v807, 16
      %v846 = vrot.slane %v844, 7
      %v847 = vshll.u32 %v807, 16
      %v849 = vor.u32 %v846, %v847
      %v850 = vrot.slane %v846, 4
      %v852 = vshrl.u32 %v808, 16
      %v854 = vrot.slane %v852, 7
      %v855 = vshll.u32 %v808, 16
      %v857 = vor.u32 %v854, %v855
      %v858 = vrot.slane %v854, 4
      %v860 = vshrl.u32 %v809, 16
      %v862 = vrot.slane %v860, 7
      %v863 = vshll.u32 %v809, 16
      %v865 = vor.u32 %v862, %v863
      %v866 = vrot.slane %v862, 4
      %v868 = vshrl.u32 %v810, 16
      %v870 = vrot.slane %v868, 7
      %v871 = vshll.u32 %v810, 16
      %v873 = vor.u32 %v870, %v871
      %v874 = vrot.slane %v870, 4
      %875 = vrot.lane.b32.xlu0 %v817, 24
      %v876 = vpop.permute.xlu0 %875
      %877 = vrot.lane.b32.xlu0 %v818, 24
      %v878 = vpop.permute.xlu0 %877
      %879 = vrot.lane.b32.xlu0 %v825, 24
      %v880 = vpop.permute.xlu0 %879
      %881 = vrot.lane.b32.xlu0 %v826, 24
      %v882 = vpop.permute.xlu0 %881
      %883 = vrot.lane.b32.xlu0 %v833, 24
      %v884 = vpop.permute.xlu0 %883
      %885 = vrot.lane.b32.xlu0 %v834, 24
      %v886 = vpop.permute.xlu0 %885
      %887 = vrot.lane.b32.xlu0 %v841, 24
      %v888 = vpop.permute.xlu0 %887
      %889 = vrot.lane.b32.xlu0 %v842, 24
      %v890 = vpop.permute.xlu0 %889
      %891 = vrot.lane.b32.xlu0 %v849, 24
      %v892 = vpop.permute.xlu0 %891
      %893 = vrot.lane.b32.xlu0 %v850, 24
      %v894 = vpop.permute.xlu0 %893
      %895 = vrot.lane.b32.xlu0 %v857, 24
      %v896 = vpop.permute.xlu0 %895
      %897 = vrot.lane.b32.xlu0 %v858, 24
      %v898 = vpop.permute.xlu0 %897
      %899 = vrot.lane.b32.xlu0 %v865, 24
      %v900 = vpop.permute.xlu0 %899
      %901 = vrot.lane.b32.xlu0 %v866, 24
      %v902 = vpop.permute.xlu0 %901
      %903 = vrot.lane.b32.xlu0 %v873, 24
      %v904 = vpop.permute.xlu0 %903
      %905 = vrot.lane.b32.xlu0 %v874, 24
      %v906 = vpop.permute.xlu0 %905
      %vm923 = vcmask 257216
      %vm924 = vmand %vm923, %vm510
      %v925 = vld [vmem:[%s508] sm:$0xf]
      %v926 = vsel %vm924, %v876, %v925
      %927 = vst [vmem:[%s508] sm:$0xf] %v926
      %vm928 = vcmask 254144
      %vm929 = vmand %vm928, %vm516
      %v930 = vld [vmem:[%s508 + $0x4] sm:$0x1]
      %v931 = vsel %vm929, %v878, %v930
      %932 = vst [vmem:[%s508 + $0x4] sm:$0x1] %v931
      %v933 = vld [vmem:[%s508 + $0x8] sm:$0xf]
      %v934 = vsel %vm924, %v880, %v933
      %935 = vst [vmem:[%s508 + $0x8] sm:$0xf] %v934
      %v936 = vld [vmem:[%s508 + $0xc] sm:$0x1]
      %v937 = vsel %vm929, %v882, %v936
      %938 = vst [vmem:[%s508 + $0xc] sm:$0x1] %v937
      %v939 = vld [vmem:[%s508 + $0x10] sm:$0xf]
      %v940 = vsel %vm924, %v884, %v939
      %941 = vst [vmem:[%s508 + $0x10] sm:$0xf] %v940
      %v942 = vld [vmem:[%s508 + $0x14] sm:$0x1]
      %v943 = vsel %vm929, %v886, %v942
      %944 = vst [vmem:[%s508 + $0x14] sm:$0x1] %v943
      %v945 = vld [vmem:[%s508 + $0x18] sm:$0xf]
      %v946 = vsel %vm924, %v888, %v945
      %947 = vst [vmem:[%s508 + $0x18] sm:$0xf] %v946
      %v948 = vld [vmem:[%s508 + $0x1c] sm:$0x1]
      %v949 = vsel %vm929, %v890, %v948
      %950 = vst [vmem:[%s508 + $0x1c] sm:$0x1] %v949
      %v951 = vld [vmem:[%s508 + $0x20] sm:$0xf]
      %v952 = vsel %vm924, %v892, %v951
      %953 = vst [vmem:[%s508 + $0x20] sm:$0xf] %v952
      %v954 = vld [vmem:[%s508 + $0x24] sm:$0x1]
      %v955 = vsel %vm929, %v894, %v954
      %956 = vst [vmem:[%s508 + $0x24] sm:$0x1] %v955
      %v957 = vld [vmem:[%s508 + $0x28] sm:$0xf]
      %v958 = vsel %vm924, %v896, %v957
      %959 = vst [vmem:[%s508 + $0x28] sm:$0xf] %v958
      %v960 = vld [vmem:[%s508 + $0x2c] sm:$0x1]
      %v961 = vsel %vm929, %v898, %v960
      %962 = vst [vmem:[%s508 + $0x2c] sm:$0x1] %v961
      %v963 = vld [vmem:[%s508 + $0x30] sm:$0xf]
      %v964 = vsel %vm924, %v900, %v963
      %965 = vst [vmem:[%s508 + $0x30] sm:$0xf] %v964
      %v966 = vld [vmem:[%s508 + $0x34] sm:$0x1]
      %v967 = vsel %vm929, %v902, %v966
      %968 = vst [vmem:[%s508 + $0x34] sm:$0x1] %v967
      %v969 = vld [vmem:[%s508 + $0x38] sm:$0xf]
      %v970 = vsel %vm924, %v904, %v969
      %971 = vst [vmem:[%s508 + $0x38] sm:$0xf] %v970
      %v972 = vld [vmem:[%s508 + $0x3c] sm:$0x1]
      %v973 = vsel %vm929, %v906, %v972
      %974 = vst [vmem:[%s508 + $0x3c] sm:$0x1] %v973
      %v975 = vld [vmem:[#allocation2] sm:$0xf]
      %v976 = vld [vmem:[#allocation2 + $0x8] sm:$0xf]
      %v977 = vld [vmem:[#allocation2 + $0x10] sm:$0xf]
      %v978 = vld [vmem:[#allocation2 + $0x18] sm:$0xf]
      %v979 = vld [vmem:[#allocation2 + $0x20] sm:$0xf]
      %v980 = vld [vmem:[#allocation2 + $0x28] sm:$0xf]
      %v981 = vld [vmem:[#allocation2 + $0x30] sm:$0xf]
      %v982 = vld [vmem:[#allocation2 + $0x38] sm:$0xf]
      %v983 = vld [vmem:[%s4] sm:$0xf]
      %v984 = vld [vmem:[%s4 + $0x4] sm:$0xf]
      %v985 = vld [vmem:[%s4 + $0x8] sm:$0xf]
      %v986 = vld [vmem:[%s4 + $0xc] sm:$0xf]
      %v987 = vld [vmem:[#allocation2 + $0x4] sm:$0x1]
      %v988 = vld [vmem:[#allocation2 + $0xc] sm:$0x1]
      %v989 = vld [vmem:[#allocation2 + $0x14] sm:$0x1]
      %v990 = vld [vmem:[#allocation2 + $0x1c] sm:$0x1]
      %v991 = vld [vmem:[#allocation2 + $0x24] sm:$0x1]
      %v992 = vld [vmem:[#allocation2 + $0x2c] sm:$0x1]
      %v993 = vld [vmem:[#allocation2 + $0x34] sm:$0x1]
      %v994 = vld [vmem:[#allocation2 + $0x3c] sm:$0x1]
      %vm995 = vsmask.f32 3328
      %vm996 = vsmask.f32 7440
      %vm997 = vmor %vm995, %vm996
      %v999 = vshrl.u32 %v975, 16
      %v1001 = vrot.slane %v999, 4
      %v1002 = vshll.u32 %v975, 16
      %v1004 = vrot.slane %v1002, 5
      %v1005 = vor.u32 %v1001, %v1004
      %v1006 = vrot.slane %v1005, 4
      %v1008 = vshll.u32 %v987, 16
      %v1010 = vrot.slane %v1008, 5
      %v1011 = vsel %vm997, %v1006, %v1010
      %v1013 = vshrl.u32 %v976, 16
      %v1015 = vrot.slane %v1013, 4
      %v1016 = vshll.u32 %v976, 16
      %v1018 = vrot.slane %v1016, 5
      %v1019 = vor.u32 %v1015, %v1018
      %v1020 = vrot.slane %v1019, 4
      %v1022 = vshll.u32 %v988, 16
      %v1024 = vrot.slane %v1022, 5
      %v1025 = vsel %vm997, %v1020, %v1024
      %v1027 = vshrl.u32 %v977, 16
      %v1029 = vrot.slane %v1027, 4
      %v1030 = vshll.u32 %v977, 16
      %v1032 = vrot.slane %v1030, 5
      %v1033 = vor.u32 %v1029, %v1032
      %v1034 = vrot.slane %v1033, 4
      %v1036 = vshll.u32 %v989, 16
      %v1038 = vrot.slane %v1036, 5
      %v1039 = vsel %vm997, %v1034, %v1038
      %v1041 = vshrl.u32 %v978, 16
      %v1043 = vrot.slane %v1041, 4
      %v1044 = vshll.u32 %v978, 16
      %v1046 = vrot.slane %v1044, 5
      %v1047 = vor.u32 %v1043, %v1046
      %v1048 = vrot.slane %v1047, 4
      %v1050 = vshll.u32 %v990, 16
      %v1052 = vrot.slane %v1050, 5
      %v1053 = vsel %vm997, %v1048, %v1052
      %v1055 = vshrl.u32 %v979, 16
      %v1057 = vrot.slane %v1055, 4
      %v1058 = vshll.u32 %v979, 16
      %v1060 = vrot.slane %v1058, 5
      %v1061 = vor.u32 %v1057, %v1060
      %v1062 = vrot.slane %v1061, 4
      %v1064 = vshll.u32 %v991, 16
      %v1066 = vrot.slane %v1064, 5
      %v1067 = vsel %vm997, %v1062, %v1066
      %v1069 = vshrl.u32 %v980, 16
      %v1071 = vrot.slane %v1069, 4
      %v1072 = vshll.u32 %v980, 16
      %v1074 = vrot.slane %v1072, 5
      %v1075 = vor.u32 %v1071, %v1074
      %v1076 = vrot.slane %v1075, 4
      %v1078 = vshll.u32 %v992, 16
      %v1080 = vrot.slane %v1078, 5
      %v1081 = vsel %vm997, %v1076, %v1080
      %v1083 = vshrl.u32 %v981, 16
      %v1085 = vrot.slane %v1083, 4
      %v1086 = vshll.u32 %v981, 16
      %v1088 = vrot.slane %v1086, 5
      %v1089 = vor.u32 %v1085, %v1088
      %v1090 = vrot.slane %v1089, 4
      %v1092 = vshll.u32 %v993, 16
      %v1094 = vrot.slane %v1092, 5
      %v1095 = vsel %vm997, %v1090, %v1094
      %v1097 = vshrl.u32 %v982, 16
      %v1099 = vrot.slane %v1097, 4
      %v1100 = vshll.u32 %v982, 16
      %v1102 = vrot.slane %v1100, 5
      %v1103 = vor.u32 %v1099, %v1102
      %v1104 = vrot.slane %v1103, 4
      %v1106 = vshll.u32 %v994, 16
      %v1108 = vrot.slane %v1106, 5
      %v1109 = vsel %vm997, %v1104, %v1108
      %s1110 = scalar_lea.vmem %s4, 16
      %v1111 = vld [vmem:[%s1110] sm:$0xf]
      %v1112 = vld [vmem:[%s1110 + $0x4] sm:$0xf]
      %v1113 = vld [vmem:[%s1110 + $0x8] sm:$0xf]
      %v1114 = vld [vmem:[%s1110 + $0xc] sm:$0xf]
      %v1115 = vunpack.c.l.b16 %v1011
      %v1116 = vunpack.c.l.b16 %v1025
      %v1117 = vunpack.c.l.b16 %v1039
      %v1118 = vunpack.c.l.b16 %v1053
      %v1119 = vunpack.c.l.b16 %v1067
      %v1120 = vunpack.c.l.b16 %v1081
      %v1121 = vunpack.c.l.b16 %v1095
      %v1122 = vunpack.c.l.b16 %v1109
      %v1123 = vpack.c.b16 %v1116, %v1115
      %v1124 = vpack.c.b16 %v1118, %v1117
      %v1125 = vpack.c.b16 %v1120, %v1119
      %v1126 = vpack.c.b16 %v1122, %v1121
      %v1131 = vunpack.c.l.b16 %v1111
      %v1132 = vunpack.c.l.b16 %v1112
      %v1133 = vunpack.c.l.b16 %v1113
      %v1134 = vunpack.c.l.b16 %v1114
      %v1135 = vpack.c.b16 %v1132, %v1131
      %v1136 = vpack.c.b16 %v1134, %v1133
      %vm1139 = vcmask 261120
      %v1141 = vsel %vm1139, %v1123, 0
      %v1144 = vsel %vm1139, %v1124, 0
      %v1147 = vsel %vm1139, %v1125, 0
      %v1150 = vsel %vm1139, %v1126, 0
      %1152 = vmatpush.bf16.msra.mxu0 0
      %1153 = vmatpush.bf16.msra.mxu0 0
      %1154 = vmatpush.bf16.msra.mxu0 0
      %1155 = vmatpush.bf16.msra.mxu0 0
      %1156 = vmatpush.bf16.msra.mxu0 0
      %1157 = vmatpush.bf16.msra.mxu0 0
      %1158 = vmatpush.bf16.msra.mxu0 %v1136
      %1159 = vmatpush.bf16.msra.mxu0 %v1135
      %1160 = vmatmul.bf16.gmra.mxu0 %v1141
      %v1161 = vpop.f32.mrf.mxu0
      %v1162 = vadd.f32 0.0, %v1161
      %v1163 = vpop.f32.mrf.mxu0
      %v1164 = vadd.f32 0.0, %v1163
      %1165 = vmatmul.bf16.gmra.mxu0 %v1144
      %v1166 = vpop.f32.mrf.mxu0
      %v1167 = vadd.f32 0.0, %v1166
      %v1168 = vpop.f32.mrf.mxu0
      %v1169 = vadd.f32 0.0, %v1168
      %1170 = vmatmul.bf16.gmra.mxu0 %v1147
      %v1171 = vpop.f32.mrf.mxu0
      %v1172 = vadd.f32 0.0, %v1171
      %v1173 = vpop.f32.mrf.mxu0
      %v1174 = vadd.f32 0.0, %v1173
      %1175 = vmatmul.bf16.gmra.mxu0 %v1150
      %v1176 = vpop.f32.mrf.mxu0
      %v1177 = vadd.f32 0.0, %v1176
      %v1178 = vpop.f32.mrf.mxu0
      %v1179 = vadd.f32 0.0, %v1178
      %1180 = vdwg.mxu0
      %v1189 = vunpack.c.l.b16 %v975
      %v1190 = vunpack.c.l.b16 %v976
      %v1191 = vunpack.c.l.b16 %v977
      %v1192 = vunpack.c.l.b16 %v978
      %v1193 = vunpack.c.l.b16 %v979
      %v1194 = vunpack.c.l.b16 %v980
      %v1195 = vunpack.c.l.b16 %v981
      %v1196 = vunpack.c.l.b16 %v982
      %v1197 = vpack.c.b16 %v1190, %v1189
      %v1198 = vpack.c.b16 %v1192, %v1191
      %v1199 = vpack.c.b16 %v1194, %v1193
      %v1200 = vpack.c.b16 %v1196, %v1195
      %v1205 = vunpack.c.l.b16 %v983
      %v1206 = vunpack.c.l.b16 %v984
      %v1207 = vunpack.c.l.b16 %v985
      %v1208 = vunpack.c.l.b16 %v986
      %v1209 = vpack.c.b16 %v1206, %v1205
      %v1210 = vpack.c.b16 %v1208, %v1207
      %v1214 = vsel %vm1139, %v1197, 0
      %v1217 = vsel %vm1139, %v1198, 0
      %v1220 = vsel %vm1139, %v1199, 0
      %v1223 = vsel %vm1139, %v1200, 0
      %1225 = vmatpush.bf16.msra.mxu0 0
      %1226 = vmatpush.bf16.msra.mxu0 0
      %1227 = vmatpush.bf16.msra.mxu0 0
      %1228 = vmatpush.bf16.msra.mxu0 0
      %1229 = vmatpush.bf16.msra.mxu0 0
      %1230 = vmatpush.bf16.msra.mxu0 0
      %1231 = vmatpush.bf16.msra.mxu0 %v1210
      %1232 = vmatpush.bf16.msra.mxu0 %v1209
      %1233 = vmatmul.bf16.gmra.mxu0 %v1214
      %v1234 = vpop.f32.mrf.mxu0
      %v1235 = vadd.f32 %v1162, %v1234
      %v1236 = vpop.f32.mrf.mxu0
      %v1237 = vadd.f32 %v1164, %v1236
      %1238 = vmatmul.bf16.gmra.mxu0 %v1217
      %v1239 = vpop.f32.mrf.mxu0
      %v1240 = vadd.f32 %v1167, %v1239
      %v1241 = vpop.f32.mrf.mxu0
      %v1242 = vadd.f32 %v1169, %v1241
      %1243 = vmatmul.bf16.gmra.mxu0 %v1220
      %v1244 = vpop.f32.mrf.mxu0
      %v1245 = vadd.f32 %v1172, %v1244
      %v1246 = vpop.f32.mrf.mxu0
      %v1247 = vadd.f32 %v1174, %v1246
      %1248 = vmatmul.bf16.gmra.mxu0 %v1223
      %v1249 = vpop.f32.mrf.mxu0
      %v1250 = vadd.f32 %v1177, %v1249
      %v1251 = vpop.f32.mrf.mxu0
      %v1252 = vadd.f32 %v1179, %v1251
      %1253 = vdwg.mxu0
      %v1254 = vld [vmem:[#allocation2] sm:$0xe]
      %v1255 = vld [vmem:[#allocation2 + $0x8] sm:$0xe]
      %v1256 = vld [vmem:[#allocation2 + $0x10] sm:$0xe]
      %v1257 = vld [vmem:[#allocation2 + $0x18] sm:$0xe]
      %v1258 = vld [vmem:[#allocation2 + $0x20] sm:$0xe]
      %v1259 = vld [vmem:[#allocation2 + $0x28] sm:$0xe]
      %v1260 = vld [vmem:[#allocation2 + $0x30] sm:$0xe]
      %v1261 = vld [vmem:[#allocation2 + $0x38] sm:$0xe]
      %vm1278 = vcmask 1042432
      %vm1279 = vcmask 1046532
      %vm1280 = vmor %vm1278, %vm1279
      %v1281 = vrot.slane %v1254, 5
      %v1282 = vrot.slane %v1281, 4
      %v1283 = vrot.slane %v987, 5
      %v1284 = vsel %vm1280, %v1282, %v1283
      %v1285 = vrot.slane %v1255, 5
      %v1286 = vrot.slane %v1285, 4
      %v1287 = vrot.slane %v988, 5
      %v1288 = vsel %vm1280, %v1286, %v1287
      %v1289 = vrot.slane %v1256, 5
      %v1290 = vrot.slane %v1289, 4
      %v1291 = vrot.slane %v989, 5
      %v1292 = vsel %vm1280, %v1290, %v1291
      %v1293 = vrot.slane %v1257, 5
      %v1294 = vrot.slane %v1293, 4
      %v1295 = vrot.slane %v990, 5
      %v1296 = vsel %vm1280, %v1294, %v1295
      %v1297 = vrot.slane %v1258, 5
      %v1298 = vrot.slane %v1297, 4
      %v1299 = vrot.slane %v991, 5
      %v1300 = vsel %vm1280, %v1298, %v1299
      %v1301 = vrot.slane %v1259, 5
      %v1302 = vrot.slane %v1301, 4
      %v1303 = vrot.slane %v992, 5
      %v1304 = vsel %vm1280, %v1302, %v1303
      %v1305 = vrot.slane %v1260, 5
      %v1306 = vrot.slane %v1305, 4
      %v1307 = vrot.slane %v993, 5
      %v1308 = vsel %vm1280, %v1306, %v1307
      %v1309 = vrot.slane %v1261, 5
      %v1310 = vrot.slane %v1309, 4
      %v1311 = vrot.slane %v994, 5
      %v1312 = vsel %vm1280, %v1310, %v1311
      %s1313 = scalar_lea.vmem %s4, 32
      %v1314 = vld [vmem:[%s1313] sm:$0xf]
      %v1315 = vld [vmem:[%s1313 + $0x4] sm:$0xf]
      %v1316 = vld [vmem:[%s1313 + $0x8] sm:$0xf]
      %v1317 = vld [vmem:[%s1313 + $0xc] sm:$0xf]
      %v1318 = vunpack.c.l.b16 %v1284
      %v1319 = vunpack.c.l.b16 %v1288
      %v1320 = vunpack.c.l.b16 %v1292
      %v1321 = vunpack.c.l.b16 %v1296
      %v1322 = vunpack.c.l.b16 %v1300
      %v1323 = vunpack.c.l.b16 %v1304
      %v1324 = vunpack.c.l.b16 %v1308
      %v1325 = vunpack.c.l.b16 %v1312
      %v1326 = vpack.c.b16 %v1319, %v1318
      %v1327 = vpack.c.b16 %v1321, %v1320
      %v1328 = vpack.c.b16 %v1323, %v1322
      %v1329 = vpack.c.b16 %v1325, %v1324
      %v1334 = vunpack.c.l.b16 %v1314
      %v1335 = vunpack.c.l.b16 %v1315
      %v1336 = vunpack.c.l.b16 %v1316
      %v1337 = vunpack.c.l.b16 %v1317
      %v1338 = vpack.c.b16 %v1335, %v1334
      %v1339 = vpack.c.b16 %v1337, %v1336
      %v1343 = vsel %vm1139, %v1326, 0
      %v1346 = vsel %vm1139, %v1327, 0
      %v1349 = vsel %vm1139, %v1328, 0
      %v1352 = vsel %vm1139, %v1329, 0
      %1354 = vmatpush.bf16.msra.mxu0 0
      %1355 = vmatpush.bf16.msra.mxu0 0
      %1356 = vmatpush.bf16.msra.mxu0 0
      %1357 = vmatpush.bf16.msra.mxu0 0
      %1358 = vmatpush.bf16.msra.mxu0 0
      %1359 = vmatpush.bf16.msra.mxu0 0
      %1360 = vmatpush.bf16.msra.mxu0 %v1339
      %1361 = vmatpush.bf16.msra.mxu0 %v1338
      %1362 = vmatmul.bf16.gmra.mxu0 %v1343
      %v1363 = vpop.f32.mrf.mxu0
      %v1364 = vadd.f32 0.0, %v1363
      %v1365 = vpop.f32.mrf.mxu0
      %v1366 = vadd.f32 0.0, %v1365
      %1367 = vmatmul.bf16.gmra.mxu0 %v1346
      %v1368 = vpop.f32.mrf.mxu0
      %v1369 = vadd.f32 0.0, %v1368
      %v1370 = vpop.f32.mrf.mxu0
      %v1371 = vadd.f32 0.0, %v1370
      %1372 = vmatmul.bf16.gmra.mxu0 %v1349
      %v1373 = vpop.f32.mrf.mxu0
      %v1374 = vadd.f32 0.0, %v1373
      %v1375 = vpop.f32.mrf.mxu0
      %v1376 = vadd.f32 0.0, %v1375
      %1377 = vmatmul.bf16.gmra.mxu0 %v1352
      %v1378 = vpop.f32.mrf.mxu0
      %v1379 = vadd.f32 0.0, %v1378
      %v1380 = vpop.f32.mrf.mxu0
      %v1381 = vadd.f32 0.0, %v1380
      %1382 = vdwg.mxu0
      %v1383 = vadd.f32 %v1235, %v1364
      %v1384 = vadd.f32 %v1237, %v1366
      %v1385 = vadd.f32 %v1240, %v1369
      %v1386 = vadd.f32 %v1242, %v1371
      %v1387 = vadd.f32 %v1245, %v1374
      %v1388 = vadd.f32 %v1247, %v1376
      %v1389 = vadd.f32 %v1250, %v1379
      %v1390 = vadd.f32 %v1252, %v1381
      %v1391 = vld [vmem:[%s508] sm:$0xf]
      %v1392 = vld [vmem:[%s508 + $0x8] sm:$0xf]
      %v1393 = vld [vmem:[%s508 + $0x10] sm:$0xf]
      %v1394 = vld [vmem:[%s508 + $0x18] sm:$0xf]
      %v1395 = vld [vmem:[%s508 + $0x20] sm:$0xf]
      %v1396 = vld [vmem:[%s508 + $0x28] sm:$0xf]
      %v1397 = vld [vmem:[%s508 + $0x30] sm:$0xf]
      %v1398 = vld [vmem:[%s508 + $0x38] sm:$0xf]
      %s1399 = scalar_lea.vmem %s4, 48
      %v1400 = vld [vmem:[%s1399] sm:$0xf]
      %v1401 = vld [vmem:[%s1399 + $0x4] sm:$0xf]
      %v1402 = vld [vmem:[%s1399 + $0x8] sm:$0xf]
      %v1403 = vld [vmem:[%s1399 + $0xc] sm:$0xf]
      %v1412 = vunpack.c.l.b16 %v1391
      %v1413 = vunpack.c.l.b16 %v1392
      %v1414 = vunpack.c.l.b16 %v1393
      %v1415 = vunpack.c.l.b16 %v1394
      %v1416 = vunpack.c.l.b16 %v1395
      %v1417 = vunpack.c.l.b16 %v1396
      %v1418 = vunpack.c.l.b16 %v1397
      %v1419 = vunpack.c.l.b16 %v1398
      %v1420 = vpack.c.b16 %v1413, %v1412
      %v1421 = vpack.c.b16 %v1415, %v1414
      %v1422 = vpack.c.b16 %v1417, %v1416
      %v1423 = vpack.c.b16 %v1419, %v1418
      %v1428 = vunpack.c.l.b16 %v1400
      %v1429 = vunpack.c.l.b16 %v1401
      %v1430 = vunpack.c.l.b16 %v1402
      %v1431 = vunpack.c.l.b16 %v1403
      %v1432 = vpack.c.b16 %v1429, %v1428
      %v1433 = vpack.c.b16 %v1431, %v1430
      %v1437 = vsel %vm1139, %v1420, 0
      %v1440 = vsel %vm1139, %v1421, 0
      %v1443 = vsel %vm1139, %v1422, 0
      %v1446 = vsel %vm1139, %v1423, 0
      %1448 = vmatpush.bf16.msra.mxu0 0
      %1449 = vmatpush.bf16.msra.mxu0 0
      %1450 = vmatpush.bf16.msra.mxu0 0
      %1451 = vmatpush.bf16.msra.mxu0 0
      %1452 = vmatpush.bf16.msra.mxu0 0
      %1453 = vmatpush.bf16.msra.mxu0 0
      %1454 = vmatpush.bf16.msra.mxu0 %v1433
      %1455 = vmatpush.bf16.msra.mxu0 %v1432
      %1456 = vmatmul.bf16.gmra.mxu0 %v1437
      %v1457 = vpop.f32.mrf.mxu0
      %v1458 = vadd.f32 0.0, %v1457
      %v1459 = vpop.f32.mrf.mxu0
      %v1460 = vadd.f32 0.0, %v1459
      %1461 = vmatmul.bf16.gmra.mxu0 %v1440
      %v1462 = vpop.f32.mrf.mxu0
      %v1463 = vadd.f32 0.0, %v1462
      %v1464 = vpop.f32.mrf.mxu0
      %v1465 = vadd.f32 0.0, %v1464
      %1466 = vmatmul.bf16.gmra.mxu0 %v1443
      %v1467 = vpop.f32.mrf.mxu0
      %v1468 = vadd.f32 0.0, %v1467
      %v1469 = vpop.f32.mrf.mxu0
      %v1470 = vadd.f32 0.0, %v1469
      %1471 = vmatmul.bf16.gmra.mxu0 %v1446
      %v1472 = vpop.f32.mrf.mxu0
      %v1473 = vadd.f32 0.0, %v1472
      %v1474 = vpop.f32.mrf.mxu0
      %v1475 = vadd.f32 0.0, %v1474
      %1476 = vdwg.mxu0
      %v1477 = vadd.f32 %v1383, %v1458
      %v1478 = vadd.f32 %v1384, %v1460
      %v1479 = vadd.f32 %v1385, %v1463
      %v1480 = vadd.f32 %v1386, %v1465
      %v1481 = vadd.f32 %v1387, %v1468
      %v1482 = vadd.f32 %v1388, %v1470
      %v1483 = vadd.f32 %v1389, %v1473
      %v1484 = vadd.f32 %v1390, %v1475
      %v1485 = vld [vmem:[%s508] sm:$0xf]
      %v1486 = vld [vmem:[%s508 + $0x4] sm:$0x1]
      %v1487 = vld [vmem:[%s508 + $0x8] sm:$0xf]
      %v1488 = vld [vmem:[%s508 + $0xc] sm:$0x1]
      %v1489 = vld [vmem:[%s508 + $0x10] sm:$0xf]
      %v1490 = vld [vmem:[%s508 + $0x14] sm:$0x1]
      %v1491 = vld [vmem:[%s508 + $0x18] sm:$0xf]
      %v1492 = vld [vmem:[%s508 + $0x1c] sm:$0x1]
      %v1493 = vld [vmem:[%s508 + $0x20] sm:$0xf]
      %v1494 = vld [vmem:[%s508 + $0x24] sm:$0x1]
      %v1495 = vld [vmem:[%s508 + $0x28] sm:$0xf]
      %v1496 = vld [vmem:[%s508 + $0x2c] sm:$0x1]
      %v1497 = vld [vmem:[%s508 + $0x30] sm:$0xf]
      %v1498 = vld [vmem:[%s508 + $0x34] sm:$0x1]
      %v1499 = vld [vmem:[%s508 + $0x38] sm:$0xf]
      %v1500 = vld [vmem:[%s508 + $0x3c] sm:$0x1]
      %v1502 = vshrl.u32 %v1485, 16
      %v1504 = vrot.slane %v1502, 4
      %v1505 = vshll.u32 %v1485, 16
      %v1507 = vrot.slane %v1505, 5
      %v1508 = vor.u32 %v1504, %v1507
      %v1509 = vrot.slane %v1508, 4
      %v1511 = vshll.u32 %v1486, 16
      %v1513 = vrot.slane %v1511, 5
      %v1514 = vsel %vm997, %v1509, %v1513
      %v1516 = vshrl.u32 %v1487, 16
      %v1518 = vrot.slane %v1516, 4
      %v1519 = vshll.u32 %v1487, 16
      %v1521 = vrot.slane %v1519, 5
      %v1522 = vor.u32 %v1518, %v1521
      %v1523 = vrot.slane %v1522, 4
      %v1525 = vshll.u32 %v1488, 16
      %v1527 = vrot.slane %v1525, 5
      %v1528 = vsel %vm997, %v1523, %v1527
      %v1530 = vshrl.u32 %v1489, 16
      %v1532 = vrot.slane %v1530, 4
      %v1533 = vshll.u32 %v1489, 16
      %v1535 = vrot.slane %v1533, 5
      %v1536 = vor.u32 %v1532, %v1535
      %v1537 = vrot.slane %v1536, 4
      %v1539 = vshll.u32 %v1490, 16
      %v1541 = vrot.slane %v1539, 5
      %v1542 = vsel %vm997, %v1537, %v1541
      %v1544 = vshrl.u32 %v1491, 16
      %v1546 = vrot.slane %v1544, 4
      %v1547 = vshll.u32 %v1491, 16
      %v1549 = vrot.slane %v1547, 5
      %v1550 = vor.u32 %v1546, %v1549
      %v1551 = vrot.slane %v1550, 4
      %v1553 = vshll.u32 %v1492, 16
      %v1555 = vrot.slane %v1553, 5
      %v1556 = vsel %vm997, %v1551, %v1555
      %v1558 = vshrl.u32 %v1493, 16
      %v1560 = vrot.slane %v1558, 4
      %v1561 = vshll.u32 %v1493, 16
      %v1563 = vrot.slane %v1561, 5
      %v1564 = vor.u32 %v1560, %v1563
      %v1565 = vrot.slane %v1564, 4
      %v1567 = vshll.u32 %v1494, 16
      %v1569 = vrot.slane %v1567, 5
      %v1570 = vsel %vm997, %v1565, %v1569
      %v1572 = vshrl.u32 %v1495, 16
      %v1574 = vrot.slane %v1572, 4
      %v1575 = vshll.u32 %v1495, 16
      %v1577 = vrot.slane %v1575, 5
      %v1578 = vor.u32 %v1574, %v1577
      %v1579 = vrot.slane %v1578, 4
      %v1581 = vshll.u32 %v1496, 16
      %v1583 = vrot.slane %v1581, 5
      %v1584 = vsel %vm997, %v1579, %v1583
      %v1586 = vshrl.u32 %v1497, 16
      %v1588 = vrot.slane %v1586, 4
      %v1589 = vshll.u32 %v1497, 16
      %v1591 = vrot.slane %v1589, 5
      %v1592 = vor.u32 %v1588, %v1591
      %v1593 = vrot.slane %v1592, 4
      %v1595 = vshll.u32 %v1498, 16
      %v1597 = vrot.slane %v1595, 5
      %v1598 = vsel %vm997, %v1593, %v1597
      %v1600 = vshrl.u32 %v1499, 16
      %v1602 = vrot.slane %v1600, 4
      %v1603 = vshll.u32 %v1499, 16
      %v1605 = vrot.slane %v1603, 5
      %v1606 = vor.u32 %v1602, %v1605
      %v1607 = vrot.slane %v1606, 4
      %v1609 = vshll.u32 %v1500, 16
      %v1611 = vrot.slane %v1609, 5
      %v1612 = vsel %vm997, %v1607, %v1611
      %s1613 = scalar_lea.vmem %s4, 64
      %v1614 = vld [vmem:[%s1613] sm:$0xf]
      %v1615 = vld [vmem:[%s1613 + $0x4] sm:$0xf]
      %v1616 = vld [vmem:[%s1613 + $0x8] sm:$0xf]
      %v1617 = vld [vmem:[%s1613 + $0xc] sm:$0xf]
      %v1618 = vunpack.c.l.b16 %v1514
      %v1619 = vunpack.c.l.b16 %v1528
      %v1620 = vunpack.c.l.b16 %v1542
      %v1621 = vunpack.c.l.b16 %v1556
      %v1622 = vunpack.c.l.b16 %v1570
      %v1623 = vunpack.c.l.b16 %v1584
      %v1624 = vunpack.c.l.b16 %v1598
      %v1625 = vunpack.c.l.b16 %v1612
      %v1626 = vpack.c.b16 %v1619, %v1618
      %v1627 = vpack.c.b16 %v1621, %v1620
      %v1628 = vpack.c.b16 %v1623, %v1622
      %v1629 = vpack.c.b16 %v1625, %v1624
      %v1634 = vunpack.c.l.b16 %v1614
      %v1635 = vunpack.c.l.b16 %v1615
      %v1636 = vunpack.c.l.b16 %v1616
      %v1637 = vunpack.c.l.b16 %v1617
      %v1638 = vpack.c.b16 %v1635, %v1634
      %v1639 = vpack.c.b16 %v1637, %v1636
      %v1643 = vsel %vm1139, %v1626, 0
      %v1646 = vsel %vm1139, %v1627, 0
      %v1649 = vsel %vm1139, %v1628, 0
      %v1652 = vsel %vm1139, %v1629, 0
      %1654 = vmatpush.bf16.msra.mxu0 0
      %1655 = vmatpush.bf16.msra.mxu0 0
      %1656 = vmatpush.bf16.msra.mxu0 0
      %1657 = vmatpush.bf16.msra.mxu0 0
      %1658 = vmatpush.bf16.msra.mxu0 0
      %1659 = vmatpush.bf16.msra.mxu0 0
      %1660 = vmatpush.bf16.msra.mxu0 %v1639
      %1661 = vmatpush.bf16.msra.mxu0 %v1638
      %1662 = vmatmul.bf16.gmra.mxu0 %v1643
      %v1663 = vpop.f32.mrf.mxu0
      %v1664 = vadd.f32 0.0, %v1663
      %v1665 = vpop.f32.mrf.mxu0
      %v1666 = vadd.f32 0.0, %v1665
      %1667 = vmatmul.bf16.gmra.mxu0 %v1646
      %v1668 = vpop.f32.mrf.mxu0
      %v1669 = vadd.f32 0.0, %v1668
      %v1670 = vpop.f32.mrf.mxu0
      %v1671 = vadd.f32 0.0, %v1670
      %1672 = vmatmul.bf16.gmra.mxu0 %v1649
      %v1673 = vpop.f32.mrf.mxu0
      %v1674 = vadd.f32 0.0, %v1673
      %v1675 = vpop.f32.mrf.mxu0
      %v1676 = vadd.f32 0.0, %v1675
      %1677 = vmatmul.bf16.gmra.mxu0 %v1652
      %v1678 = vpop.f32.mrf.mxu0
      %v1679 = vadd.f32 0.0, %v1678
      %v1680 = vpop.f32.mrf.mxu0
      %v1681 = vadd.f32 0.0, %v1680
      %1682 = vdwg.mxu0
      %v1683 = vadd.f32 %v1477, %v1664
      %v1684 = vadd.f32 %v1478, %v1666
      %v1685 = vadd.f32 %v1479, %v1669
      %v1686 = vadd.f32 %v1480, %v1671
      %v1687 = vadd.f32 %v1481, %v1674
      %v1688 = vadd.f32 %v1482, %v1676
      %v1689 = vadd.f32 %v1483, %v1679
      %v1690 = vadd.f32 %v1484, %v1681
      %v1691 = vld [vmem:[%s508] sm:$0xe]
      %v1692 = vld [vmem:[%s508 + $0x8] sm:$0xe]
      %v1693 = vld [vmem:[%s508 + $0x10] sm:$0xe]
      %v1694 = vld [vmem:[%s508 + $0x18] sm:$0xe]
      %v1695 = vld [vmem:[%s508 + $0x20] sm:$0xe]
      %v1696 = vld [vmem:[%s508 + $0x28] sm:$0xe]
      %v1697 = vld [vmem:[%s508 + $0x30] sm:$0xe]
      %v1698 = vld [vmem:[%s508 + $0x38] sm:$0xe]
      %v1715 = vrot.slane %v1691, 5
      %v1716 = vrot.slane %v1715, 4
      %v1717 = vrot.slane %v1486, 5
      %v1718 = vsel %vm1280, %v1716, %v1717
      %v1719 = vrot.slane %v1692, 5
      %v1720 = vrot.slane %v1719, 4
      %v1721 = vrot.slane %v1488, 5
      %v1722 = vsel %vm1280, %v1720, %v1721
      %v1723 = vrot.slane %v1693, 5
      %v1724 = vrot.slane %v1723, 4
      %v1725 = vrot.slane %v1490, 5
      %v1726 = vsel %vm1280, %v1724, %v1725
      %v1727 = vrot.slane %v1694, 5
      %v1728 = vrot.slane %v1727, 4
      %v1729 = vrot.slane %v1492, 5
      %v1730 = vsel %vm1280, %v1728, %v1729
      %v1731 = vrot.slane %v1695, 5
      %v1732 = vrot.slane %v1731, 4
      %v1733 = vrot.slane %v1494, 5
      %v1734 = vsel %vm1280, %v1732, %v1733
      %v1735 = vrot.slane %v1696, 5
      %v1736 = vrot.slane %v1735, 4
      %v1737 = vrot.slane %v1496, 5
      %v1738 = vsel %vm1280, %v1736, %v1737
      %v1739 = vrot.slane %v1697, 5
      %v1740 = vrot.slane %v1739, 4
      %v1741 = vrot.slane %v1498, 5
      %v1742 = vsel %vm1280, %v1740, %v1741
      %v1743 = vrot.slane %v1698, 5
      %v1744 = vrot.slane %v1743, 4
      %v1745 = vrot.slane %v1500, 5
      %v1746 = vsel %vm1280, %v1744, %v1745
      %s1747 = scalar_lea.vmem %s4, 80
      %v1748 = vld [vmem:[%s1747] sm:$0xf]
      %v1749 = vld [vmem:[%s1747 + $0x4] sm:$0xf]
      %v1750 = vld [vmem:[%s1747 + $0x8] sm:$0xf]
      %v1751 = vld [vmem:[%s1747 + $0xc] sm:$0xf]
      %v1752 = vunpack.c.l.b16 %v1718
      %v1753 = vunpack.c.l.b16 %v1722
      %v1754 = vunpack.c.l.b16 %v1726
      %v1755 = vunpack.c.l.b16 %v1730
      %v1756 = vunpack.c.l.b16 %v1734
      %v1757 = vunpack.c.l.b16 %v1738
      %v1758 = vunpack.c.l.b16 %v1742
      %v1759 = vunpack.c.l.b16 %v1746
      %v1760 = vpack.c.b16 %v1753, %v1752
      %v1761 = vpack.c.b16 %v1755, %v1754
      %v1762 = vpack.c.b16 %v1757, %v1756
      %v1763 = vpack.c.b16 %v1759, %v1758
      %v1768 = vunpack.c.l.b16 %v1748
      %v1769 = vunpack.c.l.b16 %v1749
      %v1770 = vunpack.c.l.b16 %v1750
      %v1771 = vunpack.c.l.b16 %v1751
      %v1772 = vpack.c.b16 %v1769, %v1768
      %v1773 = vpack.c.b16 %v1771, %v1770
      %v1777 = vsel %vm1139, %v1760, 0
      %v1780 = vsel %vm1139, %v1761, 0
      %v1783 = vsel %vm1139, %v1762, 0
      %v1786 = vsel %vm1139, %v1763, 0
      %1788 = vmatpush.bf16.msra.mxu0 0
      %1789 = vmatpush.bf16.msra.mxu0 0
      %1790 = vmatpush.bf16.msra.mxu0 0
      %1791 = vmatpush.bf16.msra.mxu0 0
      %1792 = vmatpush.bf16.msra.mxu0 0
      %1793 = vmatpush.bf16.msra.mxu0 0
      %1794 = vmatpush.bf16.msra.mxu0 %v1773
      %1795 = vmatpush.bf16.msra.mxu0 %v1772
      %1796 = vmatmul.bf16.gmra.mxu0 %v1777
      %v1797 = vpop.f32.mrf.mxu0
      %v1798 = vadd.f32 0.0, %v1797
      %v1799 = vpop.f32.mrf.mxu0
      %v1800 = vadd.f32 0.0, %v1799
      %1801 = vmatmul.bf16.gmra.mxu0 %v1780
      %v1802 = vpop.f32.mrf.mxu0
      %v1803 = vadd.f32 0.0, %v1802
      %v1804 = vpop.f32.mrf.mxu0
      %v1805 = vadd.f32 0.0, %v1804
      %1806 = vmatmul.bf16.gmra.mxu0 %v1783
      %v1807 = vpop.f32.mrf.mxu0
      %v1808 = vadd.f32 0.0, %v1807
      %v1809 = vpop.f32.mrf.mxu0
      %v1810 = vadd.f32 0.0, %v1809
      %1811 = vmatmul.bf16.gmra.mxu0 %v1786
      %v1812 = vpop.f32.mrf.mxu0
      %v1813 = vadd.f32 0.0, %v1812
      %v1814 = vpop.f32.mrf.mxu0
      %v1815 = vadd.f32 0.0, %v1814
      %1816 = vdwg.mxu0
      %v1817 = vadd.f32 %v1683, %v1798
      %v1818 = vadd.f32 %v1684, %v1800
      %v1819 = vadd.f32 %v1685, %v1803
      %v1820 = vadd.f32 %v1686, %v1805
      %v1821 = vadd.f32 %v1687, %v1808
      %v1822 = vadd.f32 %v1688, %v1810
      %v1823 = vadd.f32 %v1689, %v1813
      %v1824 = vadd.f32 %v1690, %v1815
      %s1825 = scalar_lea.vmem [#allocation2], 16
      %v1826 = vld [vmem:[%s1825] sm:$0xf]
      %v1827 = vld [vmem:[%s1825 + $0x8] sm:$0xf]
      %v1828 = vld [vmem:[%s1825 + $0x10] sm:$0xf]
      %v1829 = vld [vmem:[%s1825 + $0x18] sm:$0xf]
      %v1830 = vld [vmem:[%s1825 + $0x20] sm:$0xf]
      %v1831 = vld [vmem:[%s1825 + $0x28] sm:$0xf]
      %v1832 = vld [vmem:[%s1825 + $0x30] sm:$0xf]
      %v1833 = vld [vmem:[%s1825 + $0x38] sm:$0xf]
      %s1834 = scalar_lea.vmem %s4, 96
      %v1835 = vld [vmem:[%s1834] sm:$0xf]
      %v1836 = vld [vmem:[%s1834 + $0x4] sm:$0xf]
      %v1837 = vld [vmem:[%s1834 + $0x8] sm:$0xf]
      %v1838 = vld [vmem:[%s1834 + $0xc] sm:$0xf]
      %v1847 = vunpack.c.l.b16 %v1826
      %v1848 = vunpack.c.l.b16 %v1827
      %v1849 = vunpack.c.l.b16 %v1828
      %v1850 = vunpack.c.l.b16 %v1829
      %v1851 = vunpack.c.l.b16 %v1830
      %v1852 = vunpack.c.l.b16 %v1831
      %v1853 = vunpack.c.l.b16 %v1832
      %v1854 = vunpack.c.l.b16 %v1833
      %v1855 = vpack.c.b16 %v1848, %v1847
      %v1856 = vpack.c.b16 %v1850, %v1849
      %v1857 = vpack.c.b16 %v1852, %v1851
      %v1858 = vpack.c.b16 %v1854, %v1853
      %v1863 = vunpack.c.l.b16 %v1835
      %v1864 = vunpack.c.l.b16 %v1836
      %v1865 = vunpack.c.l.b16 %v1837
      %v1866 = vunpack.c.l.b16 %v1838
      %v1867 = vpack.c.b16 %v1864, %v1863
      %v1868 = vpack.c.b16 %v1866, %v1865
      %v1872 = vsel %vm1139, %v1855, 0
      %v1875 = vsel %vm1139, %v1856, 0
      %v1878 = vsel %vm1139, %v1857, 0
      %v1881 = vsel %vm1139, %v1858, 0
      %1883 = vmatpush.bf16.msra.mxu0 0
      %1884 = vmatpush.bf16.msra.mxu0 0
      %1885 = vmatpush.bf16.msra.mxu0 0
      %1886 = vmatpush.bf16.msra.mxu0 0
      %1887 = vmatpush.bf16.msra.mxu0 0
      %1888 = vmatpush.bf16.msra.mxu0 0
      %1889 = vmatpush.bf16.msra.mxu0 %v1868
      %1890 = vmatpush.bf16.msra.mxu0 %v1867
      %1891 = vmatmul.bf16.gmra.mxu0 %v1872
      %v1892 = vpop.f32.mrf.mxu0
      %v1893 = vadd.f32 0.0, %v1892
      %v1894 = vpop.f32.mrf.mxu0
      %v1895 = vadd.f32 0.0, %v1894
      %1896 = vmatmul.bf16.gmra.mxu0 %v1875
      %v1897 = vpop.f32.mrf.mxu0
      %v1898 = vadd.f32 0.0, %v1897
      %v1899 = vpop.f32.mrf.mxu0
      %v1900 = vadd.f32 0.0, %v1899
      %1901 = vmatmul.bf16.gmra.mxu0 %v1878
      %v1902 = vpop.f32.mrf.mxu0
      %v1903 = vadd.f32 0.0, %v1902
      %v1904 = vpop.f32.mrf.mxu0
      %v1905 = vadd.f32 0.0, %v1904
      %1906 = vmatmul.bf16.gmra.mxu0 %v1881
      %v1907 = vpop.f32.mrf.mxu0
      %v1908 = vadd.f32 0.0, %v1907
      %v1909 = vpop.f32.mrf.mxu0
      %v1910 = vadd.f32 0.0, %v1909
      %1911 = vdwg.mxu0
      %v1912 = vadd.f32 %v1817, %v1893
      %v1913 = vadd.f32 %v1818, %v1895
      %v1914 = vadd.f32 %v1819, %v1898
      %v1915 = vadd.f32 %v1820, %v1900
      %v1916 = vadd.f32 %v1821, %v1903
      %v1917 = vadd.f32 %v1822, %v1905
      %v1918 = vadd.f32 %v1823, %v1908
      %v1919 = vadd.f32 %v1824, %v1910
      %v1920 = vld [vmem:[%s1825] sm:$0xf]
      %v1921 = vld [vmem:[%s1825 + $0x4] sm:$0x1]
      %v1922 = vld [vmem:[%s1825 + $0x8] sm:$0xf]
      %v1923 = vld [vmem:[%s1825 + $0xc] sm:$0x1]
      %v1924 = vld [vmem:[%s1825 + $0x10] sm:$0xf]
      %v1925 = vld [vmem:[%s1825 + $0x14] sm:$0x1]
      %v1926 = vld [vmem:[%s1825 + $0x18] sm:$0xf]
      %v1927 = vld [vmem:[%s1825 + $0x1c] sm:$0x1]
      %v1928 = vld [vmem:[%s1825 + $0x20] sm:$0xf]
      %v1929 = vld [vmem:[%s1825 + $0x24] sm:$0x1]
      %v1930 = vld [vmem:[%s1825 + $0x28] sm:$0xf]
      %v1931 = vld [vmem:[%s1825 + $0x2c] sm:$0x1]
      %v1932 = vld [vmem:[%s1825 + $0x30] sm:$0xf]
      %v1933 = vld [vmem:[%s1825 + $0x34] sm:$0x1]
      %v1934 = vld [vmem:[%s1825 + $0x38] sm:$0xf]
      %v1935 = vld [vmem:[%s1825 + $0x3c] sm:$0x1]
      %v1937 = vshrl.u32 %v1920, 16
      %v1939 = vrot.slane %v1937, 4
      %v1940 = vshll.u32 %v1920, 16
      %v1942 = vrot.slane %v1940, 5
      %v1943 = vor.u32 %v1939, %v1942
      %v1944 = vrot.slane %v1943, 4
      %v1946 = vshll.u32 %v1921, 16
      %v1948 = vrot.slane %v1946, 5
      %v1949 = vsel %vm997, %v1944, %v1948
      %v1951 = vshrl.u32 %v1922, 16
      %v1953 = vrot.slane %v1951, 4
      %v1954 = vshll.u32 %v1922, 16
      %v1956 = vrot.slane %v1954, 5
      %v1957 = vor.u32 %v1953, %v1956
      %v1958 = vrot.slane %v1957, 4
      %v1960 = vshll.u32 %v1923, 16
      %v1962 = vrot.slane %v1960, 5
      %v1963 = vsel %vm997, %v1958, %v1962
      %v1965 = vshrl.u32 %v1924, 16
      %v1967 = vrot.slane %v1965, 4
      %v1968 = vshll.u32 %v1924, 16
      %v1970 = vrot.slane %v1968, 5
      %v1971 = vor.u32 %v1967, %v1970
      %v1972 = vrot.slane %v1971, 4
      %v1974 = vshll.u32 %v1925, 16
      %v1976 = vrot.slane %v1974, 5
      %v1977 = vsel %vm997, %v1972, %v1976
      %v1979 = vshrl.u32 %v1926, 16
      %v1981 = vrot.slane %v1979, 4
      %v1982 = vshll.u32 %v1926, 16
      %v1984 = vrot.slane %v1982, 5
      %v1985 = vor.u32 %v1981, %v1984
      %v1986 = vrot.slane %v1985, 4
      %v1988 = vshll.u32 %v1927, 16
      %v1990 = vrot.slane %v1988, 5
      %v1991 = vsel %vm997, %v1986, %v1990
      %v1993 = vshrl.u32 %v1928, 16
      %v1995 = vrot.slane %v1993, 4
      %v1996 = vshll.u32 %v1928, 16
      %v1998 = vrot.slane %v1996, 5
      %v1999 = vor.u32 %v1995, %v1998
      %v2000 = vrot.slane %v1999, 4
      %v2002 = vshll.u32 %v1929, 16
      %v2004 = vrot.slane %v2002, 5
      %v2005 = vsel %vm997, %v2000, %v2004
      %v2007 = vshrl.u32 %v1930, 16
      %v2009 = vrot.slane %v2007, 4
      %v2010 = vshll.u32 %v1930, 16
      %v2012 = vrot.slane %v2010, 5
      %v2013 = vor.u32 %v2009, %v2012
      %v2014 = vrot.slane %v2013, 4
      %v2016 = vshll.u32 %v1931, 16
      %v2018 = vrot.slane %v2016, 5
      %v2019 = vsel %vm997, %v2014, %v2018
      %v2021 = vshrl.u32 %v1932, 16
      %v2023 = vrot.slane %v2021, 4
      %v2024 = vshll.u32 %v1932, 16
      %v2026 = vrot.slane %v2024, 5
      %v2027 = vor.u32 %v2023, %v2026
      %v2028 = vrot.slane %v2027, 4
      %v2030 = vshll.u32 %v1933, 16
      %v2032 = vrot.slane %v2030, 5
      %v2033 = vsel %vm997, %v2028, %v2032
      %v2035 = vshrl.u32 %v1934, 16
      %v2037 = vrot.slane %v2035, 4
      %v2038 = vshll.u32 %v1934, 16
      %v2040 = vrot.slane %v2038, 5
      %v2041 = vor.u32 %v2037, %v2040
      %v2042 = vrot.slane %v2041, 4
      %v2044 = vshll.u32 %v1935, 16
      %v2046 = vrot.slane %v2044, 5
      %v2047 = vsel %vm997, %v2042, %v2046
      %s2048 = scalar_lea.vmem %s4, 112
      %v2049 = vld [vmem:[%s2048] sm:$0xf]
      %v2050 = vld [vmem:[%s2048 + $0x4] sm:$0xf]
      %v2051 = vld [vmem:[%s2048 + $0x8] sm:$0xf]
      %v2052 = vld [vmem:[%s2048 + $0xc] sm:$0xf]
      %v2053 = vunpack.c.l.b16 %v1949
      %v2054 = vunpack.c.l.b16 %v1963
      %v2055 = vunpack.c.l.b16 %v1977
      %v2056 = vunpack.c.l.b16 %v1991
      %v2057 = vunpack.c.l.b16 %v2005
      %v2058 = vunpack.c.l.b16 %v2019
      %v2059 = vunpack.c.l.b16 %v2033
      %v2060 = vunpack.c.l.b16 %v2047
      %v2061 = vpack.c.b16 %v2054, %v2053
      %v2062 = vpack.c.b16 %v2056, %v2055
      %v2063 = vpack.c.b16 %v2058, %v2057
      %v2064 = vpack.c.b16 %v2060, %v2059
      %v2069 = vunpack.c.l.b16 %v2049
      %v2070 = vunpack.c.l.b16 %v2050
      %v2071 = vunpack.c.l.b16 %v2051
      %v2072 = vunpack.c.l.b16 %v2052
      %v2073 = vpack.c.b16 %v2070, %v2069
      %v2074 = vpack.c.b16 %v2072, %v2071
      %v2078 = vsel %vm1139, %v2061, 0
      %v2081 = vsel %vm1139, %v2062, 0
      %v2084 = vsel %vm1139, %v2063, 0
      %v2087 = vsel %vm1139, %v2064, 0
      %2089 = vmatpush.bf16.msra.mxu0 0
      %2090 = vmatpush.bf16.msra.mxu0 0
      %2091 = vmatpush.bf16.msra.mxu0 0
      %2092 = vmatpush.bf16.msra.mxu0 0
      %2093 = vmatpush.bf16.msra.mxu0 0
      %2094 = vmatpush.bf16.msra.mxu0 0
      %2095 = vmatpush.bf16.msra.mxu0 %v2074
      %2096 = vmatpush.bf16.msra.mxu0 %v2073
      %2097 = vmatmul.bf16.gmra.mxu0 %v2078
      %v2098 = vpop.f32.mrf.mxu0
      %v2099 = vadd.f32 0.0, %v2098
      %v2100 = vpop.f32.mrf.mxu0
      %v2101 = vadd.f32 0.0, %v2100
      %2102 = vmatmul.bf16.gmra.mxu0 %v2081
      %v2103 = vpop.f32.mrf.mxu0
      %v2104 = vadd.f32 0.0, %v2103
      %v2105 = vpop.f32.mrf.mxu0
      %v2106 = vadd.f32 0.0, %v2105
      %2107 = vmatmul.bf16.gmra.mxu0 %v2084
      %v2108 = vpop.f32.mrf.mxu0
      %v2109 = vadd.f32 0.0, %v2108
      %v2110 = vpop.f32.mrf.mxu0
      %v2111 = vadd.f32 0.0, %v2110
      %2112 = vmatmul.bf16.gmra.mxu0 %v2087
      %v2113 = vpop.f32.mrf.mxu0
      %v2114 = vadd.f32 0.0, %v2113
      %v2115 = vpop.f32.mrf.mxu0
      %v2116 = vadd.f32 0.0, %v2115
      %2117 = vdwg.mxu0
      %v2118 = vadd.f32 %v1912, %v2099
      %v2119 = vadd.f32 %v1913, %v2101
      %v2120 = vadd.f32 %v1914, %v2104
      %v2121 = vadd.f32 %v1915, %v2106
      %v2122 = vadd.f32 %v1916, %v2109
      %v2123 = vadd.f32 %v1917, %v2111
      %v2124 = vadd.f32 %v1918, %v2114
      %v2125 = vadd.f32 %v1919, %v2116
      %v2126 = vld [vmem:[%s1825] sm:$0xe]
      %v2127 = vld [vmem:[%s1825 + $0x8] sm:$0xe]
      %v2128 = vld [vmem:[%s1825 + $0x10] sm:$0xe]
      %v2129 = vld [vmem:[%s1825 + $0x18] sm:$0xe]
      %v2130 = vld [vmem:[%s1825 + $0x20] sm:$0xe]
      %v2131 = vld [vmem:[%s1825 + $0x28] sm:$0xe]
      %v2132 = vld [vmem:[%s1825 + $0x30] sm:$0xe]
      %v2133 = vld [vmem:[%s1825 + $0x38] sm:$0xe]
      %v2150 = vrot.slane %v2126, 5
      %v2151 = vrot.slane %v2150, 4
      %v2152 = vrot.slane %v1921, 5
      %v2153 = vsel %vm1280, %v2151, %v2152
      %v2154 = vrot.slane %v2127, 5
      %v2155 = vrot.slane %v2154, 4
      %v2156 = vrot.slane %v1923, 5
      %v2157 = vsel %vm1280, %v2155, %v2156
      %v2158 = vrot.slane %v2128, 5
      %v2159 = vrot.slane %v2158, 4
      %v2160 = vrot.slane %v1925, 5
      %v2161 = vsel %vm1280, %v2159, %v2160
      %v2162 = vrot.slane %v2129, 5
      %v2163 = vrot.slane %v2162, 4
      %v2164 = vrot.slane %v1927, 5
      %v2165 = vsel %vm1280, %v2163, %v2164
      %v2166 = vrot.slane %v2130, 5
      %v2167 = vrot.slane %v2166, 4
      %v2168 = vrot.slane %v1929, 5
      %v2169 = vsel %vm1280, %v2167, %v2168
      %v2170 = vrot.slane %v2131, 5
      %v2171 = vrot.slane %v2170, 4
      %v2172 = vrot.slane %v1931, 5
      %v2173 = vsel %vm1280, %v2171, %v2172
      %v2174 = vrot.slane %v2132, 5
      %v2175 = vrot.slane %v2174, 4
      %v2176 = vrot.slane %v1933, 5
      %v2177 = vsel %vm1280, %v2175, %v2176
      %v2178 = vrot.slane %v2133, 5
      %v2179 = vrot.slane %v2178, 4
      %v2180 = vrot.slane %v1935, 5
      %v2181 = vsel %vm1280, %v2179, %v2180
      %s2182 = scalar_lea.vmem %s4, 128
      %v2183 = vld [vmem:[%s2182] sm:$0xf]
      %v2184 = vld [vmem:[%s2182 + $0x4] sm:$0xf]
      %v2185 = vld [vmem:[%s2182 + $0x8] sm:$0xf]
      %v2186 = vld [vmem:[%s2182 + $0xc] sm:$0xf]
      %v2187 = vunpack.c.l.b16 %v2153
      %v2188 = vunpack.c.l.b16 %v2157
      %v2189 = vunpack.c.l.b16 %v2161
      %v2190 = vunpack.c.l.b16 %v2165
      %v2191 = vunpack.c.l.b16 %v2169
      %v2192 = vunpack.c.l.b16 %v2173
      %v2193 = vunpack.c.l.b16 %v2177
      %v2194 = vunpack.c.l.b16 %v2181
      %v2195 = vpack.c.b16 %v2188, %v2187
      %v2196 = vpack.c.b16 %v2190, %v2189
      %v2197 = vpack.c.b16 %v2192, %v2191
      %v2198 = vpack.c.b16 %v2194, %v2193
      %v2203 = vunpack.c.l.b16 %v2183
      %v2204 = vunpack.c.l.b16 %v2184
      %v2205 = vunpack.c.l.b16 %v2185
      %v2206 = vunpack.c.l.b16 %v2186
      %v2207 = vpack.c.b16 %v2204, %v2203
      %v2208 = vpack.c.b16 %v2206, %v2205
      %v2212 = vsel %vm1139, %v2195, 0
      %v2215 = vsel %vm1139, %v2196, 0
      %v2218 = vsel %vm1139, %v2197, 0
      %v2221 = vsel %vm1139, %v2198, 0
      %2223 = vmatpush.bf16.msra.mxu0 0
      %2224 = vmatpush.bf16.msra.mxu0 0
      %2225 = vmatpush.bf16.msra.mxu0 0
      %2226 = vmatpush.bf16.msra.mxu0 0
      %2227 = vmatpush.bf16.msra.mxu0 0
      %2228 = vmatpush.bf16.msra.mxu0 0
      %2229 = vmatpush.bf16.msra.mxu0 %v2208
      %2230 = vmatpush.bf16.msra.mxu0 %v2207
      %2231 = vmatmul.bf16.gmra.mxu0 %v2212
      %v2232 = vpop.f32.mrf.mxu0
      %v2233 = vadd.f32 0.0, %v2232
      %v2234 = vpop.f32.mrf.mxu0
      %v2235 = vadd.f32 0.0, %v2234
      %2236 = vmatmul.bf16.gmra.mxu0 %v2215
      %v2237 = vpop.f32.mrf.mxu0
      %v2238 = vadd.f32 0.0, %v2237
      %v2239 = vpop.f32.mrf.mxu0
      %v2240 = vadd.f32 0.0, %v2239
      %2241 = vmatmul.bf16.gmra.mxu0 %v2218
      %v2242 = vpop.f32.mrf.mxu0
      %v2243 = vadd.f32 0.0, %v2242
      %v2244 = vpop.f32.mrf.mxu0
      %v2245 = vadd.f32 0.0, %v2244
      %2246 = vmatmul.bf16.gmra.mxu0 %v2221
      %v2247 = vpop.f32.mrf.mxu0
      %v2248 = vadd.f32 0.0, %v2247
      %v2249 = vpop.f32.mrf.mxu0
      %v2250 = vadd.f32 0.0, %v2249
      %2251 = vdwg.mxu0
      %v2252 = vadd.f32 %v2118, %v2233
      %v2253 = vadd.f32 %v2119, %v2235
      %v2254 = vadd.f32 %v2120, %v2238
      %v2255 = vadd.f32 %v2121, %v2240
      %v2256 = vadd.f32 %v2122, %v2243
      %v2257 = vadd.f32 %v2123, %v2245
      %v2258 = vadd.f32 %v2124, %v2248
      %v2259 = vadd.f32 %v2125, %v2250
      %v2260 = vld [vmem:[%s5] sm:$0x1]
      %v2262 = vperm.slane %v2260, 0
      %v2264 = vadd.f32 %v2252, %v2262
      %v2265 = vadd.f32 %v2253, %v2262
      %v2266 = vadd.f32 %v2254, %v2262
      %v2267 = vadd.f32 %v2255, %v2262
      %v2268 = vadd.f32 %v2256, %v2262
      %v2269 = vadd.f32 %v2257, %v2262
      %v2270 = vadd.f32 %v2258, %v2262
      %v2271 = vadd.f32 %v2259, %v2262
      %v2272 = vadd.f32 %v2264, 2.0
      %v2273 = vadd.f32 %v2265, 2.0
      %v2274 = vadd.f32 %v2266, 2.0
      %v2275 = vadd.f32 %v2267, 2.0
      %v2276 = vadd.f32 %v2268, 2.0
      %v2277 = vadd.f32 %v2269, 2.0
      %v2278 = vadd.f32 %v2270, 2.0
      %v2279 = vadd.f32 %v2271, 2.0
      %v2280 = vsub.f32 0.0, %v2272
      %v2281 = vsub.f32 0.0, %v2273
      %v2282 = vsub.f32 0.0, %v2274
      %v2283 = vsub.f32 0.0, %v2275
      %v2284 = vsub.f32 0.0, %v2276
      %v2285 = vsub.f32 0.0, %v2277
      %v2286 = vsub.f32 0.0, %v2278
      %v2287 = vsub.f32 0.0, %v2279
      %v2288 = vmax.f32 %v2280, 0.0
      %v2289 = vmax.f32 %v2281, 0.0
      %v2290 = vmax.f32 %v2282, 0.0
      %v2291 = vmax.f32 %v2283, 0.0
      %v2292 = vmax.f32 %v2284, 0.0
      %v2293 = vmax.f32 %v2285, 0.0
      %v2294 = vmax.f32 %v2286, 0.0
      %v2295 = vmax.f32 %v2287, 0.0
      %v2296 = vand.u32 2147483647, %v2272
      %v2297 = vand.u32 2147483647, %v2273
      %v2298 = vand.u32 2147483647, %v2274
      %v2299 = vand.u32 2147483647, %v2275
      %v2300 = vand.u32 2147483647, %v2276
      %v2301 = vand.u32 2147483647, %v2277
      %v2302 = vand.u32 2147483647, %v2278
      %v2303 = vand.u32 2147483647, %v2279
      %v2304 = vsub.f32 0.0, %v2296
      %v2305 = vsub.f32 0.0, %v2297
      %v2306 = vsub.f32 0.0, %v2298
      %v2307 = vsub.f32 0.0, %v2299
      %v2308 = vsub.f32 0.0, %v2300
      %v2309 = vsub.f32 0.0, %v2301
      %v2310 = vsub.f32 0.0, %v2302
      %v2311 = vsub.f32 0.0, %v2303
      %v2312 = vmul.f32 %v2304, 1.442695
      %v2313 = vpow.pop %v2312
      %v2314 = vmul.f32 %v2305, 1.442695
      %v2315 = vpow.pop %v2314
      %v2316 = vmul.f32 %v2306, 1.442695
      %v2317 = vpow.pop %v2316
      %v2318 = vmul.f32 %v2307, 1.442695
      %v2319 = vpow.pop %v2318
      %v2320 = vmul.f32 %v2308, 1.442695
      %v2321 = vpow.pop %v2320
      %v2322 = vmul.f32 %v2309, 1.442695
      %v2323 = vpow.pop %v2322
      %v2324 = vmul.f32 %v2310, 1.442695
      %v2325 = vpow.pop %v2324
      %v2326 = vmul.f32 %v2311, 1.442695
      %v2327 = vpow.pop %v2326
      %v2328 = vadd.f32 %v2313, 1.0
      %v2329 = vadd.f32 %v2315, 1.0
      %v2330 = vadd.f32 %v2317, 1.0
      %v2331 = vadd.f32 %v2319, 1.0
      %v2332 = vadd.f32 %v2321, 1.0
      %v2333 = vadd.f32 %v2323, 1.0
      %v2334 = vadd.f32 %v2325, 1.0
      %v2335 = vadd.f32 %v2327, 1.0
      %v2336 = vlog2.pop %v2328
      %v2337 = vmul.f32 %v2336, 0.6931472
      %v2338 = vlog2.pop %v2329
      %v2339 = vmul.f32 %v2338, 0.6931472
      %v2340 = vlog2.pop %v2330
      %v2341 = vmul.f32 %v2340, 0.6931472
      %v2342 = vlog2.pop %v2331
      %v2343 = vmul.f32 %v2342, 0.6931472
      %v2344 = vlog2.pop %v2332
      %v2345 = vmul.f32 %v2344, 0.6931472
      %v2346 = vlog2.pop %v2333
      %v2347 = vmul.f32 %v2346, 0.6931472
      %v2348 = vlog2.pop %v2334
      %v2349 = vmul.f32 %v2348, 0.6931472
      %v2350 = vlog2.pop %v2335
      %v2351 = vmul.f32 %v2350, 0.6931472
      %v2352 = vadd.f32 %v2288, %v2337
      %v2353 = vadd.f32 %v2289, %v2339
      %v2354 = vadd.f32 %v2290, %v2341
      %v2355 = vadd.f32 %v2291, %v2343
      %v2356 = vadd.f32 %v2292, %v2345
      %v2357 = vadd.f32 %v2293, %v2347
      %v2358 = vadd.f32 %v2294, %v2349
      %v2359 = vadd.f32 %v2295, %v2351
      %v2360 = vsub.f32 0.0, %v2352
      %v2361 = vsub.f32 0.0, %v2353
      %v2362 = vsub.f32 0.0, %v2354
      %v2363 = vsub.f32 0.0, %v2355
      %v2364 = vsub.f32 0.0, %v2356
      %v2365 = vsub.f32 0.0, %v2357
      %v2366 = vsub.f32 0.0, %v2358
      %v2367 = vsub.f32 0.0, %v2359
      %v2368 = vmul.f32 %v2360, 1.442695
      %v2369 = vpow.pop %v2368
      %v2370 = vmul.f32 %v2361, 1.442695
      %v2371 = vpow.pop %v2370
      %v2372 = vmul.f32 %v2362, 1.442695
      %v2373 = vpow.pop %v2372
      %v2374 = vmul.f32 %v2363, 1.442695
      %v2375 = vpow.pop %v2374
      %v2376 = vmul.f32 %v2364, 1.442695
      %v2377 = vpow.pop %v2376
      %v2378 = vmul.f32 %v2365, 1.442695
      %v2379 = vpow.pop %v2378
      %v2380 = vmul.f32 %v2366, 1.442695
      %v2381 = vpow.pop %v2380
      %v2382 = vmul.f32 %v2367, 1.442695
      %v2383 = vpow.pop %v2382
      %v2384 = vld [vmem:[%s299] sm:$0xff]
      %v2385 = vld [vmem:[%s299 + $0x8] sm:$0xff]
      %v2386 = vld [vmem:[%s299 + $0x10] sm:$0xff]
      %v2387 = vld [vmem:[%s299 + $0x18] sm:$0xff]
      %v2388 = vld [vmem:[%s299 + $0x20] sm:$0xff]
      %v2389 = vld [vmem:[%s299 + $0x28] sm:$0xff]
      %v2390 = vld [vmem:[%s299 + $0x30] sm:$0xff]
      %v2391 = vld [vmem:[%s299 + $0x38] sm:$0xff]
      %2400 = vrot.lane.b32.xlu0 %v2264, 124
      %v2401 = vpop.permute.xlu0 %2400
      %2402 = vrot.lane.b32.xlu0 %v2265, 124
      %v2403 = vpop.permute.xlu0 %2402
      %2404 = vrot.lane.b32.xlu0 %v2266, 124
      %v2405 = vpop.permute.xlu0 %2404
      %2406 = vrot.lane.b32.xlu0 %v2267, 124
      %v2407 = vpop.permute.xlu0 %2406
      %2408 = vrot.lane.b32.xlu0 %v2268, 124
      %v2409 = vpop.permute.xlu0 %2408
      %2410 = vrot.lane.b32.xlu0 %v2269, 124
      %v2411 = vpop.permute.xlu0 %2410
      %2412 = vrot.lane.b32.xlu0 %v2270, 124
      %v2413 = vpop.permute.xlu0 %2412
      %2414 = vrot.lane.b32.xlu0 %v2271, 124
      %v2415 = vpop.permute.xlu0 %2414
      %v2424 = vadd.f32 %v2384, %v2401
      %v2425 = vadd.f32 %v2385, %v2403
      %v2426 = vadd.f32 %v2386, %v2405
      %v2427 = vadd.f32 %v2387, %v2407
      %v2428 = vadd.f32 %v2388, %v2409
      %v2429 = vadd.f32 %v2389, %v2411
      %v2430 = vadd.f32 %v2390, %v2413
      %v2431 = vadd.f32 %v2391, %v2415
      %v2432 = vmul.f32 %v2424, %v2369
      %v2433 = vmul.f32 %v2425, %v2371
      %v2434 = vmul.f32 %v2426, %v2373
      %v2435 = vmul.f32 %v2427, %v2375
      %v2436 = vmul.f32 %v2428, %v2377
      %v2437 = vmul.f32 %v2429, %v2379
      %v2438 = vmul.f32 %v2430, %v2381
      %v2439 = vmul.f32 %v2431, %v2383
      %vm2440 = vcmask 31744
      %2441 = vst.msk [vmem:[%s304] sm:$0xff] %vm2440, %v2432
      %2442 = vst.msk [vmem:[%s304 + $0x8] sm:$0xff] %vm2440, %v2433
      %2443 = vst.msk [vmem:[%s304 + $0x10] sm:$0xff] %vm2440, %v2434
      %2444 = vst.msk [vmem:[%s304 + $0x18] sm:$0xff] %vm2440, %v2435
      %2445 = vst.msk [vmem:[%s304 + $0x20] sm:$0xff] %vm2440, %v2436
      %2446 = vst.msk [vmem:[%s304 + $0x28] sm:$0xff] %vm2440, %v2437
      %2447 = vst.msk [vmem:[%s304 + $0x30] sm:$0xff] %vm2440, %v2438
      %2448 = vst.msk [vmem:[%s304 + $0x38] sm:$0xff] %vm2440, %v2439
      %v2449 = vsel %vm2440, %v2360, 0.0
      %2450 = vadd.xlane.f32.xlu0 %v2449
      %v2451 = vpop.xlane.xlu0 %2450
      %v2452 = vsel %vm2440, %v2361, 0.0
      %2453 = vadd.xlane.f32.xlu0 %v2452
      %v2454 = vpop.xlane.xlu0 %2453
      %v2455 = vsel %vm2440, %v2362, 0.0
      %2456 = vadd.xlane.f32.xlu0 %v2455
      %v2457 = vpop.xlane.xlu0 %2456
      %v2458 = vsel %vm2440, %v2363, 0.0
      %2459 = vadd.xlane.f32.xlu0 %v2458
      %v2460 = vpop.xlane.xlu0 %2459
      %v2461 = vsel %vm2440, %v2364, 0.0
      %2462 = vadd.xlane.f32.xlu0 %v2461
      %v2463 = vpop.xlane.xlu0 %2462
      %v2464 = vsel %vm2440, %v2365, 0.0
      %2465 = vadd.xlane.f32.xlu0 %v2464
      %v2466 = vpop.xlane.xlu0 %2465
      %v2467 = vsel %vm2440, %v2366, 0.0
      %2468 = vadd.xlane.f32.xlu0 %v2467
      %v2469 = vpop.xlane.xlu0 %2468
      %v2470 = vsel %vm2440, %v2367, 0.0
      %2471 = vadd.xlane.f32.xlu0 %v2470
      %v2472 = vpop.xlane.xlu0 %2471
      %v2473 = vrot.slane %v2451, 4
      %v2474 = vadd.f32 %v2451, %v2473
      %v2475 = vrot.slane %v2474, 2
      %v2476 = vadd.f32 %v2474, %v2475
      %v2477 = vrot.slane %v2476, 1
      %v2478 = vadd.f32 %v2476, %v2477
      %v2479 = vrot.slane %v2454, 4
      %v2480 = vadd.f32 %v2454, %v2479
      %v2481 = vrot.slane %v2480, 2
      %v2482 = vadd.f32 %v2480, %v2481
      %v2483 = vrot.slane %v2482, 1
      %v2484 = vadd.f32 %v2482, %v2483
      %v2485 = vrot.slane %v2457, 4
      %v2486 = vadd.f32 %v2457, %v2485
      %v2487 = vrot.slane %v2486, 2
      %v2488 = vadd.f32 %v2486, %v2487
      %v2489 = vrot.slane %v2488, 1
      %v2490 = vadd.f32 %v2488, %v2489
      %v2491 = vrot.slane %v2460, 4
      %v2492 = vadd.f32 %v2460, %v2491
      %v2493 = vrot.slane %v2492, 2
      %v2494 = vadd.f32 %v2492, %v2493
      %v2495 = vrot.slane %v2494, 1
      %v2496 = vadd.f32 %v2494, %v2495
      %v2497 = vrot.slane %v2463, 4
      %v2498 = vadd.f32 %v2463, %v2497
      %v2499 = vrot.slane %v2498, 2
      %v2500 = vadd.f32 %v2498, %v2499
      %v2501 = vrot.slane %v2500, 1
      %v2502 = vadd.f32 %v2500, %v2501
      %v2503 = vrot.slane %v2466, 4
      %v2504 = vadd.f32 %v2466, %v2503
      %v2505 = vrot.slane %v2504, 2
      %v2506 = vadd.f32 %v2504, %v2505
      %v2507 = vrot.slane %v2506, 1
      %v2508 = vadd.f32 %v2506, %v2507
      %v2509 = vrot.slane %v2469, 4
      %v2510 = vadd.f32 %v2469, %v2509
      %v2511 = vrot.slane %v2510, 2
      %v2512 = vadd.f32 %v2510, %v2511
      %v2513 = vrot.slane %v2512, 1
      %v2514 = vadd.f32 %v2512, %v2513
      %v2515 = vrot.slane %v2472, 4
      %v2516 = vadd.f32 %v2472, %v2515
      %v2517 = vrot.slane %v2516, 2
      %v2518 = vadd.f32 %v2516, %v2517
      %v2519 = vrot.slane %v2518, 1
      %v2520 = vadd.f32 %v2518, %v2519
      %v2521 = vadd.f32 %v2478, %v2484
      %v2522 = vadd.f32 %v2521, %v2490
      %v2523 = vadd.f32 %v2522, %v2496
      %v2524 = vadd.f32 %v2523, %v2502
      %v2525 = vadd.f32 %v2524, %v2508
      %v2526 = vadd.f32 %v2525, %v2514
      %v2527 = vadd.f32 %v2526, %v2520
      %vm2528 = vcmask 0
      %2529 = vst.msk [vmem:[%s307] sm:$0x1] %vm2528, %v2527
      %p2530 = scmp.lt.s32.totalorder %s19, 1
      %s2531 = scalar_select %p2530, %s19, 1
      %s2532 = smul.addr %s2531, 8
      %s2533 = smul.addr %s2532, 8
      %s2534 = scalar_lea.vmem %s6, %s2533
      %p2535 = scmp.lt.s32.totalorder %s19, 1
      %s2536 = scalar_select %p2535, %s19, 1
      %s2537 = scalar_lea.vmem %s7, %s2536
      // Predicated region
      $region45: #{affine_coupling_forward.3} parent=43 // pred_check
        %p2538 = pneg %p173
      $region46: #{affine_coupling_forward.3} parent=43 // pred_check_branch
        %2540 = sbr.rel (%p2538) target = $region48
      $region47: #{affine_coupling_forward.3} parent=43 // pred_region
        _
      $region48: #{affine_coupling_forward.3} parent=43 // pred_fallthru
        _
      // Predicated region
      $region49: #{affine_coupling_forward.3} parent=43 // pred_check
        %p2541 = pneg %p199
      $region50: #{affine_coupling_forward.3} parent=43 // pred_check_branch
        %2543 = sbr.rel (%p2541) target = $region52
      $region51: #{affine_coupling_forward.3} parent=43 // pred_region
        _
      $region52: #{affine_coupling_forward.3} parent=43 // pred_fallthru
        _
    $region44: #{affine_coupling_forward.3} parent=5 // pred_fallthru
      _
    %p2544 = scmp.le.s32.totalorder 2, %s14
    // Predicated region
    $region53: #{affine_coupling_forward.3} parent=5 // pred_check
      %p2545 = pneg %p2544
    $region54: #{affine_coupling_forward.3} parent=5 // pred_check_branch
      %2547 = sbr.rel (%p2545) target = $region56
    $region55: #{affine_coupling_forward.3} parent=5 // pred_region
      %s2548 = ssub.s32 %s14, 2
      // Predicated region
      $region57: #{affine_coupling_forward.3} parent=55 // pred_check
        %p2549 = pneg %p179
      $region58: #{affine_coupling_forward.3} parent=55 // pred_check_branch
        %2551 = sbr.rel (%p2549) target = $region60
      $region59: #{affine_coupling_forward.3} parent=55 // pred_region
        %p2552 = scmp.lt.s32.totalorder %s20, 1
        %s2553 = scalar_select %p2552, %s20, 1
        %s2554 = smul.addr %s2553, 8
        %s2555 = smul.addr %s2554, 8
        %s2556 = scalar_lea.vmem %s6, %s2555
      $region60: #{affine_coupling_forward.3} parent=55 // pred_fallthru
        _
      // Predicated region
      $region61: #{affine_coupling_forward.3} parent=55 // pred_check
        %p2557 = pneg %p205
      $region62: #{affine_coupling_forward.3} parent=55 // pred_check_branch
        %2559 = sbr.rel (%p2557) target = $region64
      $region63: #{affine_coupling_forward.3} parent=55 // pred_region
        %p2560 = scmp.lt.s32.totalorder %s20, 1
        %s2561 = scalar_select %p2560, %s20, 1
        %s2562 = scalar_lea.vmem %s7, %s2561
      $region64: #{affine_coupling_forward.3} parent=55 // pred_fallthru
        _
    $region56: #{affine_coupling_forward.3} parent=5 // pred_fallthru
      _
  $region6: #{affine_coupling_forward.3} parent=0 // loop_footer
    %s18 = sadd.s32 1, %s14
  $region7: #{affine_coupling_forward.3} parent=0 // loop_footer_branch
    %13 = sbr.rel target = $region3
  $region8: #{affine_coupling_forward.3} parent=0 // loop_exit
    _

</llo_original>
